<compile_context>
chip_gen: v6e
topology: v6e:2x2x1
jax: 0.10.0
libtpu: 0.0.40
codegen_flags: <defaults>
</compile_context>

<pallas_src>
import functools

import jax
import jax.numpy as jnp
from jax.experimental import pallas as pl
from jax.experimental.pallas import tpu as pltpu


# ----------------------------- Pallas kernel -------------------------------

def _matmul_bias_act_kernel(a_ref, w_ref, b_ref, o_ref, acc_ref, *, relu):
    """One (tm, tn) output tile; K is the (last, 'arbitrary') reduction axis."""
    k = pl.program_id(2)

    @pl.when(k == 0)
    def _():
        acc_ref[...] = jnp.zeros_like(acc_ref)

    acc_ref[...] += jnp.dot(a_ref[...], w_ref[...],
                            preferred_element_type=jnp.float32)

    @pl.when(k == pl.num_programs(2) - 1)
    def _():
        y = acc_ref[...] + b_ref[...]
        if relu:
            y = jnp.maximum(y, 0.0)
        o_ref[...] = y.astype(o_ref.dtype)


def _pick(dim, candidates):
    for c in candidates:
        if dim % c == 0:
            return c
    return dim  # full extent (always a legal block size)


def matmul_bias_act(a, w, bias, *, relu, out_dtype=jnp.float32):
    """out = maybe_relu(a @ w + bias); a:(M,K), w:(K,N), bias:(N,).

    bf16 operands on the MXU, f32 accumulator scratch, fused epilogue.
    """
    M, K = a.shape
    K2, N = w.shape
    assert K == K2 and bias.shape == (N,)

    tm = _pick(M, (1024, 512, 256, 128, 64, 32, 16, 8))
    tn = _pick(N, (512, 256, 128))
    tk = _pick(K, (2048, 1024, 512, 256, 128))
    grid = (M // tm, N // tn, K // tk)

    b2 = bias.reshape(1, N).astype(jnp.float32)

    return pl.pallas_call(
        functools.partial(_matmul_bias_act_kernel, relu=relu),
        out_shape=jax.ShapeDtypeStruct((M, N), out_dtype),
        grid_spec=pltpu.PrefetchScalarGridSpec(
            num_scalar_prefetch=0,
            grid=grid,
            in_specs=[
                pl.BlockSpec((tm, tk), lambda i, j, k: (i, k)),
                pl.BlockSpec((tk, tn), lambda i, j, k: (k, j)),
                pl.BlockSpec((1, tn), lambda i, j, k: (0, j)),
            ],
            out_specs=pl.BlockSpec((tm, tn), lambda i, j, k: (i, j)),
            scratch_shapes=[pltpu.VMEM((tm, tn), jnp.float32)],
        ),
        compiler_params=pltpu.CompilerParams(
            dimension_semantics=("parallel", "parallel", "arbitrary"),
            vmem_limit_bytes=32 * 1024 * 1024,
        ),
    )(a.astype(jnp.bfloat16), w.astype(jnp.bfloat16), b2)


# ------------------------------- JAX glue -----------------------------------

def _extract_patches_3x3_p1(x_nhwc):
    """x:(N,H,W,C) -> (N,H,W,9*C), patch ordering (dh, dw, cin). C_in=3, tiny."""
    N, H, W, C = x_nhwc.shape
    xp = jnp.pad(x_nhwc, ((0, 0), (1, 1), (1, 1), (0, 0)))
    cols = [xp[:, dh:dh + H, dw:dw + W, :] for dh in range(3) for dw in range(3)]
    return jnp.concatenate(cols, axis=-1)


def model1_vgg19_forward(params, x_nchw):
    conv_w = params["conv_w"]        # (64, 3, 3, 3)  PyTorch OIHW
    conv_b = params["conv_b"]        # (64,)
    fc_w = params["fc_w"]            # (num_classes, 64*H*W)
    fc_b = params["fc_b"]            # (num_classes,)

    N, Cin, H, W = x_nchw.shape
    Cout = conv_w.shape[0]
    num_classes = fc_w.shape[0]

    # NCHW -> NHWC (C on the lane axis internally).
    x = jnp.transpose(x_nchw, (0, 2, 3, 1)).astype(jnp.float32)

    # Conv2d(3->64, k=3, pad=1, bias) + ReLU fused into one Pallas matmul.
    patches = _extract_patches_3x3_p1(x).reshape(N * H * W, 9 * Cin)
    wm = jnp.transpose(conv_w, (2, 3, 1, 0)).reshape(9 * Cin, Cout)
    y = matmul_bias_act(patches, wm, conv_b, relu=True, out_dtype=jnp.bfloat16)

    # fc head: permute fc weight columns (trace-time, weights only) so that the
    # NHWC-flattened activation matches torch.flatten(NCHW) element ordering.
    #   torch index  j = c*H*W + h*W + w   <->   NHWC index (h*W + w)*C + c
    wfc = jnp.transpose(fc_w.reshape(num_classes, Cout, H, W), (2, 3, 1, 0))
    wfc = wfc.reshape(H * W * Cout, num_classes)
    a2 = y.reshape(N, H * W * Cout)
    logits = matmul_bias_act(a2, wfc, fc_b, relu=True, out_dtype=jnp.float32)
    return logits


# ------------------------- deterministic parameters -------------------------

def init_params(key, num_out_classes, img_size):
    k1, k2, k3, k4 = jax.random.split(key, 4)
    H, W = img_size
    conv_w = (jax.random.normal(k1, (64, 3, 3, 3), jnp.float32)
              * jnp.sqrt(2.0 / (3 * 3 * 3)))
    conv_b = 0.01 * jax.random.normal(k2, (64,), jnp.float32)
    fc_in = 64 * H * W
    fc_w = (jax.random.normal(k3, (num_out_classes, fc_in), jnp.float32)
            * jnp.sqrt(1.0 / fc_in))
    fc_b = 0.01 * jax.random.normal(k4, (num_out_classes,), jnp.float32)
    return {"conv_w": conv_w, "conv_b": conv_b, "fc_w": fc_w, "fc_b": fc_b}


# ------------------------------ reference -----------------------------------

def _reference_forward(params, x_nchw):
    y = jax.lax.conv_general_dilated(
        x_nchw.astype(jnp.float32), params["conv_w"],
        window_strides=(1, 1), padding=((1, 1), (1, 1)),
        dimension_numbers=("NCHW", "OIHW", "NCHW"))
    y = jax.nn.relu(y + params["conv_b"][None, :, None, None])
    emb = y.reshape(y.shape[0], -1)                      # torch.flatten(NCHW)
    return jax.nn.relu(emb @ params["fc_w"].T + params["fc_b"])


if __name__ == "__main__":
    key = jax.random.PRNGKey(0)
    pkey, xkey = jax.random.split(key)

    IMG = (32, 32)            # small img_size consistent with the module
    NUM_CLASSES = 128
    BATCH = 2

    params = init_params(pkey, NUM_CLASSES, IMG)
    x = jax.random.normal(xkey, (BATCH, 3, IMG[0], IMG[1]), jnp.float32)

    fwd = jax.jit(functools.partial(model1_vgg19_forward, params))
    out = fwd(x)
    jax.block_until_ready(out)

    assert out.shape == (BATCH, NUM_CLASSES), out.shape
    assert bool(jnp.all(jnp.isfinite(out)))
    assert bool(jnp.all(out >= 0.0))          # final ReLU

    # Loose correctness check vs a pure-JAX f32 reference (bf16 MXU inputs).
    ref = _reference_forward(params, x)
    max_err = float(jnp.max(jnp.abs(out - ref)))
    assert max_err < 0.1, f"max abs error vs reference: {max_err}"

    print("KERNEL_OK")
</pallas_src>

<mosaic_0001>
module attributes {stable_mosaic.version = 11 : i64} {
  func.func @_matmul_bias_act_kernel(%arg0: i32, %arg1: i32, %arg2: i32, %arg3: memref<1024x27xbf16, #tpu.memory_space<vmem>>, %arg4: memref<27x64xbf16, #tpu.memory_space<vmem>>, %arg5: memref<1x64xf32, #tpu.memory_space<vmem>>, %arg6: memref<1024x64xbf16, #tpu.memory_space<vmem>>, %arg7: memref<1024x64xf32, #tpu.memory_space<vmem>>) attributes {dimension_semantics = [#tpu.dimension_semantics<parallel>, #tpu.dimension_semantics<parallel>, #tpu.dimension_semantics<arbitrary>], iteration_bounds = array<i64: 2, 1, 1>, scalar_prefetch = 0 : i64, scratch_operands = 1 : i64, tpu.core_type = #tpu.core_type<tc>, window_params = [{transform_indices = @transform_0, window_bounds = array<i64: 1024, 27>}, {transform_indices = @transform_1, window_bounds = array<i64: 27, 64>}, {transform_indices = @transform_2, window_bounds = array<i64: 1, 64>}, {transform_indices = @transform_3, window_bounds = array<i64: 1024, 64>}]} {
    %c0_i32 = arith.constant 0 : i32
    %0 = arith.cmpi eq, %arg2, %c0_i32 : i32
    %1 = arith.extui %0 : i1 to i32
    %c0_i32_0 = arith.constant 0 : i32
    %2 = arith.cmpi ne, %1, %c0_i32_0 : i32
    scf.if %2 {
      %cst_10 = arith.constant 0.000000e+00 : f32
      %12 = vector.broadcast %cst_10 : f32 to vector<1024x64xf32>
      %c0_11 = arith.constant 0 : index
      %c0_12 = arith.constant 0 : index
      %13 = vector.load %arg7[%c0_11, %c0_12] : memref<1024x64xf32, #tpu.memory_space<vmem>>, vector<1024x64xf32>
      tpu.vector_store %arg7[%c0_11, %c0_12], %12 {strides = array<i32>} : memref<1024x64xf32, #tpu.memory_space<vmem>>, vector<1024x64xf32>,
    } else {
    }
    %c0 = arith.constant 0 : index
    %c0_1 = arith.constant 0 : index
    %3 = vector.load %arg7[%c0, %c0_1] : memref<1024x64xf32, #tpu.memory_space<vmem>>, vector<1024x64xf32>
    %c0_2 = arith.constant 0 : index
    %c0_3 = arith.constant 0 : index
    %4 = vector.load %arg3[%c0_2, %c0_3] : memref<1024x27xbf16, #tpu.memory_space<vmem>>, vector<1024x27xbf16>
    %c0_4 = arith.constant 0 : index
    %c0_5 = arith.constant 0 : index
    %5 = vector.load %arg4[%c0_4, %c0_5] : memref<27x64xbf16, #tpu.memory_space<vmem>>, vector<27x64xbf16>
    %cst = arith.constant dense<0.000000e+00> : vector<1024x64xf32>
    %6 = tpu.matmul %4, %5, %cst {dimension_numbers = #tpu.dot_dimension_numbers<[1], [0], [0], [1], [0, 0, 1, 1], [], []>} : vector<1024x27xbf16>, vector<27x64xbf16>, vector<1024x64xf32> -> vector<1024x64xf32>
    %7 = arith.addf %3, %6 : vector<1024x64xf32>
    %c0_6 = arith.constant 0 : index
    %c0_7 = arith.constant 0 : index
    %8 = vector.load %arg7[%c0_6, %c0_7] : memref<1024x64xf32, #tpu.memory_space<vmem>>, vector<1024x64xf32>
    tpu.vector_store %arg7[%c0_6, %c0_7], %7 {strides = array<i32>} : memref<1024x64xf32, #tpu.memory_space<vmem>>, vector<1024x64xf32>,
    %c0_i32_8 = arith.constant 0 : i32
    %9 = arith.cmpi eq, %arg2, %c0_i32_8 : i32
    %10 = arith.extui %9 : i1 to i32
    %c0_i32_9 = arith.constant 0 : i32
    %11 = arith.cmpi ne, %10, %c0_i32_9 : i32
    scf.if %11 {
      %c0_10 = arith.constant 0 : index
      %c0_11 = arith.constant 0 : index
      %12 = vector.load %arg7[%c0_10, %c0_11] : memref<1024x64xf32, #tpu.memory_space<vmem>>, vector<1024x64xf32>
      %c0_12 = arith.constant 0 : index
      %c0_13 = arith.constant 0 : index
      %13 = vector.load %arg5[%c0_12, %c0_13] : memref<1x64xf32, #tpu.memory_space<vmem>>, vector<1x64xf32>
      %14 = vector.broadcast %13 : vector<1x64xf32> to vector<1024x64xf32>
      %15 = arith.addf %12, %14 : vector<1024x64xf32>
      %cst_14 = arith.constant 0.000000e+00 : f32
      %16 = vector.broadcast %cst_14 : f32 to vector<1024x64xf32>
      %17 = arith.maximumf %15, %16 : vector<1024x64xf32>
      %18 = arith.truncf %17 : vector<1024x64xf32> to vector<1024x64xbf16>
      %c0_15 = arith.constant 0 : index
      %c0_16 = arith.constant 0 : index
      %19 = vector.load %arg6[%c0_15, %c0_16] : memref<1024x64xbf16, #tpu.memory_space<vmem>>, vector<1024x64xbf16>
      tpu.vector_store %arg6[%c0_15, %c0_16], %18 {strides = array<i32>} : memref<1024x64xbf16, #tpu.memory_space<vmem>>, vector<1024x64xbf16>,
    } else {
    }
    return
  }
  func.func @transform_0(%arg0: i32, %arg1: i32, %arg2: i32) -> (i32, i32) {
    %c0_i32 = arith.constant 0 : i32
    return %arg0, %arg2 : i32, i32
  }
  func.func @transform_1(%arg0: i32, %arg1: i32, %arg2: i32) -> (i32, i32) {
    %c0_i32 = arith.constant 0 : i32
    return %arg2, %arg1 : i32, i32
  }
  func.func @transform_2(%arg0: i32, %arg1: i32, %arg2: i32) -> (i32, i32) {
    %c0_i32 = arith.constant 0 : i32
    %c0_i32_0 = arith.constant 0 : i32
    return %c0_i32, %arg1 : i32, i32
  }
  func.func @transform_3(%arg0: i32, %arg1: i32, %arg2: i32) -> (i32, i32) {
    %c0_i32 = arith.constant 0 : i32
    return %arg0, %arg1 : i32, i32
  }
}

module attributes {stable_mosaic.version = 11 : i64} {
  func.func @_matmul_bias_act_kernel(%arg0: i32, %arg1: i32, %arg2: i32, %arg3: memref<2x2048xbf16, #tpu.memory_space<vmem>>, %arg4: memref<2048x128xbf16, #tpu.memory_space<vmem>>, %arg5: memref<1x128xf32, #tpu.memory_space<vmem>>, %arg6: memref<2x128xf32, #tpu.memory_space<vmem>>, %arg7: memref<2x128xf32, #tpu.memory_space<vmem>>) attributes {dimension_semantics = [#tpu.dimension_semantics<parallel>, #tpu.dimension_semantics<parallel>, #tpu.dimension_semantics<arbitrary>], iteration_bounds = array<i64: 1, 1, 32>, scalar_prefetch = 0 : i64, scratch_operands = 1 : i64, tpu.core_type = #tpu.core_type<tc>, window_params = [{transform_indices = @transform_0, window_bounds = array<i64: 2, 2048>}, {transform_indices = @transform_1, window_bounds = array<i64: 2048, 128>}, {transform_indices = @transform_2, window_bounds = array<i64: 1, 128>}, {transform_indices = @transform_3, window_bounds = array<i64: 2, 128>}]} {
    %c0_i32 = arith.constant 0 : i32
    %0 = arith.cmpi eq, %arg2, %c0_i32 : i32
    %1 = arith.extui %0 : i1 to i32
    %c0_i32_0 = arith.constant 0 : i32
    %2 = arith.cmpi ne, %1, %c0_i32_0 : i32
    scf.if %2 {
      %cst_9 = arith.constant 0.000000e+00 : f32
      %12 = vector.broadcast %cst_9 : f32 to vector<2x128xf32>
      %c0_10 = arith.constant 0 : index
      %c0_11 = arith.constant 0 : index
      %13 = vector.load %arg7[%c0_10, %c0_11] : memref<2x128xf32, #tpu.memory_space<vmem>>, vector<2x128xf32>
      tpu.vector_store %arg7[%c0_10, %c0_11], %12 {strides = array<i32>} : memref<2x128xf32, #tpu.memory_space<vmem>>, vector<2x128xf32>,
    } else {
    }
    %c0 = arith.constant 0 : index
    %c0_1 = arith.constant 0 : index
    %3 = vector.load %arg7[%c0, %c0_1] : memref<2x128xf32, #tpu.memory_space<vmem>>, vector<2x128xf32>
    %c0_2 = arith.constant 0 : index
    %c0_3 = arith.constant 0 : index
    %4 = vector.load %arg3[%c0_2, %c0_3] : memref<2x2048xbf16, #tpu.memory_space<vmem>>, vector<2x2048xbf16>
    %c0_4 = arith.constant 0 : index
    %c0_5 = arith.constant 0 : index
    %5 = vector.load %arg4[%c0_4, %c0_5] : memref<2048x128xbf16, #tpu.memory_space<vmem>>, vector<2048x128xbf16>
    %cst = arith.constant dense<0.000000e+00> : vector<2x128xf32>
    %6 = tpu.matmul %4, %5, %cst {dimension_numbers = #tpu.dot_dimension_numbers<[1], [0], [0], [1], [0, 0, 1, 1], [], []>} : vector<2x2048xbf16>, vector<2048x128xbf16>, vector<2x128xf32> -> vector<2x128xf32>
    %7 = arith.addf %3, %6 : vector<2x128xf32>
    %c0_6 = arith.constant 0 : index
    %c0_7 = arith.constant 0 : index
    %8 = vector.load %arg7[%c0_6, %c0_7] : memref<2x128xf32, #tpu.memory_space<vmem>>, vector<2x128xf32>
    tpu.vector_store %arg7[%c0_6, %c0_7], %7 {strides = array<i32>} : memref<2x128xf32, #tpu.memory_space<vmem>>, vector<2x128xf32>,
    %c31_i32 = arith.constant 31 : i32
    %9 = arith.cmpi eq, %arg2, %c31_i32 : i32
    %10 = arith.extui %9 : i1 to i32
    %c0_i32_8 = arith.constant 0 : i32
    %11 = arith.cmpi ne, %10, %c0_i32_8 : i32
    scf.if %11 {
      %c0_9 = arith.constant 0 : index
      %c0_10 = arith.constant 0 : index
      %12 = vector.load %arg7[%c0_9, %c0_10] : memref<2x128xf32, #tpu.memory_space<vmem>>, vector<2x128xf32>
      %c0_11 = arith.constant 0 : index
      %c0_12 = arith.constant 0 : index
      %13 = vector.load %arg5[%c0_11, %c0_12] : memref<1x128xf32, #tpu.memory_space<vmem>>, vector<1x128xf32>
      %14 = vector.broadcast %13 : vector<1x128xf32> to vector<2x128xf32>
      %15 = arith.addf %12, %14 : vector<2x128xf32>
      %cst_13 = arith.constant 0.000000e+00 : f32
      %16 = vector.broadcast %cst_13 : f32 to vector<2x128xf32>
      %17 = arith.maximumf %15, %16 : vector<2x128xf32>
      %c0_14 = arith.constant 0 : index
      %c0_15 = arith.constant 0 : index
      %18 = vector.load %arg6[%c0_14, %c0_15] : memref<2x128xf32, #tpu.memory_space<vmem>>, vector<2x128xf32>
      tpu.vector_store %arg6[%c0_14, %c0_15], %17 {strides = array<i32>} : memref<2x128xf32, #tpu.memory_space<vmem>>, vector<2x128xf32>,
    } else {
    }
    return
  }
  func.func @transform_0(%arg0: i32, %arg1: i32, %arg2: i32) -> (i32, i32) {
    %c0_i32 = arith.constant 0 : i32
    return %arg0, %arg2 : i32, i32
  }
  func.func @transform_1(%arg0: i32, %arg1: i32, %arg2: i32) -> (i32, i32) {
    %c0_i32 = arith.constant 0 : i32
    return %arg2, %arg1 : i32, i32
  }
  func.func @transform_2(%arg0: i32, %arg1: i32, %arg2: i32) -> (i32, i32) {
    %c0_i32 = arith.constant 0 : i32
    %c0_i32_0 = arith.constant 0 : i32
    return %c0_i32, %arg1 : i32, i32
  }
  func.func @transform_3(%arg0: i32, %arg1: i32, %arg2: i32) -> (i32, i32) {
    %c0_i32 = arith.constant 0 : i32
    return %arg0, %arg1 : i32, i32
  }
}

</mosaic_0001>

<llo_original>
// kernel: model1_vgg19_forward.3
$region0: #{model1_vgg19_forward.3}
  #allocation0 [shape = 'u32[]', space=smem, size = 0x4, offset = 0x4, fixed_abs, tag = 'smem constant byte address 0x4 - core index']
  #allocation1 [shape = 'u32[144,128]{1,0:T(1,128)}', space=vmem, size = 0x12000, scoped, tag = 'internal scratch']
  #allocation2 [shape = 'f32[2,128]{1,0:T(2,128)}', space=vmem, size = 0x400, scoped, tag = 'scratch operand']
  %s0 = inlined_call_operand.vmem [shape: bf16[2,65536], index: 0, kind: input, shape index: {}]
  %s1 = inlined_call_operand.hbm [shape: bf16[65536,128], index: 1, kind: input, shape index: {}]
  %s2 = inlined_call_operand.hbm [shape: f32[1,128], index: 2, kind: input, shape index: {}]
  %s3 = inlined_call_operand.hbm [shape: f32[2,128], index: 3, kind: output, shape index: {}]
  %s4 = sld [smem:[#allocation0]]
  $region61: #{model1_vgg19_forward.3} parent=0
    _
  %s6 = ssub.s32 1, %s4
  %s7 = scalar_select 0, %s6, %s4
  $region1: #{model1_vgg19_forward.3} parent=0
    #allocation3 [shape = 'u8[1048576]{0}', space=vmem, size = 0x100000, scoped, tag = 'input window, operand 1']
    #allocation4 [shape = 's32[2]{0}', space=sflag, size = 0x8, scoped, tag = 'scoped memory for model1_vgg19_forward.3']
    #allocation5 [shape = 's32[2]{0}', space=sflag, size = 0x8, scoped, tag = 'scoped memory for model1_vgg19_forward.3']
    #allocation6 [shape = 'u8[512]{0}', space=vmem, size = 0x400, scoped, tag = 'input window, operand 2, single buffered']
    #allocation7 [shape = 's32[1]{0}', space=sflag, size = 0x4, scoped, tag = 'scoped memory for model1_vgg19_forward.3']
    #allocation8 [shape = 'u8[1024]{0}', space=vmem, size = 0x400, scoped, tag = 'output window, operand 0, single buffered']
    %8 = vsyncpa [#allocation4], 0
    %s9 = scalar_lea.sflag [#allocation4], 1
    %10 = vsyncpa %s9, 0
    %11 = vsyncpa [#allocation7], 0
    %12 = vsyncpa [#allocation5], 0
    loop: start=0, step=1, limit=34
    $region2: #{model1_vgg19_forward.3} parent=1 // loop_pre_header
      _
    $region3: #{model1_vgg19_forward.3} parent=1 // loop_header
      %s14 = sphi 0, %s18
      %p15 = scmp.ge.s32.totalorder %s14, 34
      %s21 = sphi 0, %s40
      %s22 = sphi 0, %s36
      %s23 = sphi 0, %s32
      %s24 = sphi 0, %s21
      %s25 = sphi 0, %s22
      %s26 = sphi 0, %s23
      %s27 = sphi 0, %s24
      %s28 = sphi 0, %s25
      %s29 = sphi 0, %s26
      %s45 = sphi 0, %s47
      %s48 = sphi 0, %s45
      %s49 = sphi 0, %s48
      %s65 = sphi 0, %s49
      %s73 = sphi 0, %s75
      %s76 = sphi 0, %s73
      %s77 = sphi 0, %s76
      %s93 = sphi 0, %s77
      %s99 = sphi 0, %s101
      %s102 = sphi 0, %s99
      %s103 = sphi 0, %s102
      %s119 = sphi 0, %s103
      %s127 = sphi 0, %s129
      %s130 = sphi 0, %s127
      %s131 = sphi 0, %s130
      %s147 = sphi 0, %s131
    $region4: #{model1_vgg19_forward.3} parent=1 // loop_header_branch
      %17 = sbr.rel (%p15) target = $region8
    $region5: #{model1_vgg19_forward.3} parent=1 // loop_body
      %s19 = ssub.s32 %s14, 1
      %s20 = ssub.s32 %s14, 2
      %s30 = sadd.s32 1, %s23
      %p31 = scmp.ge.s32.totalorder %s30, 32
      %s32 = scalar_select %p31, 0, %s30
      %s33 = sadd.s32 1, %s22
      %s34 = scalar_select %p31, %s33, %s22
      %p35 = scmp.ge.s32.totalorder %s34, 1
      %s36 = scalar_select %p35, 0, %s34
      %s37 = sadd.s32 1, %s21
      %s38 = scalar_select %p35, %s37, %s21
      %p39 = scmp.ge.s32.totalorder %s38, 1
      %s40 = scalar_select %p39, 0, %s38
      %s41 = ssub.s32 %s21, %s40
      %s42 = ssub.s32 %s23, %s32
      %s43 = sor.u32 %s41, %s42
      %p44 = scmp.eq.s32.totalorder %s43, 0
      %s46 = sadd.s32 %s45, 1
      %s47 = scalar_select %p44, %s45, %s46
      %p50 = pneg %p44
      %p51 = scmp.eq.s32.totalorder %s14, 31
      %p52 = por %p50, %p51
      %p53 = scmp.ne.s32.totalorder %s45, %s48
      %p54 = scmp.eq.s32.totalorder %s14, 0
      %p55 = por %p53, %p54
      %p56 = scmp.ne.s32.totalorder %s45, %s48
      %p57 = scmp.eq.s32.totalorder %s19, 31
      %p58 = por %p56, %p57
      %p59 = scmp.ne.s32.totalorder %s48, %s49
      %p60 = scmp.eq.s32.totalorder %s19, 0
      %p61 = por %p59, %p60
      %p62 = scmp.ne.s32.totalorder %s48, %s49
      %p63 = scmp.eq.s32.totalorder %s20, 31
      %p64 = por %p62, %p63
      %p66 = scmp.ne.s32.totalorder %s49, %s65
      %p67 = scmp.eq.s32.totalorder %s20, 0
      %p68 = por %p66, %p67
      %s69 = ssub.s32 %s23, %s32
      %s70 = ssub.s32 %s22, %s36
      %s71 = sor.u32 %s69, %s70
      %p72 = scmp.eq.s32.totalorder %s71, 0
      %s74 = sadd.s32 %s73, 1
      %s75 = scalar_select %p72, %s73, %s74
      %p78 = pneg %p72
      %p79 = scmp.eq.s32.totalorder %s14, 31
      %p80 = por %p78, %p79
      %p81 = scmp.ne.s32.totalorder %s73, %s76
      %p82 = scmp.eq.s32.totalorder %s14, 0
      %p83 = por %p81, %p82
      %p84 = scmp.ne.s32.totalorder %s73, %s76
      %p85 = scmp.eq.s32.totalorder %s19, 31
      %p86 = por %p84, %p85
      %p87 = scmp.ne.s32.totalorder %s76, %s77
      %p88 = scmp.eq.s32.totalorder %s19, 0
      %p89 = por %p87, %p88
      %p90 = scmp.ne.s32.totalorder %s76, %s77
      %p91 = scmp.eq.s32.totalorder %s20, 31
      %p92 = por %p90, %p91
      %p94 = scmp.ne.s32.totalorder %s77, %s93
      %p95 = scmp.eq.s32.totalorder %s20, 0
      %p96 = por %p94, %p95
      %s97 = ssub.s32 %s22, %s36
      %p98 = scmp.eq.s32.totalorder %s97, 0
      %s100 = sadd.s32 %s99, 1
      %s101 = scalar_select %p98, %s99, %s100
      %p104 = pneg %p98
      %p105 = scmp.eq.s32.totalorder %s14, 31
      %p106 = por %p104, %p105
      %p107 = scmp.ne.s32.totalorder %s99, %s102
      %p108 = scmp.eq.s32.totalorder %s14, 0
      %p109 = por %p107, %p108
      %p110 = scmp.ne.s32.totalorder %s99, %s102
      %p111 = scmp.eq.s32.totalorder %s19, 31
      %p112 = por %p110, %p111
      %p113 = scmp.ne.s32.totalorder %s102, %s103
      %p114 = scmp.eq.s32.totalorder %s19, 0
      %p115 = por %p113, %p114
      %p116 = scmp.ne.s32.totalorder %s102, %s103
      %p117 = scmp.eq.s32.totalorder %s20, 31
      %p118 = por %p116, %p117
      %p120 = scmp.ne.s32.totalorder %s103, %s119
      %p121 = scmp.eq.s32.totalorder %s20, 0
      %p122 = por %p120, %p121
      %s123 = ssub.s32 %s21, %s40
      %s124 = ssub.s32 %s22, %s36
      %s125 = sor.u32 %s123, %s124
      %p126 = scmp.eq.s32.totalorder %s125, 0
      %s128 = sadd.s32 %s127, 1
      %s129 = scalar_select %p126, %s127, %s128
      %p132 = pneg %p126
      %p133 = scmp.eq.s32.totalorder %s14, 31
      %p134 = por %p132, %p133
      %p135 = scmp.ne.s32.totalorder %s127, %s130
      %p136 = scmp.eq.s32.totalorder %s14, 0
      %p137 = por %p135, %p136
      %p138 = scmp.ne.s32.totalorder %s127, %s130
      %p139 = scmp.eq.s32.totalorder %s19, 31
      %p140 = por %p138, %p139
      %p141 = scmp.ne.s32.totalorder %s130, %s131
      %p142 = scmp.eq.s32.totalorder %s19, 0
      %p143 = por %p141, %p142
      %p144 = scmp.ne.s32.totalorder %s130, %s131
      %p145 = scmp.eq.s32.totalorder %s20, 31
      %p146 = por %p144, %p145
      %p148 = scmp.ne.s32.totalorder %s131, %s147
      %p149 = scmp.eq.s32.totalorder %s20, 0
      %p150 = por %p148, %p149
      %p151 = scmp.le.s32.totalorder 1, %s14
      %p152 = scmp.lt.s32.totalorder %s14, 33
      %p153 = pnand %p151, %p152
      %p154 = pneg %p153
      // Predicated region
      $region9: #{model1_vgg19_forward.3} parent=5 // pred_check
        _
      $region10: #{model1_vgg19_forward.3} parent=5 // pred_check_branch
        %156 = sbr.rel (%p153) target = $region12
      $region11: #{model1_vgg19_forward.3} parent=5 // pred_region
        %s157 = ssub.s32 %s14, 1
        // Predicated region
        $region13: #{model1_vgg19_forward.3} parent=11 // pred_check
          %p158 = pneg %p115
        $region14: #{model1_vgg19_forward.3} parent=11 // pred_check_branch
          %160 = sbr.rel (%p158) target = $region16
        $region15: #{model1_vgg19_forward.3} parent=11 // pred_region
          %s162 = ssub.s32 16, 16
          %163 = vsyncadd [#allocation7], %s162
          %s164 = smul.addr %s25, 16
          %s165 = scalar_lea.hbm %s2, %s164
          %s167 = sshll.u32 [#allocation6], 4
          %s168 = int_to_ptr.vmem [resolvable:$true] %s167
          %170 = dma.hbm_to_vmem [thread:$0]  %s165, 16, %s168, [#allocation7]
        $region16: #{model1_vgg19_forward.3} parent=11 // pred_fallthru
          _
      $region12: #{model1_vgg19_forward.3} parent=5 // pred_fallthru
        _
      %p171 = scmp.lt.s32.totalorder %s14, 32
      // Predicated region
      $region17: #{model1_vgg19_forward.3} parent=5 // pred_check
        %p172 = pneg %p171
      $region18: #{model1_vgg19_forward.3} parent=5 // pred_check_branch
        %174 = sbr.rel (%p172) target = $region20
      $region19: #{model1_vgg19_forward.3} parent=5 // pred_region
        // Predicated region
        $region21: #{model1_vgg19_forward.3} parent=19 // pred_check
          %p175 = pneg %p55
        $region22: #{model1_vgg19_forward.3} parent=19 // pred_check_branch
          %177 = sbr.rel (%p175) target = $region24
        $region23: #{model1_vgg19_forward.3} parent=19 // pred_region
          %s178 = smul.u32 16, %s23
          %p179 = scmp.lt.s32.totalorder %s21, 0
          %s180 = scalar_select %p179, %s21, 0
          %p181 = scmp.lt.s32.totalorder %s178, 511
          %s182 = scalar_select %p181, %s178, 511
          %s183 = smul.addr %s180, 512
          %s184 = sadd.s32 %s182, %s183
          %s185 = scalar_lea.vmem %s0, %s184
          %s186 = smul.u32 16, %s23
        $region24: #{model1_vgg19_forward.3} parent=19 // pred_fallthru
          _
        // Predicated region
        $region25: #{model1_vgg19_forward.3} parent=19 // pred_check
          %p187 = pneg %p83
        $region26: #{model1_vgg19_forward.3} parent=19 // pred_check_branch
          %189 = sbr.rel (%p187) target = $region28
        $region27: #{model1_vgg19_forward.3} parent=19 // pred_region
          %s190 = sand.u32 %s73, 1
          %s191 = scalar_lea.sflag [#allocation4], %s190
          %s192 = sand.u32 %s73, 1
          %s193 = smul.addr %s192, 1024
          %s194 = scalar_lea.vmem [#allocation3], %s193
          %s195 = smul.u32 256, %s23
          %s197 = ssub.s32 16384, 16384
          %198 = vsyncadd %s191, %s197
          %s199 = sadd.s32 %s22, %s195
          %s200 = smul.addr %s199, 64
          %s201 = scalar_lea.hbm %s1, %s200
          %s202 = sshll.u32 %s194, 4
          %s203 = int_to_ptr.vmem [resolvable:$true] %s202
          %208 = dma.hbm_to_vmem [thread:$0]  %s201, 16384, %s203, %s191, 64, 64, 4
        $region28: #{model1_vgg19_forward.3} parent=19 // pred_fallthru
          _
      $region20: #{model1_vgg19_forward.3} parent=5 // pred_fallthru
        _
      %p209 = scmp.le.s32.totalorder 1, %s14
      %p210 = scmp.lt.s32.totalorder %s14, 33
      %p211 = pnand %p209, %p210
      %p212 = pneg %p211
      // Predicated region
      $region29: #{model1_vgg19_forward.3} parent=5 // pred_check
        _
      $region30: #{model1_vgg19_forward.3} parent=5 // pred_check_branch
        %214 = sbr.rel (%p211) target = $region32
      $region31: #{model1_vgg19_forward.3} parent=5 // pred_region
        %s215 = ssub.s32 %s14, 1
        %s216 = sand.u32 %s76, 1
        %s217 = scalar_lea.sflag [#allocation4], %s216
        %s218 = sand.u32 %s76, 1
        %s219 = smul.addr %s218, 1024
        %s220 = scalar_lea.vmem [#allocation3], %s219
        // Predicated region
        $region33: #{model1_vgg19_forward.3} parent=31 // pred_check
          %p221 = pneg %p89
        $region34: #{model1_vgg19_forward.3} parent=31 // pred_check_branch
          %223 = sbr.rel (%p221) target = $region36
        $region35: #{model1_vgg19_forward.3} parent=31 // pred_region
          %224 = dma.done %s217, 16384
        $region36: #{model1_vgg19_forward.3} parent=31 // pred_fallthru
          _
        // Predicated region
        $region37: #{model1_vgg19_forward.3} parent=31 // pred_check
          %p225 = pneg %p115
        $region38: #{model1_vgg19_forward.3} parent=31 // pred_check_branch
          %227 = sbr.rel (%p225) target = $region40
        $region39: #{model1_vgg19_forward.3} parent=31 // pred_region
          %228 = dma.done [#allocation7], 16
        $region40: #{model1_vgg19_forward.3} parent=31 // pred_fallthru
          _
        %s229 = smul.u32 16, %s26
        %p230 = scmp.lt.s32.totalorder %s24, 0
        %s231 = scalar_select %p230, %s24, 0
        %p232 = scmp.lt.s32.totalorder %s229, 511
        %s233 = scalar_select %p232, %s229, 511
        %s234 = smul.addr %s231, 512
        %s235 = sadd.s32 %s233, %s234
        %s236 = scalar_lea.vmem %s0, %s235
        %p237 = pneg %p61
        %p238 = pneg %p58
        %s239 = sand.u32 %s76, 1
        %s240 = scalar_lea.sflag [#allocation4], %s239
        %s241 = sand.u32 %s76, 1
        %s242 = smul.addr %s241, 1024
        %s243 = scalar_lea.vmem [#allocation3], %s242
        %p244 = pneg %p89
        %p245 = pneg %p86
        %p246 = pneg %p115
        %p247 = pneg %p112
        %p248 = pneg %p143
        %p249 = pneg %p140
        %s250 = smul.u32 16, %s26
        %p251 = scmp.lt.s32.totalorder %s24, 0
        %s252 = scalar_select %p251, %s24, 0
        %p253 = scmp.lt.s32.totalorder %s250, 511
        %s254 = scalar_select %p253, %s250, 511
        %s255 = smul.addr %s252, 512
        %s256 = sadd.s32 %s254, %s255
        %s257 = scalar_lea.vmem %s0, %s256
        %s258 = smul.u32 16, %s26
        %s259 = smul.u32 256, %s26
        %p261 = scmp.eq.s32.totalorder %s26, 0
        // Predicated region
        $region41: #{model1_vgg19_forward.3} parent=31 // pred_check
          %p262 = pneg %p261
        $region42: #{model1_vgg19_forward.3} parent=31 // pred_check_branch
          %264 = sbr.rel (%p262) target = $region44
        $region43: #{model1_vgg19_forward.3} parent=31 // pred_region
          %265 = vst [vmem:[#allocation2] sm:$0x3] 0.0
        $region44: #{model1_vgg19_forward.3} parent=31 // pred_fallthru
          _
        %v266 = vld [vmem:[#allocation2] sm:$0x3]
        %v267 = vld [vmem:[%s257] sm:$0xff]
        %v268 = vld [vmem:[%s257 + $0x8] sm:$0xff]
        %v269 = vld [vmem:[%s220] sm:$0xf]
        %v270 = vld [vmem:[%s220 + $0x4] sm:$0xf]
        %v271 = vld [vmem:[%s220 + $0x8] sm:$0xf]
        %v272 = vld [vmem:[%s220 + $0xc] sm:$0xf]
        %v273 = vld [vmem:[%s220 + $0x10] sm:$0xf]
        %v274 = vld [vmem:[%s220 + $0x14] sm:$0xf]
        %v275 = vld [vmem:[%s220 + $0x18] sm:$0xf]
        %v276 = vld [vmem:[%s220 + $0x1c] sm:$0xf]
        %v277 = vld [vmem:[%s220 + $0x20] sm:$0xf]
        %v278 = vld [vmem:[%s220 + $0x24] sm:$0xf]
        %v279 = vld [vmem:[%s220 + $0x28] sm:$0xf]
        %v280 = vld [vmem:[%s220 + $0x2c] sm:$0xf]
        %v281 = vld [vmem:[%s220 + $0x30] sm:$0xf]
        %v282 = vld [vmem:[%s220 + $0x34] sm:$0xf]
        %v283 = vld [vmem:[%s220 + $0x38] sm:$0xf]
        %v284 = vld [vmem:[%s220 + $0x3c] sm:$0xf]
        %v285 = vld [vmem:[%s220 + $0x40] sm:$0xf]
        %v286 = vld [vmem:[%s220 + $0x44] sm:$0xf]
        %v287 = vld [vmem:[%s220 + $0x48] sm:$0xf]
        %v288 = vld [vmem:[%s220 + $0x4c] sm:$0xf]
        %v289 = vld [vmem:[%s220 + $0x50] sm:$0xf]
        %v290 = vld [vmem:[%s220 + $0x54] sm:$0xf]
        %v291 = vld [vmem:[%s220 + $0x58] sm:$0xf]
        %v292 = vld [vmem:[%s220 + $0x5c] sm:$0xf]
        %v293 = vld [vmem:[%s220 + $0x60] sm:$0xf]
        %v294 = vld [vmem:[%s220 + $0x64] sm:$0xf]
        %v295 = vld [vmem:[%s220 + $0x68] sm:$0xf]
        %v296 = vld [vmem:[%s220 + $0x6c] sm:$0xf]
        %v297 = vld [vmem:[%s220 + $0x70] sm:$0xf]
        %v298 = vld [vmem:[%s220 + $0x74] sm:$0xf]
        %v299 = vld [vmem:[%s220 + $0x78] sm:$0xf]
        %v300 = vld [vmem:[%s220 + $0x7c] sm:$0xf]
        %v301 = vld [vmem:[%s220 + $0x80] sm:$0xf]
        %v302 = vld [vmem:[%s220 + $0x84] sm:$0xf]
        %v303 = vld [vmem:[%s220 + $0x88] sm:$0xf]
        %v304 = vld [vmem:[%s220 + $0x8c] sm:$0xf]
        %v305 = vld [vmem:[%s220 + $0x90] sm:$0xf]
        %v306 = vld [vmem:[%s220 + $0x94] sm:$0xf]
        %v307 = vld [vmem:[%s220 + $0x98] sm:$0xf]
        %v308 = vld [vmem:[%s220 + $0x9c] sm:$0xf]
        %v309 = vld [vmem:[%s220 + $0xa0] sm:$0xf]
        %v310 = vld [vmem:[%s220 + $0xa4] sm:$0xf]
        %v311 = vld [vmem:[%s220 + $0xa8] sm:$0xf]
        %v312 = vld [vmem:[%s220 + $0xac] sm:$0xf]
        %v313 = vld [vmem:[%s220 + $0xb0] sm:$0xf]
        %v314 = vld [vmem:[%s220 + $0xb4] sm:$0xf]
        %v315 = vld [vmem:[%s220 + $0xb8] sm:$0xf]
        %v316 = vld [vmem:[%s220 + $0xbc] sm:$0xf]
        %v317 = vld [vmem:[%s220 + $0xc0] sm:$0xf]
        %v318 = vld [vmem:[%s220 + $0xc4] sm:$0xf]
        %v319 = vld [vmem:[%s220 + $0xc8] sm:$0xf]
        %v320 = vld [vmem:[%s220 + $0xcc] sm:$0xf]
        %v321 = vld [vmem:[%s220 + $0xd0] sm:$0xf]
        %v322 = vld [vmem:[%s220 + $0xd4] sm:$0xf]
        %v323 = vld [vmem:[%s220 + $0xd8] sm:$0xf]
        %v324 = vld [vmem:[%s220 + $0xdc] sm:$0xf]
        %v325 = vld [vmem:[%s220 + $0xe0] sm:$0xf]
        %v326 = vld [vmem:[%s220 + $0xe4] sm:$0xf]
        %v327 = vld [vmem:[%s220 + $0xe8] sm:$0xf]
        %v328 = vld [vmem:[%s220 + $0xec] sm:$0xf]
        %v329 = vld [vmem:[%s220 + $0xf0] sm:$0xf]
        %v330 = vld [vmem:[%s220 + $0xf4] sm:$0xf]
        %v331 = vld [vmem:[%s220 + $0xf8] sm:$0xf]
        %v332 = vld [vmem:[%s220 + $0xfc] sm:$0xf]
        %v333 = vld [vmem:[%s220 + $0x100] sm:$0xf]
        %v334 = vld [vmem:[%s220 + $0x104] sm:$0xf]
        %v335 = vld [vmem:[%s220 + $0x108] sm:$0xf]
        %v336 = vld [vmem:[%s220 + $0x10c] sm:$0xf]
        %v337 = vld [vmem:[%s220 + $0x110] sm:$0xf]
        %v338 = vld [vmem:[%s220 + $0x114] sm:$0xf]
        %v339 = vld [vmem:[%s220 + $0x118] sm:$0xf]
        %v340 = vld [vmem:[%s220 + $0x11c] sm:$0xf]
        %v341 = vld [vmem:[%s220 + $0x120] sm:$0xf]
        %v342 = vld [vmem:[%s220 + $0x124] sm:$0xf]
        %v343 = vld [vmem:[%s220 + $0x128] sm:$0xf]
        %v344 = vld [vmem:[%s220 + $0x12c] sm:$0xf]
        %v345 = vld [vmem:[%s220 + $0x130] sm:$0xf]
        %v346 = vld [vmem:[%s220 + $0x134] sm:$0xf]
        %v347 = vld [vmem:[%s220 + $0x138] sm:$0xf]
        %v348 = vld [vmem:[%s220 + $0x13c] sm:$0xf]
        %v349 = vld [vmem:[%s220 + $0x140] sm:$0xf]
        %v350 = vld [vmem:[%s220 + $0x144] sm:$0xf]
        %v351 = vld [vmem:[%s220 + $0x148] sm:$0xf]
        %v352 = vld [vmem:[%s220 + $0x14c] sm:$0xf]
        %v353 = vld [vmem:[%s220 + $0x150] sm:$0xf]
        %v354 = vld [vmem:[%s220 + $0x154] sm:$0xf]
        %v355 = vld [vmem:[%s220 + $0x158] sm:$0xf]
        %v356 = vld [vmem:[%s220 + $0x15c] sm:$0xf]
        %v357 = vld [vmem:[%s220 + $0x160] sm:$0xf]
        %v358 = vld [vmem:[%s220 + $0x164] sm:$0xf]
        %v359 = vld [vmem:[%s220 + $0x168] sm:$0xf]
        %v360 = vld [vmem:[%s220 + $0x16c] sm:$0xf]
        %v361 = vld [vmem:[%s220 + $0x170] sm:$0xf]
        %v362 = vld [vmem:[%s220 + $0x174] sm:$0xf]
        %v363 = vld [vmem:[%s220 + $0x178] sm:$0xf]
        %v364 = vld [vmem:[%s220 + $0x17c] sm:$0xf]
        %v365 = vld [vmem:[%s220 + $0x180] sm:$0xf]
        %v366 = vld [vmem:[%s220 + $0x184] sm:$0xf]
        %v367 = vld [vmem:[%s220 + $0x188] sm:$0xf]
        %v368 = vld [vmem:[%s220 + $0x18c] sm:$0xf]
        %v369 = vld [vmem:[%s220 + $0x190] sm:$0xf]
        %v370 = vld [vmem:[%s220 + $0x194] sm:$0xf]
        %v371 = vld [vmem:[%s220 + $0x198] sm:$0xf]
        %v372 = vld [vmem:[%s220 + $0x19c] sm:$0xf]
        %v373 = vld [vmem:[%s220 + $0x1a0] sm:$0xf]
        %v374 = vld [vmem:[%s220 + $0x1a4] sm:$0xf]
        %v375 = vld [vmem:[%s220 + $0x1a8] sm:$0xf]
        %v376 = vld [vmem:[%s220 + $0x1ac] sm:$0xf]
        %v377 = vld [vmem:[%s220 + $0x1b0] sm:$0xf]
        %v378 = vld [vmem:[%s220 + $0x1b4] sm:$0xf]
        %v379 = vld [vmem:[%s220 + $0x1b8] sm:$0xf]
        %v380 = vld [vmem:[%s220 + $0x1bc] sm:$0xf]
        %v381 = vld [vmem:[%s220 + $0x1c0] sm:$0xf]
        %v382 = vld [vmem:[%s220 + $0x1c4] sm:$0xf]
        %v383 = vld [vmem:[%s220 + $0x1c8] sm:$0xf]
        %v384 = vld [vmem:[%s220 + $0x1cc] sm:$0xf]
        %v385 = vld [vmem:[%s220 + $0x1d0] sm:$0xf]
        %v386 = vld [vmem:[%s220 + $0x1d4] sm:$0xf]
        %v387 = vld [vmem:[%s220 + $0x1d8] sm:$0xf]
        %v388 = vld [vmem:[%s220 + $0x1dc] sm:$0xf]
        %v389 = vld [vmem:[%s220 + $0x1e0] sm:$0xf]
        %v390 = vld [vmem:[%s220 + $0x1e4] sm:$0xf]
        %v391 = vld [vmem:[%s220 + $0x1e8] sm:$0xf]
        %v392 = vld [vmem:[%s220 + $0x1ec] sm:$0xf]
        %v393 = vld [vmem:[%s220 + $0x1f0] sm:$0xf]
        %v394 = vld [vmem:[%s220 + $0x1f4] sm:$0xf]
        %v395 = vld [vmem:[%s220 + $0x1f8] sm:$0xf]
        %v396 = vld [vmem:[%s220 + $0x1fc] sm:$0xf]
        %v397 = vld [vmem:[%s220 + $0x200] sm:$0xf]
        %v398 = vld [vmem:[%s220 + $0x204] sm:$0xf]
        %v399 = vld [vmem:[%s220 + $0x208] sm:$0xf]
        %v400 = vld [vmem:[%s220 + $0x20c] sm:$0xf]
        %v401 = vld [vmem:[%s220 + $0x210] sm:$0xf]
        %v402 = vld [vmem:[%s220 + $0x214] sm:$0xf]
        %v403 = vld [vmem:[%s220 + $0x218] sm:$0xf]
        %v404 = vld [vmem:[%s220 + $0x21c] sm:$0xf]
        %v405 = vld [vmem:[%s220 + $0x220] sm:$0xf]
        %v406 = vld [vmem:[%s220 + $0x224] sm:$0xf]
        %v407 = vld [vmem:[%s220 + $0x228] sm:$0xf]
        %v408 = vld [vmem:[%s220 + $0x22c] sm:$0xf]
        %v409 = vld [vmem:[%s220 + $0x230] sm:$0xf]
        %v410 = vld [vmem:[%s220 + $0x234] sm:$0xf]
        %v411 = vld [vmem:[%s220 + $0x238] sm:$0xf]
        %v412 = vld [vmem:[%s220 + $0x23c] sm:$0xf]
        %v413 = vld [vmem:[%s220 + $0x240] sm:$0xf]
        %v414 = vld [vmem:[%s220 + $0x244] sm:$0xf]
        %v415 = vld [vmem:[%s220 + $0x248] sm:$0xf]
        %v416 = vld [vmem:[%s220 + $0x24c] sm:$0xf]
        %v417 = vld [vmem:[%s220 + $0x250] sm:$0xf]
        %v418 = vld [vmem:[%s220 + $0x254] sm:$0xf]
        %v419 = vld [vmem:[%s220 + $0x258] sm:$0xf]
        %v420 = vld [vmem:[%s220 + $0x25c] sm:$0xf]
        %v421 = vld [vmem:[%s220 + $0x260] sm:$0xf]
        %v422 = vld [vmem:[%s220 + $0x264] sm:$0xf]
        %v423 = vld [vmem:[%s220 + $0x268] sm:$0xf]
        %v424 = vld [vmem:[%s220 + $0x26c] sm:$0xf]
        %v425 = vld [vmem:[%s220 + $0x270] sm:$0xf]
        %v426 = vld [vmem:[%s220 + $0x274] sm:$0xf]
        %v427 = vld [vmem:[%s220 + $0x278] sm:$0xf]
        %v428 = vld [vmem:[%s220 + $0x27c] sm:$0xf]
        %v429 = vld [vmem:[%s220 + $0x280] sm:$0xf]
        %v430 = vld [vmem:[%s220 + $0x284] sm:$0xf]
        %v431 = vld [vmem:[%s220 + $0x288] sm:$0xf]
        %v432 = vld [vmem:[%s220 + $0x28c] sm:$0xf]
        %v433 = vld [vmem:[%s220 + $0x290] sm:$0xf]
        %v434 = vld [vmem:[%s220 + $0x294] sm:$0xf]
        %v435 = vld [vmem:[%s220 + $0x298] sm:$0xf]
        %v436 = vld [vmem:[%s220 + $0x29c] sm:$0xf]
        %v437 = vld [vmem:[%s220 + $0x2a0] sm:$0xf]
        %v438 = vld [vmem:[%s220 + $0x2a4] sm:$0xf]
        %v439 = vld [vmem:[%s220 + $0x2a8] sm:$0xf]
        %v440 = vld [vmem:[%s220 + $0x2ac] sm:$0xf]
        %v441 = vld [vmem:[%s220 + $0x2b0] sm:$0xf]
        %v442 = vld [vmem:[%s220 + $0x2b4] sm:$0xf]
        %v443 = vld [vmem:[%s220 + $0x2b8] sm:$0xf]
        %v444 = vld [vmem:[%s220 + $0x2bc] sm:$0xf]
        %v445 = vld [vmem:[%s220 + $0x2c0] sm:$0xf]
        %v446 = vld [vmem:[%s220 + $0x2c4] sm:$0xf]
        %v447 = vld [vmem:[%s220 + $0x2c8] sm:$0xf]
        %v448 = vld [vmem:[%s220 + $0x2cc] sm:$0xf]
        %v449 = vld [vmem:[%s220 + $0x2d0] sm:$0xf]
        %v450 = vld [vmem:[%s220 + $0x2d4] sm:$0xf]
        %v451 = vld [vmem:[%s220 + $0x2d8] sm:$0xf]
        %v452 = vld [vmem:[%s220 + $0x2dc] sm:$0xf]
        %v453 = vld [vmem:[%s220 + $0x2e0] sm:$0xf]
        %v454 = vld [vmem:[%s220 + $0x2e4] sm:$0xf]
        %v455 = vld [vmem:[%s220 + $0x2e8] sm:$0xf]
        %v456 = vld [vmem:[%s220 + $0x2ec] sm:$0xf]
        %v457 = vld [vmem:[%s220 + $0x2f0] sm:$0xf]
        %v458 = vld [vmem:[%s220 + $0x2f4] sm:$0xf]
        %v459 = vld [vmem:[%s220 + $0x2f8] sm:$0xf]
        %v460 = vld [vmem:[%s220 + $0x2fc] sm:$0xf]
        %v461 = vld [vmem:[%s220 + $0x300] sm:$0xf]
        %v462 = vld [vmem:[%s220 + $0x304] sm:$0xf]
        %v463 = vld [vmem:[%s220 + $0x308] sm:$0xf]
        %v464 = vld [vmem:[%s220 + $0x30c] sm:$0xf]
        %v465 = vld [vmem:[%s220 + $0x310] sm:$0xf]
        %v466 = vld [vmem:[%s220 + $0x314] sm:$0xf]
        %v467 = vld [vmem:[%s220 + $0x318] sm:$0xf]
        %v468 = vld [vmem:[%s220 + $0x31c] sm:$0xf]
        %v469 = vld [vmem:[%s220 + $0x320] sm:$0xf]
        %v470 = vld [vmem:[%s220 + $0x324] sm:$0xf]
        %v471 = vld [vmem:[%s220 + $0x328] sm:$0xf]
        %v472 = vld [vmem:[%s220 + $0x32c] sm:$0xf]
        %v473 = vld [vmem:[%s220 + $0x330] sm:$0xf]
        %v474 = vld [vmem:[%s220 + $0x334] sm:$0xf]
        %v475 = vld [vmem:[%s220 + $0x338] sm:$0xf]
        %v476 = vld [vmem:[%s220 + $0x33c] sm:$0xf]
        %v477 = vld [vmem:[%s220 + $0x340] sm:$0xf]
        %v478 = vld [vmem:[%s220 + $0x344] sm:$0xf]
        %v479 = vld [vmem:[%s220 + $0x348] sm:$0xf]
        %v480 = vld [vmem:[%s220 + $0x34c] sm:$0xf]
        %v481 = vld [vmem:[%s220 + $0x350] sm:$0xf]
        %v482 = vld [vmem:[%s220 + $0x354] sm:$0xf]
        %v483 = vld [vmem:[%s220 + $0x358] sm:$0xf]
        %v484 = vld [vmem:[%s220 + $0x35c] sm:$0xf]
        %v485 = vld [vmem:[%s220 + $0x360] sm:$0xf]
        %v486 = vld [vmem:[%s220 + $0x364] sm:$0xf]
        %v487 = vld [vmem:[%s220 + $0x368] sm:$0xf]
        %v488 = vld [vmem:[%s220 + $0x36c] sm:$0xf]
        %v489 = vld [vmem:[%s220 + $0x370] sm:$0xf]
        %v490 = vld [vmem:[%s220 + $0x374] sm:$0xf]
        %v491 = vld [vmem:[%s220 + $0x378] sm:$0xf]
        %v492 = vld [vmem:[%s220 + $0x37c] sm:$0xf]
        %v493 = vld [vmem:[%s220 + $0x380] sm:$0xf]
        %v494 = vld [vmem:[%s220 + $0x384] sm:$0xf]
        %v495 = vld [vmem:[%s220 + $0x388] sm:$0xf]
        %v496 = vld [vmem:[%s220 + $0x38c] sm:$0xf]
        %v497 = vld [vmem:[%s220 + $0x390] sm:$0xf]
        %v498 = vld [vmem:[%s220 + $0x394] sm:$0xf]
        %v499 = vld [vmem:[%s220 + $0x398] sm:$0xf]
        %v500 = vld [vmem:[%s220 + $0x39c] sm:$0xf]
        %v501 = vld [vmem:[%s220 + $0x3a0] sm:$0xf]
        %v502 = vld [vmem:[%s220 + $0x3a4] sm:$0xf]
        %v503 = vld [vmem:[%s220 + $0x3a8] sm:$0xf]
        %v504 = vld [vmem:[%s220 + $0x3ac] sm:$0xf]
        %v505 = vld [vmem:[%s220 + $0x3b0] sm:$0xf]
        %v506 = vld [vmem:[%s220 + $0x3b4] sm:$0xf]
        %v507 = vld [vmem:[%s220 + $0x3b8] sm:$0xf]
        %v508 = vld [vmem:[%s220 + $0x3bc] sm:$0xf]
        %v509 = vld [vmem:[%s220 + $0x3c0] sm:$0xf]
        %v510 = vld [vmem:[%s220 + $0x3c4] sm:$0xf]
        %v511 = vld [vmem:[%s220 + $0x3c8] sm:$0xf]
        %v512 = vld [vmem:[%s220 + $0x3cc] sm:$0xf]
        %v513 = vld [vmem:[%s220 + $0x3d0] sm:$0xf]
        %v514 = vld [vmem:[%s220 + $0x3d4] sm:$0xf]
        %v515 = vld [vmem:[%s220 + $0x3d8] sm:$0xf]
        %v516 = vld [vmem:[%s220 + $0x3dc] sm:$0xf]
        %v517 = vld [vmem:[%s220 + $0x3e0] sm:$0xf]
        %v518 = vld [vmem:[%s220 + $0x3e4] sm:$0xf]
        %v519 = vld [vmem:[%s220 + $0x3e8] sm:$0xf]
        %v520 = vld [vmem:[%s220 + $0x3ec] sm:$0xf]
        %v521 = vld [vmem:[%s220 + $0x3f0] sm:$0xf]
        %v522 = vld [vmem:[%s220 + $0x3f4] sm:$0xf]
        %v523 = vld [vmem:[%s220 + $0x3f8] sm:$0xf]
        %v524 = vld [vmem:[%s220 + $0x3fc] sm:$0xf]
        %v527 = vcombine.high %v267, %v267
        %v529 = vunpack.c.l.s4 1966171168
        %v530 = vunpack.c.0.s8 %v529
        %v531 = vlaneseq
        %v532 = vshrl.u32 %v531, 7
        %v533 = vsub.s32 %v530, %v532
        %v534 = vrot.slane %v267, %v533
        %v536 = vunpack.c.l.s4 1966171168
        %v537 = vunpack.c.0.s8 %v536
        %v538 = vlaneseq
        %v539 = vshrl.u32 %v538, 7
        %v540 = vsub.s32 %v537, %v539
        %v541 = vrot.slane %v527, %v540
        %v542 = vcombine.high %v534, %v534
        %v543 = vcombine.high %v541, %v541
        %v545 = vunpack.c.l.s4 1966171168
        %v546 = vunpack.c.0.s8 %v545
        %v547 = vlaneseq
        %v548 = vshrl.u32 %v547, 7
        %v549 = vsub.s32 %v546, %v548
        %v550 = vrot.slane %v534, %v549
        %v552 = vunpack.c.l.s4 1966171168
        %v553 = vunpack.c.0.s8 %v552
        %v554 = vlaneseq
        %v555 = vshrl.u32 %v554, 7
        %v556 = vsub.s32 %v553, %v555
        %v557 = vrot.slane %v541, %v556
        %v559 = vunpack.c.l.s4 1966171168
        %v560 = vunpack.c.0.s8 %v559
        %v561 = vlaneseq
        %v562 = vshrl.u32 %v561, 7
        %v563 = vsub.s32 %v560, %v562
        %v564 = vrot.slane %v542, %v563
        %v566 = vunpack.c.l.s4 1966171168
        %v567 = vunpack.c.0.s8 %v566
        %v568 = vlaneseq
        %v569 = vshrl.u32 %v568, 7
        %v570 = vsub.s32 %v567, %v569
        %v571 = vrot.slane %v543, %v570
        %v572 = vcombine.high %v550, %v550
        %v573 = vcombine.high %v557, %v557
        %v574 = vcombine.high %v564, %v564
        %v575 = vcombine.high %v571, %v571
        %v576 = vcombine.high %v268, %v268
        %v578 = vunpack.c.l.s4 1966171168
        %v579 = vunpack.c.0.s8 %v578
        %v580 = vlaneseq
        %v581 = vshrl.u32 %v580, 7
        %v582 = vsub.s32 %v579, %v581
        %v583 = vrot.slane %v268, %v582
        %v585 = vunpack.c.l.s4 1966171168
        %v586 = vunpack.c.0.s8 %v585
        %v587 = vlaneseq
        %v588 = vshrl.u32 %v587, 7
        %v589 = vsub.s32 %v586, %v588
        %v590 = vrot.slane %v576, %v589
        %v591 = vcombine.high %v583, %v583
        %v592 = vcombine.high %v590, %v590
        %v594 = vunpack.c.l.s4 1966171168
        %v595 = vunpack.c.0.s8 %v594
        %v596 = vlaneseq
        %v597 = vshrl.u32 %v596, 7
        %v598 = vsub.s32 %v595, %v597
        %v599 = vrot.slane %v583, %v598
        %v601 = vunpack.c.l.s4 1966171168
        %v602 = vunpack.c.0.s8 %v601
        %v603 = vlaneseq
        %v604 = vshrl.u32 %v603, 7
        %v605 = vsub.s32 %v602, %v604
        %v606 = vrot.slane %v590, %v605
        %v608 = vunpack.c.l.s4 1966171168
        %v609 = vunpack.c.0.s8 %v608
        %v610 = vlaneseq
        %v611 = vshrl.u32 %v610, 7
        %v612 = vsub.s32 %v609, %v611
        %v613 = vrot.slane %v591, %v612
        %v615 = vunpack.c.l.s4 1966171168
        %v616 = vunpack.c.0.s8 %v615
        %v617 = vlaneseq
        %v618 = vshrl.u32 %v617, 7
        %v619 = vsub.s32 %v616, %v618
        %v620 = vrot.slane %v592, %v619
        %v621 = vcombine.high %v599, %v599
        %v622 = vcombine.high %v606, %v606
        %v623 = vcombine.high %v613, %v613
        %v624 = vcombine.high %v620, %v620
        %v897 = vunpack.c.l.b16 %v269
        %v898 = vunpack.c.l.b16 %v270
        %v899 = vunpack.c.l.b16 %v271
        %v900 = vunpack.c.l.b16 %v272
        %v901 = vunpack.c.l.b16 %v273
        %v902 = vunpack.c.l.b16 %v274
        %v903 = vunpack.c.l.b16 %v275
        %v904 = vunpack.c.l.b16 %v276
        %v905 = vunpack.c.l.b16 %v277
        %v906 = vunpack.c.l.b16 %v278
        %v907 = vunpack.c.l.b16 %v279
        %v908 = vunpack.c.l.b16 %v280
        %v909 = vunpack.c.l.b16 %v281
        %v910 = vunpack.c.l.b16 %v282
        %v911 = vunpack.c.l.b16 %v283
        %v912 = vunpack.c.l.b16 %v284
        %v913 = vunpack.c.l.b16 %v285
        %v914 = vunpack.c.l.b16 %v286
        %v915 = vunpack.c.l.b16 %v287
        %v916 = vunpack.c.l.b16 %v288
        %v917 = vunpack.c.l.b16 %v289
        %v918 = vunpack.c.l.b16 %v290
        %v919 = vunpack.c.l.b16 %v291
        %v920 = vunpack.c.l.b16 %v292
        %v921 = vunpack.c.l.b16 %v293
        %v922 = vunpack.c.l.b16 %v294
        %v923 = vunpack.c.l.b16 %v295
        %v924 = vunpack.c.l.b16 %v296
        %v925 = vunpack.c.l.b16 %v297
        %v926 = vunpack.c.l.b16 %v298
        %v927 = vunpack.c.l.b16 %v299
        %v928 = vunpack.c.l.b16 %v300
        %v929 = vunpack.c.l.b16 %v301
        %v930 = vunpack.c.l.b16 %v302
        %v931 = vunpack.c.l.b16 %v303
        %v932 = vunpack.c.l.b16 %v304
        %v933 = vunpack.c.l.b16 %v305
        %v934 = vunpack.c.l.b16 %v306
        %v935 = vunpack.c.l.b16 %v307
        %v936 = vunpack.c.l.b16 %v308
        %v937 = vunpack.c.l.b16 %v309
        %v938 = vunpack.c.l.b16 %v310
        %v939 = vunpack.c.l.b16 %v311
        %v940 = vunpack.c.l.b16 %v312
        %v941 = vunpack.c.l.b16 %v313
        %v942 = vunpack.c.l.b16 %v314
        %v943 = vunpack.c.l.b16 %v315
        %v944 = vunpack.c.l.b16 %v316
        %v945 = vunpack.c.l.b16 %v317
        %v946 = vunpack.c.l.b16 %v318
        %v947 = vunpack.c.l.b16 %v319
        %v948 = vunpack.c.l.b16 %v320
        %v949 = vunpack.c.l.b16 %v321
        %v950 = vunpack.c.l.b16 %v322
        %v951 = vunpack.c.l.b16 %v323
        %v952 = vunpack.c.l.b16 %v324
        %v953 = vunpack.c.l.b16 %v325
        %v954 = vunpack.c.l.b16 %v326
        %v955 = vunpack.c.l.b16 %v327
        %v956 = vunpack.c.l.b16 %v328
        %v957 = vunpack.c.l.b16 %v329
        %v958 = vunpack.c.l.b16 %v330
        %v959 = vunpack.c.l.b16 %v331
        %v960 = vunpack.c.l.b16 %v332
        %v961 = vunpack.c.l.b16 %v333
        %v962 = vunpack.c.l.b16 %v334
        %v963 = vunpack.c.l.b16 %v335
        %v964 = vunpack.c.l.b16 %v336
        %v965 = vunpack.c.l.b16 %v337
        %v966 = vunpack.c.l.b16 %v338
        %v967 = vunpack.c.l.b16 %v339
        %v968 = vunpack.c.l.b16 %v340
        %v969 = vunpack.c.l.b16 %v341
        %v970 = vunpack.c.l.b16 %v342
        %v971 = vunpack.c.l.b16 %v343
        %v972 = vunpack.c.l.b16 %v344
        %v973 = vunpack.c.l.b16 %v345
        %v974 = vunpack.c.l.b16 %v346
        %v975 = vunpack.c.l.b16 %v347
        %v976 = vunpack.c.l.b16 %v348
        %v977 = vunpack.c.l.b16 %v349
        %v978 = vunpack.c.l.b16 %v350
        %v979 = vunpack.c.l.b16 %v351
        %v980 = vunpack.c.l.b16 %v352
        %v981 = vunpack.c.l.b16 %v353
        %v982 = vunpack.c.l.b16 %v354
        %v983 = vunpack.c.l.b16 %v355
        %v984 = vunpack.c.l.b16 %v356
        %v985 = vunpack.c.l.b16 %v357
        %v986 = vunpack.c.l.b16 %v358
        %v987 = vunpack.c.l.b16 %v359
        %v988 = vunpack.c.l.b16 %v360
        %v989 = vunpack.c.l.b16 %v361
        %v990 = vunpack.c.l.b16 %v362
        %v991 = vunpack.c.l.b16 %v363
        %v992 = vunpack.c.l.b16 %v364
        %v993 = vunpack.c.l.b16 %v365
        %v994 = vunpack.c.l.b16 %v366
        %v995 = vunpack.c.l.b16 %v367
        %v996 = vunpack.c.l.b16 %v368
        %v997 = vunpack.c.l.b16 %v369
        %v998 = vunpack.c.l.b16 %v370
        %v999 = vunpack.c.l.b16 %v371
        %v1000 = vunpack.c.l.b16 %v372
        %v1001 = vunpack.c.l.b16 %v373
        %v1002 = vunpack.c.l.b16 %v374
        %v1003 = vunpack.c.l.b16 %v375
        %v1004 = vunpack.c.l.b16 %v376
        %v1005 = vunpack.c.l.b16 %v377
        %v1006 = vunpack.c.l.b16 %v378
        %v1007 = vunpack.c.l.b16 %v379
        %v1008 = vunpack.c.l.b16 %v380
        %v1009 = vunpack.c.l.b16 %v381
        %v1010 = vunpack.c.l.b16 %v382
        %v1011 = vunpack.c.l.b16 %v383
        %v1012 = vunpack.c.l.b16 %v384
        %v1013 = vunpack.c.l.b16 %v385
        %v1014 = vunpack.c.l.b16 %v386
        %v1015 = vunpack.c.l.b16 %v387
        %v1016 = vunpack.c.l.b16 %v388
        %v1017 = vunpack.c.l.b16 %v389
        %v1018 = vunpack.c.l.b16 %v390
        %v1019 = vunpack.c.l.b16 %v391
        %v1020 = vunpack.c.l.b16 %v392
        %v1021 = vunpack.c.l.b16 %v393
        %v1022 = vunpack.c.l.b16 %v394
        %v1023 = vunpack.c.l.b16 %v395
        %v1024 = vunpack.c.l.b16 %v396
        %v1025 = vunpack.c.l.b16 %v397
        %v1026 = vunpack.c.l.b16 %v398
        %v1027 = vunpack.c.l.b16 %v399
        %v1028 = vunpack.c.l.b16 %v400
        %v1029 = vunpack.c.l.b16 %v401
        %v1030 = vunpack.c.l.b16 %v402
        %v1031 = vunpack.c.l.b16 %v403
        %v1032 = vunpack.c.l.b16 %v404
        %v1033 = vunpack.c.l.b16 %v405
        %v1034 = vunpack.c.l.b16 %v406
        %v1035 = vunpack.c.l.b16 %v407
        %v1036 = vunpack.c.l.b16 %v408
        %v1037 = vunpack.c.l.b16 %v409
        %v1038 = vunpack.c.l.b16 %v410
        %v1039 = vunpack.c.l.b16 %v411
        %v1040 = vunpack.c.l.b16 %v412
        %v1041 = vunpack.c.l.b16 %v413
        %v1042 = vunpack.c.l.b16 %v414
        %v1043 = vunpack.c.l.b16 %v415
        %v1044 = vunpack.c.l.b16 %v416
        %v1045 = vunpack.c.l.b16 %v417
        %v1046 = vunpack.c.l.b16 %v418
        %v1047 = vunpack.c.l.b16 %v419
        %v1048 = vunpack.c.l.b16 %v420
        %v1049 = vunpack.c.l.b16 %v421
        %v1050 = vunpack.c.l.b16 %v422
        %v1051 = vunpack.c.l.b16 %v423
        %v1052 = vunpack.c.l.b16 %v424
        %v1053 = vunpack.c.l.b16 %v425
        %v1054 = vunpack.c.l.b16 %v426
        %v1055 = vunpack.c.l.b16 %v427
        %v1056 = vunpack.c.l.b16 %v428
        %v1057 = vunpack.c.l.b16 %v429
        %v1058 = vunpack.c.l.b16 %v430
        %v1059 = vunpack.c.l.b16 %v431
        %v1060 = vunpack.c.l.b16 %v432
        %v1061 = vunpack.c.l.b16 %v433
        %v1062 = vunpack.c.l.b16 %v434
        %v1063 = vunpack.c.l.b16 %v435
        %v1064 = vunpack.c.l.b16 %v436
        %v1065 = vunpack.c.l.b16 %v437
        %v1066 = vunpack.c.l.b16 %v438
        %v1067 = vunpack.c.l.b16 %v439
        %v1068 = vunpack.c.l.b16 %v440
        %v1069 = vunpack.c.l.b16 %v441
        %v1070 = vunpack.c.l.b16 %v442
        %v1071 = vunpack.c.l.b16 %v443
        %v1072 = vunpack.c.l.b16 %v444
        %v1073 = vunpack.c.l.b16 %v445
        %v1074 = vunpack.c.l.b16 %v446
        %v1075 = vunpack.c.l.b16 %v447
        %v1076 = vunpack.c.l.b16 %v448
        %v1077 = vunpack.c.l.b16 %v449
        %v1078 = vunpack.c.l.b16 %v450
        %v1079 = vunpack.c.l.b16 %v451
        %v1080 = vunpack.c.l.b16 %v452
        %v1081 = vunpack.c.l.b16 %v453
        %v1082 = vunpack.c.l.b16 %v454
        %v1083 = vunpack.c.l.b16 %v455
        %v1084 = vunpack.c.l.b16 %v456
        %v1085 = vunpack.c.l.b16 %v457
        %v1086 = vunpack.c.l.b16 %v458
        %v1087 = vunpack.c.l.b16 %v459
        %v1088 = vunpack.c.l.b16 %v460
        %v1089 = vunpack.c.l.b16 %v461
        %v1090 = vunpack.c.l.b16 %v462
        %v1091 = vunpack.c.l.b16 %v463
        %v1092 = vunpack.c.l.b16 %v464
        %v1093 = vunpack.c.l.b16 %v465
        %v1094 = vunpack.c.l.b16 %v466
        %v1095 = vunpack.c.l.b16 %v467
        %v1096 = vunpack.c.l.b16 %v468
        %v1097 = vunpack.c.l.b16 %v469
        %v1098 = vunpack.c.l.b16 %v470
        %v1099 = vunpack.c.l.b16 %v471
        %v1100 = vunpack.c.l.b16 %v472
        %v1101 = vunpack.c.l.b16 %v473
        %v1102 = vunpack.c.l.b16 %v474
        %v1103 = vunpack.c.l.b16 %v475
        %v1104 = vunpack.c.l.b16 %v476
        %v1105 = vunpack.c.l.b16 %v477
        %v1106 = vunpack.c.l.b16 %v478
        %v1107 = vunpack.c.l.b16 %v479
        %v1108 = vunpack.c.l.b16 %v480
        %v1109 = vunpack.c.l.b16 %v481
        %v1110 = vunpack.c.l.b16 %v482
        %v1111 = vunpack.c.l.b16 %v483
        %v1112 = vunpack.c.l.b16 %v484
        %v1113 = vunpack.c.l.b16 %v485
        %v1114 = vunpack.c.l.b16 %v486
        %v1115 = vunpack.c.l.b16 %v487
        %v1116 = vunpack.c.l.b16 %v488
        %v1117 = vunpack.c.l.b16 %v489
        %v1118 = vunpack.c.l.b16 %v490
        %v1119 = vunpack.c.l.b16 %v491
        %v1120 = vunpack.c.l.b16 %v492
        %v1121 = vunpack.c.l.b16 %v493
        %v1122 = vunpack.c.l.b16 %v494
        %v1123 = vunpack.c.l.b16 %v495
        %v1124 = vunpack.c.l.b16 %v496
        %v1125 = vunpack.c.l.b16 %v497
        %v1126 = vunpack.c.l.b16 %v498
        %v1127 = vunpack.c.l.b16 %v499
        %v1128 = vunpack.c.l.b16 %v500
        %v1129 = vunpack.c.l.b16 %v501
        %v1130 = vunpack.c.l.b16 %v502
        %v1131 = vunpack.c.l.b16 %v503
        %v1132 = vunpack.c.l.b16 %v504
        %v1133 = vunpack.c.l.b16 %v505
        %v1134 = vunpack.c.l.b16 %v506
        %v1135 = vunpack.c.l.b16 %v507
        %v1136 = vunpack.c.l.b16 %v508
        %v1137 = vunpack.c.l.b16 %v509
        %v1138 = vunpack.c.l.b16 %v510
        %v1139 = vunpack.c.l.b16 %v511
        %v1140 = vunpack.c.l.b16 %v512
        %v1141 = vunpack.c.l.b16 %v513
        %v1142 = vunpack.c.l.b16 %v514
        %v1143 = vunpack.c.l.b16 %v515
        %v1144 = vunpack.c.l.b16 %v516
        %v1145 = vunpack.c.l.b16 %v517
        %v1146 = vunpack.c.l.b16 %v518
        %v1147 = vunpack.c.l.b16 %v519
        %v1148 = vunpack.c.l.b16 %v520
        %v1149 = vunpack.c.l.b16 %v521
        %v1150 = vunpack.c.l.b16 %v522
        %v1151 = vunpack.c.l.b16 %v523
        %v1152 = vunpack.c.l.b16 %v524
        %v1153 = vpack.c.b16 %v898, %v897
        %v1154 = vpack.c.b16 %v900, %v899
        %v1155 = vpack.c.b16 %v902, %v901
        %v1156 = vpack.c.b16 %v904, %v903
        %v1157 = vpack.c.b16 %v906, %v905
        %v1158 = vpack.c.b16 %v908, %v907
        %v1159 = vpack.c.b16 %v910, %v909
        %v1160 = vpack.c.b16 %v912, %v911
        %v1161 = vpack.c.b16 %v914, %v913
        %v1162 = vpack.c.b16 %v916, %v915
        %v1163 = vpack.c.b16 %v918, %v917
        %v1164 = vpack.c.b16 %v920, %v919
        %v1165 = vpack.c.b16 %v922, %v921
        %v1166 = vpack.c.b16 %v924, %v923
        %v1167 = vpack.c.b16 %v926, %v925
        %v1168 = vpack.c.b16 %v928, %v927
        %v1169 = vpack.c.b16 %v930, %v929
        %v1170 = vpack.c.b16 %v932, %v931
        %v1171 = vpack.c.b16 %v934, %v933
        %v1172 = vpack.c.b16 %v936, %v935
        %v1173 = vpack.c.b16 %v938, %v937
        %v1174 = vpack.c.b16 %v940, %v939
        %v1175 = vpack.c.b16 %v942, %v941
        %v1176 = vpack.c.b16 %v944, %v943
        %v1177 = vpack.c.b16 %v946, %v945
        %v1178 = vpack.c.b16 %v948, %v947
        %v1179 = vpack.c.b16 %v950, %v949
        %v1180 = vpack.c.b16 %v952, %v951
        %v1181 = vpack.c.b16 %v954, %v953
        %v1182 = vpack.c.b16 %v956, %v955
        %v1183 = vpack.c.b16 %v958, %v957
        %v1184 = vpack.c.b16 %v960, %v959
        %v1185 = vpack.c.b16 %v962, %v961
        %v1186 = vpack.c.b16 %v964, %v963
        %v1187 = vpack.c.b16 %v966, %v965
        %v1188 = vpack.c.b16 %v968, %v967
        %v1189 = vpack.c.b16 %v970, %v969
        %v1190 = vpack.c.b16 %v972, %v971
        %v1191 = vpack.c.b16 %v974, %v973
        %v1192 = vpack.c.b16 %v976, %v975
        %v1193 = vpack.c.b16 %v978, %v977
        %v1194 = vpack.c.b16 %v980, %v979
        %v1195 = vpack.c.b16 %v982, %v981
        %v1196 = vpack.c.b16 %v984, %v983
        %v1197 = vpack.c.b16 %v986, %v985
        %v1198 = vpack.c.b16 %v988, %v987
        %v1199 = vpack.c.b16 %v990, %v989
        %v1200 = vpack.c.b16 %v992, %v991
        %v1201 = vpack.c.b16 %v994, %v993
        %v1202 = vpack.c.b16 %v996, %v995
        %v1203 = vpack.c.b16 %v998, %v997
        %v1204 = vpack.c.b16 %v1000, %v999
        %v1205 = vpack.c.b16 %v1002, %v1001
        %v1206 = vpack.c.b16 %v1004, %v1003
        %v1207 = vpack.c.b16 %v1006, %v1005
        %v1208 = vpack.c.b16 %v1008, %v1007
        %v1209 = vpack.c.b16 %v1010, %v1009
        %v1210 = vpack.c.b16 %v1012, %v1011
        %v1211 = vpack.c.b16 %v1014, %v1013
        %v1212 = vpack.c.b16 %v1016, %v1015
        %v1213 = vpack.c.b16 %v1018, %v1017
        %v1214 = vpack.c.b16 %v1020, %v1019
        %v1215 = vpack.c.b16 %v1022, %v1021
        %v1216 = vpack.c.b16 %v1024, %v1023
        %v1217 = vpack.c.b16 %v1026, %v1025
        %v1218 = vpack.c.b16 %v1028, %v1027
        %v1219 = vpack.c.b16 %v1030, %v1029
        %v1220 = vpack.c.b16 %v1032, %v1031
        %v1221 = vpack.c.b16 %v1034, %v1033
        %v1222 = vpack.c.b16 %v1036, %v1035
        %v1223 = vpack.c.b16 %v1038, %v1037
        %v1224 = vpack.c.b16 %v1040, %v1039
        %v1225 = vpack.c.b16 %v1042, %v1041
        %v1226 = vpack.c.b16 %v1044, %v1043
        %v1227 = vpack.c.b16 %v1046, %v1045
        %v1228 = vpack.c.b16 %v1048, %v1047
        %v1229 = vpack.c.b16 %v1050, %v1049
        %v1230 = vpack.c.b16 %v1052, %v1051
        %v1231 = vpack.c.b16 %v1054, %v1053
        %v1232 = vpack.c.b16 %v1056, %v1055
        %v1233 = vpack.c.b16 %v1058, %v1057
        %v1234 = vpack.c.b16 %v1060, %v1059
        %v1235 = vpack.c.b16 %v1062, %v1061
        %v1236 = vpack.c.b16 %v1064, %v1063
        %v1237 = vpack.c.b16 %v1066, %v1065
        %v1238 = vpack.c.b16 %v1068, %v1067
        %v1239 = vpack.c.b16 %v1070, %v1069
        %v1240 = vpack.c.b16 %v1072, %v1071
        %v1241 = vpack.c.b16 %v1074, %v1073
        %v1242 = vpack.c.b16 %v1076, %v1075
        %v1243 = vpack.c.b16 %v1078, %v1077
        %v1244 = vpack.c.b16 %v1080, %v1079
        %v1245 = vpack.c.b16 %v1082, %v1081
        %v1246 = vpack.c.b16 %v1084, %v1083
        %v1247 = vpack.c.b16 %v1086, %v1085
        %v1248 = vpack.c.b16 %v1088, %v1087
        %v1249 = vpack.c.b16 %v1090, %v1089
        %v1250 = vpack.c.b16 %v1092, %v1091
        %v1251 = vpack.c.b16 %v1094, %v1093
        %v1252 = vpack.c.b16 %v1096, %v1095
        %v1253 = vpack.c.b16 %v1098, %v1097
        %v1254 = vpack.c.b16 %v1100, %v1099
        %v1255 = vpack.c.b16 %v1102, %v1101
        %v1256 = vpack.c.b16 %v1104, %v1103
        %v1257 = vpack.c.b16 %v1106, %v1105
        %v1258 = vpack.c.b16 %v1108, %v1107
        %v1259 = vpack.c.b16 %v1110, %v1109
        %v1260 = vpack.c.b16 %v1112, %v1111
        %v1261 = vpack.c.b16 %v1114, %v1113
        %v1262 = vpack.c.b16 %v1116, %v1115
        %v1263 = vpack.c.b16 %v1118, %v1117
        %v1264 = vpack.c.b16 %v1120, %v1119
        %v1265 = vpack.c.b16 %v1122, %v1121
        %v1266 = vpack.c.b16 %v1124, %v1123
        %v1267 = vpack.c.b16 %v1126, %v1125
        %v1268 = vpack.c.b16 %v1128, %v1127
        %v1269 = vpack.c.b16 %v1130, %v1129
        %v1270 = vpack.c.b16 %v1132, %v1131
        %v1271 = vpack.c.b16 %v1134, %v1133
        %v1272 = vpack.c.b16 %v1136, %v1135
        %v1273 = vpack.c.b16 %v1138, %v1137
        %v1274 = vpack.c.b16 %v1140, %v1139
        %v1275 = vpack.c.b16 %v1142, %v1141
        %v1276 = vpack.c.b16 %v1144, %v1143
        %v1277 = vpack.c.b16 %v1146, %v1145
        %v1278 = vpack.c.b16 %v1148, %v1147
        %v1279 = vpack.c.b16 %v1150, %v1149
        %v1280 = vpack.c.b16 %v1152, %v1151
        %1409 = vmatprep.subr.bf16.mxu0 0
        %1410 = vmatpush1.bf16.msra.mxu0 %v1160
        %1411 = vmatprep.subr.bf16.mxu0 0
        %1412 = vmatpush1.bf16.msra.mxu0 %v1159
        %1413 = vmatprep.subr.bf16.mxu0 0
        %1414 = vmatpush1.bf16.msra.mxu0 %v1158
        %1415 = vmatprep.subr.bf16.mxu0 0
        %1416 = vmatpush1.bf16.msra.mxu0 %v1157
        %1417 = vmatprep.subr.bf16.mxu0 0
        %1418 = vmatpush1.bf16.msra.mxu0 %v1156
        %1419 = vmatprep.subr.bf16.mxu0 0
        %1420 = vmatpush1.bf16.msra.mxu0 %v1155
        %1421 = vmatprep.subr.bf16.mxu0 0
        %1422 = vmatpush1.bf16.msra.mxu0 %v1154
        %1423 = vmatprep.subr.bf16.mxu0 0
        %1424 = vmatpush1.bf16.msra.mxu0 %v1153
        %1425 = vmatprep.subr.bf16.mxu0 0
        %1426 = vmatpush2.bf16.msra.mxu0 %v1168
        %1427 = vmatprep.subr.bf16.mxu0 0
        %1428 = vmatpush2.bf16.msra.mxu0 %v1167
        %1429 = vmatprep.subr.bf16.mxu0 0
        %1430 = vmatpush2.bf16.msra.mxu0 %v1166
        %1431 = vmatprep.subr.bf16.mxu0 0
        %1432 = vmatpush2.bf16.msra.mxu0 %v1165
        %1433 = vmatprep.subr.bf16.mxu0 0
        %1434 = vmatpush2.bf16.msra.mxu0 %v1164
        %1435 = vmatprep.subr.bf16.mxu0 0
        %1436 = vmatpush2.bf16.msra.mxu0 %v1163
        %1437 = vmatprep.subr.bf16.mxu0 0
        %1438 = vmatpush2.bf16.msra.mxu0 %v1162
        %1439 = vmatprep.subr.bf16.mxu0 0
        %1440 = vmatpush2.bf16.msra.mxu0 %v1161
        %1441 = vmatprep.mubr.bf16.mxu0 %v564
        %1442 = vmatmul.mubr.bf16.gmra.mxu0 %v550
        %v1443 = vpop.f32.mrf.mxu0
        %v1444 = vadd.f32 0.0, %v1443
        %v1445 = vpop.f32.mrf.mxu0
        %v1446 = vpop.f32.mrf.mxu0
        %v1447 = vpop.f32.mrf.mxu0
        %1448 = vdwg.mxu0
        %1449 = vmatprep.subr.bf16.mxu0 0
        %1450 = vmatpush1.bf16.msra.mxu0 %v1176
        %1451 = vmatprep.subr.bf16.mxu0 0
        %1452 = vmatpush1.bf16.msra.mxu0 %v1175
        %1453 = vmatprep.subr.bf16.mxu0 0
        %1454 = vmatpush1.bf16.msra.mxu0 %v1174
        %1455 = vmatprep.subr.bf16.mxu0 0
        %1456 = vmatpush1.bf16.msra.mxu0 %v1173
        %1457 = vmatprep.subr.bf16.mxu0 0
        %1458 = vmatpush1.bf16.msra.mxu0 %v1172
        %1459 = vmatprep.subr.bf16.mxu0 0
        %1460 = vmatpush1.bf16.msra.mxu0 %v1171
        %1461 = vmatprep.subr.bf16.mxu0 0
        %1462 = vmatpush1.bf16.msra.mxu0 %v1170
        %1463 = vmatprep.subr.bf16.mxu0 0
        %1464 = vmatpush1.bf16.msra.mxu0 %v1169
        %1465 = vmatprep.subr.bf16.mxu0 0
        %1466 = vmatpush2.bf16.msra.mxu0 %v1184
        %1467 = vmatprep.subr.bf16.mxu0 0
        %1468 = vmatpush2.bf16.msra.mxu0 %v1183
        %1469 = vmatprep.subr.bf16.mxu0 0
        %1470 = vmatpush2.bf16.msra.mxu0 %v1182
        %1471 = vmatprep.subr.bf16.mxu0 0
        %1472 = vmatpush2.bf16.msra.mxu0 %v1181
        %1473 = vmatprep.subr.bf16.mxu0 0
        %1474 = vmatpush2.bf16.msra.mxu0 %v1180
        %1475 = vmatprep.subr.bf16.mxu0 0
        %1476 = vmatpush2.bf16.msra.mxu0 %v1179
        %1477 = vmatprep.subr.bf16.mxu0 0
        %1478 = vmatpush2.bf16.msra.mxu0 %v1178
        %1479 = vmatprep.subr.bf16.mxu0 0
        %1480 = vmatpush2.bf16.msra.mxu0 %v1177
        %1481 = vmatprep.mubr.bf16.mxu0 %v574
        %1482 = vmatmul.mubr.bf16.gmra.mxu0 %v572
        %v1483 = vpop.f32.mrf.mxu0
        %v1484 = vadd.f32 %v1444, %v1483
        %v1485 = vpop.f32.mrf.mxu0
        %v1486 = vpop.f32.mrf.mxu0
        %v1487 = vpop.f32.mrf.mxu0
        %1488 = vdwg.mxu0
        %1489 = vmatprep.subr.bf16.mxu0 0
        %1490 = vmatpush1.bf16.msra.mxu0 %v1192
        %1491 = vmatprep.subr.bf16.mxu0 0
        %1492 = vmatpush1.bf16.msra.mxu0 %v1191
        %1493 = vmatprep.subr.bf16.mxu0 0
        %1494 = vmatpush1.bf16.msra.mxu0 %v1190
        %1495 = vmatprep.subr.bf16.mxu0 0
        %1496 = vmatpush1.bf16.msra.mxu0 %v1189
        %1497 = vmatprep.subr.bf16.mxu0 0
        %1498 = vmatpush1.bf16.msra.mxu0 %v1188
        %1499 = vmatprep.subr.bf16.mxu0 0
        %1500 = vmatpush1.bf16.msra.mxu0 %v1187
        %1501 = vmatprep.subr.bf16.mxu0 0
        %1502 = vmatpush1.bf16.msra.mxu0 %v1186
        %1503 = vmatprep.subr.bf16.mxu0 0
        %1504 = vmatpush1.bf16.msra.mxu0 %v1185
        %1505 = vmatprep.subr.bf16.mxu0 0
        %1506 = vmatpush2.bf16.msra.mxu0 %v1200
        %1507 = vmatprep.subr.bf16.mxu0 0
        %1508 = vmatpush2.bf16.msra.mxu0 %v1199
        %1509 = vmatprep.subr.bf16.mxu0 0
        %1510 = vmatpush2.bf16.msra.mxu0 %v1198
        %1511 = vmatprep.subr.bf16.mxu0 0
        %1512 = vmatpush2.bf16.msra.mxu0 %v1197
        %1513 = vmatprep.subr.bf16.mxu0 0
        %1514 = vmatpush2.bf16.msra.mxu0 %v1196
        %1515 = vmatprep.subr.bf16.mxu0 0
        %1516 = vmatpush2.bf16.msra.mxu0 %v1195
        %1517 = vmatprep.subr.bf16.mxu0 0
        %1518 = vmatpush2.bf16.msra.mxu0 %v1194
        %1519 = vmatprep.subr.bf16.mxu0 0
        %1520 = vmatpush2.bf16.msra.mxu0 %v1193
        %1521 = vmatprep.mubr.bf16.mxu0 %v571
        %1522 = vmatmul.mubr.bf16.gmra.mxu0 %v557
        %v1523 = vpop.f32.mrf.mxu0
        %v1524 = vadd.f32 %v1484, %v1523
        %v1525 = vpop.f32.mrf.mxu0
        %v1526 = vpop.f32.mrf.mxu0
        %v1527 = vpop.f32.mrf.mxu0
        %1528 = vdwg.mxu0
        %1529 = vmatprep.subr.bf16.mxu0 0
        %1530 = vmatpush1.bf16.msra.mxu0 %v1208
        %1531 = vmatprep.subr.bf16.mxu0 0
        %1532 = vmatpush1.bf16.msra.mxu0 %v1207
        %1533 = vmatprep.subr.bf16.mxu0 0
        %1534 = vmatpush1.bf16.msra.mxu0 %v1206
        %1535 = vmatprep.subr.bf16.mxu0 0
        %1536 = vmatpush1.bf16.msra.mxu0 %v1205
        %1537 = vmatprep.subr.bf16.mxu0 0
        %1538 = vmatpush1.bf16.msra.mxu0 %v1204
        %1539 = vmatprep.subr.bf16.mxu0 0
        %1540 = vmatpush1.bf16.msra.mxu0 %v1203
        %1541 = vmatprep.subr.bf16.mxu0 0
        %1542 = vmatpush1.bf16.msra.mxu0 %v1202
        %1543 = vmatprep.subr.bf16.mxu0 0
        %1544 = vmatpush1.bf16.msra.mxu0 %v1201
        %1545 = vmatprep.subr.bf16.mxu0 0
        %1546 = vmatpush2.bf16.msra.mxu0 %v1216
        %1547 = vmatprep.subr.bf16.mxu0 0
        %1548 = vmatpush2.bf16.msra.mxu0 %v1215
        %1549 = vmatprep.subr.bf16.mxu0 0
        %1550 = vmatpush2.bf16.msra.mxu0 %v1214
        %1551 = vmatprep.subr.bf16.mxu0 0
        %1552 = vmatpush2.bf16.msra.mxu0 %v1213
        %1553 = vmatprep.subr.bf16.mxu0 0
        %1554 = vmatpush2.bf16.msra.mxu0 %v1212
        %1555 = vmatprep.subr.bf16.mxu0 0
        %1556 = vmatpush2.bf16.msra.mxu0 %v1211
        %1557 = vmatprep.subr.bf16.mxu0 0
        %1558 = vmatpush2.bf16.msra.mxu0 %v1210
        %1559 = vmatprep.subr.bf16.mxu0 0
        %1560 = vmatpush2.bf16.msra.mxu0 %v1209
        %1561 = vmatprep.mubr.bf16.mxu0 %v575
        %1562 = vmatmul.mubr.bf16.gmra.mxu0 %v573
        %v1563 = vpop.f32.mrf.mxu0
        %v1564 = vadd.f32 %v1524, %v1563
        %v1565 = vpop.f32.mrf.mxu0
        %v1566 = vpop.f32.mrf.mxu0
        %v1567 = vpop.f32.mrf.mxu0
        %1568 = vdwg.mxu0
        %1569 = vmatprep.subr.bf16.mxu0 0
        %1570 = vmatpush1.bf16.msra.mxu0 %v1224
        %1571 = vmatprep.subr.bf16.mxu0 0
        %1572 = vmatpush1.bf16.msra.mxu0 %v1223
        %1573 = vmatprep.subr.bf16.mxu0 0
        %1574 = vmatpush1.bf16.msra.mxu0 %v1222
        %1575 = vmatprep.subr.bf16.mxu0 0
        %1576 = vmatpush1.bf16.msra.mxu0 %v1221
        %1577 = vmatprep.subr.bf16.mxu0 0
        %1578 = vmatpush1.bf16.msra.mxu0 %v1220
        %1579 = vmatprep.subr.bf16.mxu0 0
        %1580 = vmatpush1.bf16.msra.mxu0 %v1219
        %1581 = vmatprep.subr.bf16.mxu0 0
        %1582 = vmatpush1.bf16.msra.mxu0 %v1218
        %1583 = vmatprep.subr.bf16.mxu0 0
        %1584 = vmatpush1.bf16.msra.mxu0 %v1217
        %1585 = vmatprep.subr.bf16.mxu0 0
        %1586 = vmatpush2.bf16.msra.mxu0 %v1232
        %1587 = vmatprep.subr.bf16.mxu0 0
        %1588 = vmatpush2.bf16.msra.mxu0 %v1231
        %1589 = vmatprep.subr.bf16.mxu0 0
        %1590 = vmatpush2.bf16.msra.mxu0 %v1230
        %1591 = vmatprep.subr.bf16.mxu0 0
        %1592 = vmatpush2.bf16.msra.mxu0 %v1229
        %1593 = vmatprep.subr.bf16.mxu0 0
        %1594 = vmatpush2.bf16.msra.mxu0 %v1228
        %1595 = vmatprep.subr.bf16.mxu0 0
        %1596 = vmatpush2.bf16.msra.mxu0 %v1227
        %1597 = vmatprep.subr.bf16.mxu0 0
        %1598 = vmatpush2.bf16.msra.mxu0 %v1226
        %1599 = vmatprep.subr.bf16.mxu0 0
        %1600 = vmatpush2.bf16.msra.mxu0 %v1225
        %1601 = vmatprep.mubr.bf16.mxu0 %v613
        %1602 = vmatmul.mubr.bf16.gmra.mxu0 %v599
        %v1603 = vpop.f32.mrf.mxu0
        %v1604 = vadd.f32 %v1564, %v1603
        %v1605 = vpop.f32.mrf.mxu0
        %v1606 = vpop.f32.mrf.mxu0
        %v1607 = vpop.f32.mrf.mxu0
        %1608 = vdwg.mxu0
        %1609 = vmatprep.subr.bf16.mxu0 0
        %1610 = vmatpush1.bf16.msra.mxu0 %v1240
        %1611 = vmatprep.subr.bf16.mxu0 0
        %1612 = vmatpush1.bf16.msra.mxu0 %v1239
        %1613 = vmatprep.subr.bf16.mxu0 0
        %1614 = vmatpush1.bf16.msra.mxu0 %v1238
        %1615 = vmatprep.subr.bf16.mxu0 0
        %1616 = vmatpush1.bf16.msra.mxu0 %v1237
        %1617 = vmatprep.subr.bf16.mxu0 0
        %1618 = vmatpush1.bf16.msra.mxu0 %v1236
        %1619 = vmatprep.subr.bf16.mxu0 0
        %1620 = vmatpush1.bf16.msra.mxu0 %v1235
        %1621 = vmatprep.subr.bf16.mxu0 0
        %1622 = vmatpush1.bf16.msra.mxu0 %v1234
        %1623 = vmatprep.subr.bf16.mxu0 0
        %1624 = vmatpush1.bf16.msra.mxu0 %v1233
        %1625 = vmatprep.subr.bf16.mxu0 0
        %1626 = vmatpush2.bf16.msra.mxu0 %v1248
        %1627 = vmatprep.subr.bf16.mxu0 0
        %1628 = vmatpush2.bf16.msra.mxu0 %v1247
        %1629 = vmatprep.subr.bf16.mxu0 0
        %1630 = vmatpush2.bf16.msra.mxu0 %v1246
        %1631 = vmatprep.subr.bf16.mxu0 0
        %1632 = vmatpush2.bf16.msra.mxu0 %v1245
        %1633 = vmatprep.subr.bf16.mxu0 0
        %1634 = vmatpush2.bf16.msra.mxu0 %v1244
        %1635 = vmatprep.subr.bf16.mxu0 0
        %1636 = vmatpush2.bf16.msra.mxu0 %v1243
        %1637 = vmatprep.subr.bf16.mxu0 0
        %1638 = vmatpush2.bf16.msra.mxu0 %v1242
        %1639 = vmatprep.subr.bf16.mxu0 0
        %1640 = vmatpush2.bf16.msra.mxu0 %v1241
        %1641 = vmatprep.mubr.bf16.mxu0 %v623
        %1642 = vmatmul.mubr.bf16.gmra.mxu0 %v621
        %v1643 = vpop.f32.mrf.mxu0
        %v1644 = vadd.f32 %v1604, %v1643
        %v1645 = vpop.f32.mrf.mxu0
        %v1646 = vpop.f32.mrf.mxu0
        %v1647 = vpop.f32.mrf.mxu0
        %1648 = vdwg.mxu0
        %1649 = vmatprep.subr.bf16.mxu0 0
        %1650 = vmatpush1.bf16.msra.mxu0 %v1256
        %1651 = vmatprep.subr.bf16.mxu0 0
        %1652 = vmatpush1.bf16.msra.mxu0 %v1255
        %1653 = vmatprep.subr.bf16.mxu0 0
        %1654 = vmatpush1.bf16.msra.mxu0 %v1254
        %1655 = vmatprep.subr.bf16.mxu0 0
        %1656 = vmatpush1.bf16.msra.mxu0 %v1253
        %1657 = vmatprep.subr.bf16.mxu0 0
        %1658 = vmatpush1.bf16.msra.mxu0 %v1252
        %1659 = vmatprep.subr.bf16.mxu0 0
        %1660 = vmatpush1.bf16.msra.mxu0 %v1251
        %1661 = vmatprep.subr.bf16.mxu0 0
        %1662 = vmatpush1.bf16.msra.mxu0 %v1250
        %1663 = vmatprep.subr.bf16.mxu0 0
        %1664 = vmatpush1.bf16.msra.mxu0 %v1249
        %1665 = vmatprep.subr.bf16.mxu0 0
        %1666 = vmatpush2.bf16.msra.mxu0 %v1264
        %1667 = vmatprep.subr.bf16.mxu0 0
        %1668 = vmatpush2.bf16.msra.mxu0 %v1263
        %1669 = vmatprep.subr.bf16.mxu0 0
        %1670 = vmatpush2.bf16.msra.mxu0 %v1262
        %1671 = vmatprep.subr.bf16.mxu0 0
        %1672 = vmatpush2.bf16.msra.mxu0 %v1261
        %1673 = vmatprep.subr.bf16.mxu0 0
        %1674 = vmatpush2.bf16.msra.mxu0 %v1260
        %1675 = vmatprep.subr.bf16.mxu0 0
        %1676 = vmatpush2.bf16.msra.mxu0 %v1259
        %1677 = vmatprep.subr.bf16.mxu0 0
        %1678 = vmatpush2.bf16.msra.mxu0 %v1258
        %1679 = vmatprep.subr.bf16.mxu0 0
        %1680 = vmatpush2.bf16.msra.mxu0 %v1257
        %1681 = vmatprep.mubr.bf16.mxu0 %v620
        %1682 = vmatmul.mubr.bf16.gmra.mxu0 %v606
        %v1683 = vpop.f32.mrf.mxu0
        %v1684 = vadd.f32 %v1644, %v1683
        %v1685 = vpop.f32.mrf.mxu0
        %v1686 = vpop.f32.mrf.mxu0
        %v1687 = vpop.f32.mrf.mxu0
        %1688 = vdwg.mxu0
        %1689 = vmatprep.subr.bf16.mxu0 0
        %1690 = vmatpush1.bf16.msra.mxu0 %v1272
        %1691 = vmatprep.subr.bf16.mxu0 0
        %1692 = vmatpush1.bf16.msra.mxu0 %v1271
        %1693 = vmatprep.subr.bf16.mxu0 0
        %1694 = vmatpush1.bf16.msra.mxu0 %v1270
        %1695 = vmatprep.subr.bf16.mxu0 0
        %1696 = vmatpush1.bf16.msra.mxu0 %v1269
        %1697 = vmatprep.subr.bf16.mxu0 0
        %1698 = vmatpush1.bf16.msra.mxu0 %v1268
        %1699 = vmatprep.subr.bf16.mxu0 0
        %1700 = vmatpush1.bf16.msra.mxu0 %v1267
        %1701 = vmatprep.subr.bf16.mxu0 0
        %1702 = vmatpush1.bf16.msra.mxu0 %v1266
        %1703 = vmatprep.subr.bf16.mxu0 0
        %1704 = vmatpush1.bf16.msra.mxu0 %v1265
        %1705 = vmatprep.subr.bf16.mxu0 0
        %1706 = vmatpush2.bf16.msra.mxu0 %v1280
        %1707 = vmatprep.subr.bf16.mxu0 0
        %1708 = vmatpush2.bf16.msra.mxu0 %v1279
        %1709 = vmatprep.subr.bf16.mxu0 0
        %1710 = vmatpush2.bf16.msra.mxu0 %v1278
        %1711 = vmatprep.subr.bf16.mxu0 0
        %1712 = vmatpush2.bf16.msra.mxu0 %v1277
        %1713 = vmatprep.subr.bf16.mxu0 0
        %1714 = vmatpush2.bf16.msra.mxu0 %v1276
        %1715 = vmatprep.subr.bf16.mxu0 0
        %1716 = vmatpush2.bf16.msra.mxu0 %v1275
        %1717 = vmatprep.subr.bf16.mxu0 0
        %1718 = vmatpush2.bf16.msra.mxu0 %v1274
        %1719 = vmatprep.subr.bf16.mxu0 0
        %1720 = vmatpush2.bf16.msra.mxu0 %v1273
        %1721 = vmatprep.mubr.bf16.mxu0 %v624
        %1722 = vmatmul.mubr.bf16.gmra.mxu0 %v622
        %v1723 = vpop.f32.mrf.mxu0
        %v1724 = vadd.f32 %v1684, %v1723
        %v1725 = vpop.f32.mrf.mxu0
        %v1726 = vpop.f32.mrf.mxu0
        %v1727 = vpop.f32.mrf.mxu0
        %1728 = vdwg.mxu0
        %v1729 = vadd.f32 %v266, %v1724
        %1730 = vst [vmem:[#allocation2] sm:$0x3] %v1729
        %p1731 = scmp.eq.s32.totalorder %s26, 31
        // Predicated region
        $region45: #{model1_vgg19_forward.3} parent=31 // pred_check
          %p1732 = pneg %p1731
        $region46: #{model1_vgg19_forward.3} parent=31 // pred_check_branch
          %1734 = sbr.rel (%p1732) target = $region48
        $region47: #{model1_vgg19_forward.3} parent=31 // pred_region
          %v1735 = vld [vmem:[#allocation2] sm:$0x3]
          %v1736 = vld [vmem:[#allocation6] sm:$0x1]
          %v1738 = vlaneseq
          %v1739 = vshrl.u32 %v1738, 7
          %v1740 = vsub.s32 0, %v1739
          %v1741 = vrot.slane %v1736, %v1740
          %v1743 = vadd.f32 %v1735, %v1741
          %v1744 = vmax.f32 %v1743, 0.0
          %1745 = vst [vmem:[#allocation8] sm:$0x3] %v1744
        $region48: #{model1_vgg19_forward.3} parent=31 // pred_fallthru
          _
        // Predicated region
        $region49: #{model1_vgg19_forward.3} parent=31 // pred_check
          %p1746 = pneg %p140
        $region50: #{model1_vgg19_forward.3} parent=31 // pred_check_branch
          %1748 = sbr.rel (%p1746) target = $region52
        $region51: #{model1_vgg19_forward.3} parent=31 // pred_region
          %s1750 = ssub.s32 32, 32
          %1751 = vsyncadd [#allocation5], %s1750
          %s1752 = sadd.s32 %s25, %s24
          %s1753 = smul.addr %s1752, 32
          %s1754 = scalar_lea.hbm %s3, %s1753
          %s1756 = sshll.u32 [#allocation8], 4
          %s1757 = int_to_ptr.vmem [resolvable:$true] %s1756
          %1759 = dma.vmem_to_hbm [thread:$0]  %s1757, 32, %s1754, [#allocation5]
        $region52: #{model1_vgg19_forward.3} parent=31 // pred_fallthru
          _
        // Predicated region
        $region53: #{model1_vgg19_forward.3} parent=31 // pred_check
          %p1760 = pneg %p140
        $region54: #{model1_vgg19_forward.3} parent=31 // pred_check_branch
          %1762 = sbr.rel (%p1760) target = $region56
        $region55: #{model1_vgg19_forward.3} parent=31 // pred_region
          %1763 = dma.done [#allocation5], 32
        $region56: #{model1_vgg19_forward.3} parent=31 // pred_fallthru
          _
      $region32: #{model1_vgg19_forward.3} parent=5 // pred_fallthru
        _
      %p1764 = scmp.le.s32.totalorder 2, %s14
      // Predicated region
      $region57: #{model1_vgg19_forward.3} parent=5 // pred_check
        %p1765 = pneg %p1764
      $region58: #{model1_vgg19_forward.3} parent=5 // pred_check_branch
        %1767 = sbr.rel (%p1765) target = $region60
      $region59: #{model1_vgg19_forward.3} parent=5 // pred_region
        %s1768 = ssub.s32 %s14, 2
      $region60: #{model1_vgg19_forward.3} parent=5 // pred_fallthru
        _
    $region6: #{model1_vgg19_forward.3} parent=1 // loop_footer
      %s18 = sadd.s32 1, %s14
    $region7: #{model1_vgg19_forward.3} parent=1 // loop_footer_branch
      %13 = sbr.rel target = $region3
    $region8: #{model1_vgg19_forward.3} parent=1 // loop_exit
      _
    %1769 = vsyncpa [#allocation4], 1
    %s1770 = scalar_lea.sflag [#allocation4], 1
    %1771 = vsyncpa %s1770, 1
    %1772 = vsyncpa [#allocation7], 1
    %1773 = vsyncpa [#allocation5], 1
    %s1774 = scalar_lea.sflag [#allocation5], 1
    %1775 = vsyncpa %s1774, 1

// kernel: model1_vgg19_forward.2
$region0: #{model1_vgg19_forward.2}
  #allocation0 [shape = 'u32[]', space=smem, size = 0x4, offset = 0x4, fixed_abs, tag = 'smem constant byte address 0x4 - core index']
  #allocation1 [shape = 'u32[144,128]{1,0:T(1,128)}', space=vmem, size = 0x12000, scoped, tag = 'internal scratch']
  #allocation2 [shape = 'f32[1024,64]{1,0:T(8,128)}', space=vmem, size = 0x80000, scoped, tag = 'scratch operand']
  %s0 = inlined_call_operand.vmem [shape: bf16[2048,27], index: 0, kind: input, shape index: {}]
  %s1 = inlined_call_operand.hbm [shape: bf16[27,64], index: 1, kind: input, shape index: {}]
  %s2 = inlined_call_operand.hbm [shape: f32[1,64], index: 2, kind: input, shape index: {}]
  %s3 = inlined_call_operand.vmem [shape: bf16[2048,64], index: 3, kind: output, shape index: {}]
  %s4 = sld [smem:[#allocation0]]
  $region61: #{model1_vgg19_forward.2} parent=0
    _
  %s6 = ssub.s32 1, %s4
  %s7 = scalar_select 0, %s6, %s4
  $region1: #{model1_vgg19_forward.2} parent=0
    #allocation3 [shape = 'u8[8192]{0}', space=vmem, size = 0x2000, scoped, tag = 'input window, operand 1, single buffered']
    #allocation4 [shape = 's32[2]{0}', space=sflag, size = 0x8, scoped, tag = 'scoped memory for model1_vgg19_forward.2']
    #allocation5 [shape = 'u8[512]{0}', space=vmem, size = 0x400, scoped, tag = 'input window, operand 2, single buffered']
    #allocation6 [shape = 's32[1]{0}', space=sflag, size = 0x4, scoped, tag = 'scoped memory for model1_vgg19_forward.2']
    %8 = vsyncpa [#allocation4], 0
    %9 = vsyncpa [#allocation6], 0
    loop: start=0, step=1, limit=4
    $region2: #{model1_vgg19_forward.2} parent=1 // loop_pre_header
      _
    $region3: #{model1_vgg19_forward.2} parent=1 // loop_header
      %s11 = sphi 0, %s15
      %p12 = scmp.ge.s32.totalorder %s11, 4
      %s18 = sphi 0, %s37
      %s19 = sphi 0, %s33
      %s20 = sphi 0, %s29
      %s21 = sphi 0, %s18
      %s22 = sphi 0, %s19
      %s23 = sphi 0, %s20
      %s24 = sphi 0, %s21
      %s25 = sphi 0, %s22
      %s26 = sphi 0, %s23
      %s42 = sphi 0, %s44
      %s45 = sphi 0, %s42
      %s46 = sphi 0, %s45
      %s62 = sphi 0, %s46
      %s70 = sphi 0, %s72
      %s73 = sphi 0, %s70
      %s74 = sphi 0, %s73
      %s90 = sphi 0, %s74
      %s96 = sphi 0, %s98
      %s99 = sphi 0, %s96
      %s100 = sphi 0, %s99
      %s116 = sphi 0, %s100
      %s124 = sphi 0, %s126
      %s127 = sphi 0, %s124
      %s128 = sphi 0, %s127
      %s144 = sphi 0, %s128
    $region4: #{model1_vgg19_forward.2} parent=1 // loop_header_branch
      %14 = sbr.rel (%p12) target = $region8
    $region5: #{model1_vgg19_forward.2} parent=1 // loop_body
      %s16 = ssub.s32 %s11, 1
      %s17 = ssub.s32 %s11, 2
      %s27 = sadd.s32 1, %s20
      %p28 = scmp.ge.s32.totalorder %s27, 1
      %s29 = scalar_select %p28, 0, %s27
      %s30 = sadd.s32 1, %s19
      %s31 = scalar_select %p28, %s30, %s19
      %p32 = scmp.ge.s32.totalorder %s31, 1
      %s33 = scalar_select %p32, 0, %s31
      %s34 = sadd.s32 1, %s18
      %s35 = scalar_select %p32, %s34, %s18
      %p36 = scmp.ge.s32.totalorder %s35, 2
      %s37 = scalar_select %p36, 0, %s35
      %s38 = ssub.s32 %s18, %s37
      %s39 = ssub.s32 %s20, %s29
      %s40 = sor.u32 %s38, %s39
      %p41 = scmp.eq.s32.totalorder %s40, 0
      %s43 = sadd.s32 %s42, 1
      %s44 = scalar_select %p41, %s42, %s43
      %p47 = pneg %p41
      %p48 = scmp.eq.s32.totalorder %s11, 1
      %p49 = por %p47, %p48
      %p50 = scmp.ne.s32.totalorder %s42, %s45
      %p51 = scmp.eq.s32.totalorder %s11, 0
      %p52 = por %p50, %p51
      %p53 = scmp.ne.s32.totalorder %s42, %s45
      %p54 = scmp.eq.s32.totalorder %s16, 1
      %p55 = por %p53, %p54
      %p56 = scmp.ne.s32.totalorder %s45, %s46
      %p57 = scmp.eq.s32.totalorder %s16, 0
      %p58 = por %p56, %p57
      %p59 = scmp.ne.s32.totalorder %s45, %s46
      %p60 = scmp.eq.s32.totalorder %s17, 1
      %p61 = por %p59, %p60
      %p63 = scmp.ne.s32.totalorder %s46, %s62
      %p64 = scmp.eq.s32.totalorder %s17, 0
      %p65 = por %p63, %p64
      %s66 = ssub.s32 %s20, %s29
      %s67 = ssub.s32 %s19, %s33
      %s68 = sor.u32 %s66, %s67
      %p69 = scmp.eq.s32.totalorder %s68, 0
      %s71 = sadd.s32 %s70, 1
      %s72 = scalar_select %p69, %s70, %s71
      %p75 = pneg %p69
      %p76 = scmp.eq.s32.totalorder %s11, 1
      %p77 = por %p75, %p76
      %p78 = scmp.ne.s32.totalorder %s70, %s73
      %p79 = scmp.eq.s32.totalorder %s11, 0
      %p80 = por %p78, %p79
      %p81 = scmp.ne.s32.totalorder %s70, %s73
      %p82 = scmp.eq.s32.totalorder %s16, 1
      %p83 = por %p81, %p82
      %p84 = scmp.ne.s32.totalorder %s73, %s74
      %p85 = scmp.eq.s32.totalorder %s16, 0
      %p86 = por %p84, %p85
      %p87 = scmp.ne.s32.totalorder %s73, %s74
      %p88 = scmp.eq.s32.totalorder %s17, 1
      %p89 = por %p87, %p88
      %p91 = scmp.ne.s32.totalorder %s74, %s90
      %p92 = scmp.eq.s32.totalorder %s17, 0
      %p93 = por %p91, %p92
      %s94 = ssub.s32 %s19, %s33
      %p95 = scmp.eq.s32.totalorder %s94, 0
      %s97 = sadd.s32 %s96, 1
      %s98 = scalar_select %p95, %s96, %s97
      %p101 = pneg %p95
      %p102 = scmp.eq.s32.totalorder %s11, 1
      %p103 = por %p101, %p102
      %p104 = scmp.ne.s32.totalorder %s96, %s99
      %p105 = scmp.eq.s32.totalorder %s11, 0
      %p106 = por %p104, %p105
      %p107 = scmp.ne.s32.totalorder %s96, %s99
      %p108 = scmp.eq.s32.totalorder %s16, 1
      %p109 = por %p107, %p108
      %p110 = scmp.ne.s32.totalorder %s99, %s100
      %p111 = scmp.eq.s32.totalorder %s16, 0
      %p112 = por %p110, %p111
      %p113 = scmp.ne.s32.totalorder %s99, %s100
      %p114 = scmp.eq.s32.totalorder %s17, 1
      %p115 = por %p113, %p114
      %p117 = scmp.ne.s32.totalorder %s100, %s116
      %p118 = scmp.eq.s32.totalorder %s17, 0
      %p119 = por %p117, %p118
      %s120 = ssub.s32 %s18, %s37
      %s121 = ssub.s32 %s19, %s33
      %s122 = sor.u32 %s120, %s121
      %p123 = scmp.eq.s32.totalorder %s122, 0
      %s125 = sadd.s32 %s124, 1
      %s126 = scalar_select %p123, %s124, %s125
      %p129 = pneg %p123
      %p130 = scmp.eq.s32.totalorder %s11, 1
      %p131 = por %p129, %p130
      %p132 = scmp.ne.s32.totalorder %s124, %s127
      %p133 = scmp.eq.s32.totalorder %s11, 0
      %p134 = por %p132, %p133
      %p135 = scmp.ne.s32.totalorder %s124, %s127
      %p136 = scmp.eq.s32.totalorder %s16, 1
      %p137 = por %p135, %p136
      %p138 = scmp.ne.s32.totalorder %s127, %s128
      %p139 = scmp.eq.s32.totalorder %s16, 0
      %p140 = por %p138, %p139
      %p141 = scmp.ne.s32.totalorder %s127, %s128
      %p142 = scmp.eq.s32.totalorder %s17, 1
      %p143 = por %p141, %p142
      %p145 = scmp.ne.s32.totalorder %s128, %s144
      %p146 = scmp.eq.s32.totalorder %s17, 0
      %p147 = por %p145, %p146
      %p148 = scmp.le.s32.totalorder 1, %s11
      %p149 = scmp.lt.s32.totalorder %s11, 3
      %p150 = pnand %p148, %p149
      %p151 = pneg %p150
      // Predicated region
      $region9: #{model1_vgg19_forward.2} parent=5 // pred_check
        _
      $region10: #{model1_vgg19_forward.2} parent=5 // pred_check_branch
        %153 = sbr.rel (%p150) target = $region12
      $region11: #{model1_vgg19_forward.2} parent=5 // pred_region
        %s154 = ssub.s32 %s11, 1
        // Predicated region
        $region13: #{model1_vgg19_forward.2} parent=11 // pred_check
          %p155 = pneg %p86
        $region14: #{model1_vgg19_forward.2} parent=11 // pred_check_branch
          %157 = sbr.rel (%p155) target = $region16
        $region15: #{model1_vgg19_forward.2} parent=11 // pred_region
          %s158 = smul.u32 4, %s23
          %s160 = ssub.s32 256, 256
          %161 = vsyncadd [#allocation4], %s160
          %s162 = sadd.s32 %s22, %s158
          %s163 = smul.addr %s162, 64
          %s164 = scalar_lea.hbm %s1, %s163
          %s165 = sshll.u32 [#allocation3], 4
          %s166 = int_to_ptr.vmem [resolvable:$true] %s165
          %171 = dma.hbm_to_vmem [thread:$0]  %s164, 256, %s166, [#allocation4], 64, 64, 4
        $region16: #{model1_vgg19_forward.2} parent=11 // pred_fallthru
          _
        // Predicated region
        $region17: #{model1_vgg19_forward.2} parent=11 // pred_check
          %p172 = pneg %p112
        $region18: #{model1_vgg19_forward.2} parent=11 // pred_check_branch
          %174 = sbr.rel (%p172) target = $region20
        $region19: #{model1_vgg19_forward.2} parent=11 // pred_region
          %s176 = ssub.s32 16, 16
          %177 = vsyncadd [#allocation6], %s176
          %s178 = smul.addr %s22, 16
          %s179 = scalar_lea.hbm %s2, %s178
          %s181 = sshll.u32 [#allocation5], 4
          %s182 = int_to_ptr.vmem [resolvable:$true] %s181
          %184 = dma.hbm_to_vmem [thread:$0]  %s179, 16, %s182, [#allocation6]
        $region20: #{model1_vgg19_forward.2} parent=11 // pred_fallthru
          _
      $region12: #{model1_vgg19_forward.2} parent=5 // pred_fallthru
        _
      %p185 = scmp.lt.s32.totalorder %s11, 2
      // Predicated region
      $region21: #{model1_vgg19_forward.2} parent=5 // pred_check
        %p186 = pneg %p185
      $region22: #{model1_vgg19_forward.2} parent=5 // pred_check_branch
        %188 = sbr.rel (%p186) target = $region24
      $region23: #{model1_vgg19_forward.2} parent=5 // pred_region
        // Predicated region
        $region25: #{model1_vgg19_forward.2} parent=23 // pred_check
          %p189 = pneg %p52
        $region26: #{model1_vgg19_forward.2} parent=23 // pred_check_branch
          %191 = sbr.rel (%p189) target = $region28
        $region27: #{model1_vgg19_forward.2} parent=23 // pred_region
          %s192 = smul.u32 128, %s18
          %p193 = scmp.lt.s32.totalorder %s192, 255
          %s194 = scalar_select %p193, %s192, 255
          %p195 = scmp.lt.s32.totalorder %s20, 0
          %s196 = scalar_select %p195, %s20, 0
          %s197 = sadd.s32 %s196, %s194
          %s198 = smul.addr %s197, 4
          %s199 = scalar_lea.vmem %s0, %s198
          %s200 = smul.u32 128, %s18
        $region28: #{model1_vgg19_forward.2} parent=23 // pred_fallthru
          _
      $region24: #{model1_vgg19_forward.2} parent=5 // pred_fallthru
        _
      %p201 = scmp.le.s32.totalorder 1, %s11
      %p202 = scmp.lt.s32.totalorder %s11, 3
      %p203 = pnand %p201, %p202
      %p204 = pneg %p203
      // Predicated region
      $region29: #{model1_vgg19_forward.2} parent=5 // pred_check
        _
      $region30: #{model1_vgg19_forward.2} parent=5 // pred_check_branch
        %206 = sbr.rel (%p203) target = $region32
      $region31: #{model1_vgg19_forward.2} parent=5 // pred_region
        %s207 = ssub.s32 %s11, 1
        // Predicated region
        $region33: #{model1_vgg19_forward.2} parent=31 // pred_check
          %p208 = pneg %p86
        $region34: #{model1_vgg19_forward.2} parent=31 // pred_check_branch
          %210 = sbr.rel (%p208) target = $region36
        $region35: #{model1_vgg19_forward.2} parent=31 // pred_region
          %211 = dma.done [#allocation4], 256
        $region36: #{model1_vgg19_forward.2} parent=31 // pred_fallthru
          _
        // Predicated region
        $region37: #{model1_vgg19_forward.2} parent=31 // pred_check
          %p212 = pneg %p112
        $region38: #{model1_vgg19_forward.2} parent=31 // pred_check_branch
          %214 = sbr.rel (%p212) target = $region40
        $region39: #{model1_vgg19_forward.2} parent=31 // pred_region
          %215 = dma.done [#allocation6], 16
        $region40: #{model1_vgg19_forward.2} parent=31 // pred_fallthru
          _
        %s216 = smul.u32 128, %s21
        %p217 = scmp.lt.s32.totalorder %s216, 255
        %s218 = scalar_select %p217, %s216, 255
        %p219 = scmp.lt.s32.totalorder %s23, 0
        %s220 = scalar_select %p219, %s23, 0
        %s221 = sadd.s32 %s220, %s218
        %s222 = smul.addr %s221, 4
        %s223 = scalar_lea.vmem %s0, %s222
        %p224 = pneg %p58
        %p225 = pneg %p55
        %p226 = pneg %p86
        %p227 = pneg %p83
        %p228 = pneg %p112
        %p229 = pneg %p109
        %p230 = pneg %p140
        %p231 = pneg %p137
        %s232 = smul.u32 128, %s21
        %p233 = scmp.lt.s32.totalorder %s232, 255
        %s234 = scalar_select %p233, %s232, 255
        %p235 = scmp.lt.s32.totalorder %s22, 0
        %s236 = scalar_select %p235, %s22, 0
        %s237 = sadd.s32 %s236, %s234
        %s238 = smul.addr %s237, 4
        %s239 = scalar_lea.vmem %s3, %s238
        %s240 = smul.u32 128, %s21
        %p241 = scmp.lt.s32.totalorder %s240, 255
        %s242 = scalar_select %p241, %s240, 255
        %p243 = scmp.lt.s32.totalorder %s23, 0
        %s244 = scalar_select %p243, %s23, 0
        %s245 = sadd.s32 %s244, %s242
        %s246 = smul.addr %s245, 4
        %s247 = scalar_lea.vmem %s0, %s246
        %s248 = smul.u32 128, %s21
        %s249 = smul.u32 4, %s23
        %s250 = smul.u32 128, %s21
        %p251 = scmp.lt.s32.totalorder %s250, 255
        %s252 = scalar_select %p251, %s250, 255
        %p253 = scmp.lt.s32.totalorder %s22, 0
        %s254 = scalar_select %p253, %s22, 0
        %s255 = sadd.s32 %s254, %s252
        %s256 = smul.addr %s255, 4
        %s257 = scalar_lea.vmem %s3, %s256
        %s258 = smul.u32 128, %s21
        %p260 = scmp.eq.s32.totalorder %s23, 0
        // Predicated region
        $region41: #{model1_vgg19_forward.2} parent=31 // pred_check
          %p261 = pneg %p260
        $region42: #{model1_vgg19_forward.2} parent=31 // pred_check_branch
          %263 = sbr.rel (%p261) target = $region44
        $region43: #{model1_vgg19_forward.2} parent=31 // pred_region
          %vm264 = vcmask 523264
          %265 = vst.msk [vmem:[#allocation2] sm:$0xff] %vm264, 0.0
          %266 = vst.msk [vmem:[#allocation2 + $0x8] sm:$0xff] %vm264, 0.0
          %267 = vst.msk [vmem:[#allocation2 + $0x10] sm:$0xff] %vm264, 0.0
          %268 = vst.msk [vmem:[#allocation2 + $0x18] sm:$0xff] %vm264, 0.0
          %269 = vst.msk [vmem:[#allocation2 + $0x20] sm:$0xff] %vm264, 0.0
          %270 = vst.msk [vmem:[#allocation2 + $0x28] sm:$0xff] %vm264, 0.0
          %271 = vst.msk [vmem:[#allocation2 + $0x30] sm:$0xff] %vm264, 0.0
          %272 = vst.msk [vmem:[#allocation2 + $0x38] sm:$0xff] %vm264, 0.0
          %273 = vst.msk [vmem:[#allocation2 + $0x40] sm:$0xff] %vm264, 0.0
          %274 = vst.msk [vmem:[#allocation2 + $0x48] sm:$0xff] %vm264, 0.0
          %275 = vst.msk [vmem:[#allocation2 + $0x50] sm:$0xff] %vm264, 0.0
          %276 = vst.msk [vmem:[#allocation2 + $0x58] sm:$0xff] %vm264, 0.0
          %277 = vst.msk [vmem:[#allocation2 + $0x60] sm:$0xff] %vm264, 0.0
          %278 = vst.msk [vmem:[#allocation2 + $0x68] sm:$0xff] %vm264, 0.0
          %279 = vst.msk [vmem:[#allocation2 + $0x70] sm:$0xff] %vm264, 0.0
          %280 = vst.msk [vmem:[#allocation2 + $0x78] sm:$0xff] %vm264, 0.0
          %281 = vst.msk [vmem:[#allocation2 + $0x80] sm:$0xff] %vm264, 0.0
          %282 = vst.msk [vmem:[#allocation2 + $0x88] sm:$0xff] %vm264, 0.0
          %283 = vst.msk [vmem:[#allocation2 + $0x90] sm:$0xff] %vm264, 0.0
          %284 = vst.msk [vmem:[#allocation2 + $0x98] sm:$0xff] %vm264, 0.0
          %285 = vst.msk [vmem:[#allocation2 + $0xa0] sm:$0xff] %vm264, 0.0
          %286 = vst.msk [vmem:[#allocation2 + $0xa8] sm:$0xff] %vm264, 0.0
          %287 = vst.msk [vmem:[#allocation2 + $0xb0] sm:$0xff] %vm264, 0.0
          %288 = vst.msk [vmem:[#allocation2 + $0xb8] sm:$0xff] %vm264, 0.0
          %289 = vst.msk [vmem:[#allocation2 + $0xc0] sm:$0xff] %vm264, 0.0
          %290 = vst.msk [vmem:[#allocation2 + $0xc8] sm:$0xff] %vm264, 0.0
          %291 = vst.msk [vmem:[#allocation2 + $0xd0] sm:$0xff] %vm264, 0.0
          %292 = vst.msk [vmem:[#allocation2 + $0xd8] sm:$0xff] %vm264, 0.0
          %293 = vst.msk [vmem:[#allocation2 + $0xe0] sm:$0xff] %vm264, 0.0
          %294 = vst.msk [vmem:[#allocation2 + $0xe8] sm:$0xff] %vm264, 0.0
          %295 = vst.msk [vmem:[#allocation2 + $0xf0] sm:$0xff] %vm264, 0.0
          %296 = vst.msk [vmem:[#allocation2 + $0xf8] sm:$0xff] %vm264, 0.0
          %297 = vst.msk [vmem:[#allocation2 + $0x100] sm:$0xff] %vm264, 0.0
          %298 = vst.msk [vmem:[#allocation2 + $0x108] sm:$0xff] %vm264, 0.0
          %299 = vst.msk [vmem:[#allocation2 + $0x110] sm:$0xff] %vm264, 0.0
          %300 = vst.msk [vmem:[#allocation2 + $0x118] sm:$0xff] %vm264, 0.0
          %301 = vst.msk [vmem:[#allocation2 + $0x120] sm:$0xff] %vm264, 0.0
          %302 = vst.msk [vmem:[#allocation2 + $0x128] sm:$0xff] %vm264, 0.0
          %303 = vst.msk [vmem:[#allocation2 + $0x130] sm:$0xff] %vm264, 0.0
          %304 = vst.msk [vmem:[#allocation2 + $0x138] sm:$0xff] %vm264, 0.0
          %305 = vst.msk [vmem:[#allocation2 + $0x140] sm:$0xff] %vm264, 0.0
          %306 = vst.msk [vmem:[#allocation2 + $0x148] sm:$0xff] %vm264, 0.0
          %307 = vst.msk [vmem:[#allocation2 + $0x150] sm:$0xff] %vm264, 0.0
          %308 = vst.msk [vmem:[#allocation2 + $0x158] sm:$0xff] %vm264, 0.0
          %309 = vst.msk [vmem:[#allocation2 + $0x160] sm:$0xff] %vm264, 0.0
          %310 = vst.msk [vmem:[#allocation2 + $0x168] sm:$0xff] %vm264, 0.0
          %311 = vst.msk [vmem:[#allocation2 + $0x170] sm:$0xff] %vm264, 0.0
          %312 = vst.msk [vmem:[#allocation2 + $0x178] sm:$0xff] %vm264, 0.0
          %313 = vst.msk [vmem:[#allocation2 + $0x180] sm:$0xff] %vm264, 0.0
          %314 = vst.msk [vmem:[#allocation2 + $0x188] sm:$0xff] %vm264, 0.0
          %315 = vst.msk [vmem:[#allocation2 + $0x190] sm:$0xff] %vm264, 0.0
          %316 = vst.msk [vmem:[#allocation2 + $0x198] sm:$0xff] %vm264, 0.0
          %317 = vst.msk [vmem:[#allocation2 + $0x1a0] sm:$0xff] %vm264, 0.0
          %318 = vst.msk [vmem:[#allocation2 + $0x1a8] sm:$0xff] %vm264, 0.0
          %319 = vst.msk [vmem:[#allocation2 + $0x1b0] sm:$0xff] %vm264, 0.0
          %320 = vst.msk [vmem:[#allocation2 + $0x1b8] sm:$0xff] %vm264, 0.0
          %321 = vst.msk [vmem:[#allocation2 + $0x1c0] sm:$0xff] %vm264, 0.0
          %322 = vst.msk [vmem:[#allocation2 + $0x1c8] sm:$0xff] %vm264, 0.0
          %323 = vst.msk [vmem:[#allocation2 + $0x1d0] sm:$0xff] %vm264, 0.0
          %324 = vst.msk [vmem:[#allocation2 + $0x1d8] sm:$0xff] %vm264, 0.0
          %325 = vst.msk [vmem:[#allocation2 + $0x1e0] sm:$0xff] %vm264, 0.0
          %326 = vst.msk [vmem:[#allocation2 + $0x1e8] sm:$0xff] %vm264, 0.0
          %327 = vst.msk [vmem:[#allocation2 + $0x1f0] sm:$0xff] %vm264, 0.0
          %328 = vst.msk [vmem:[#allocation2 + $0x1f8] sm:$0xff] %vm264, 0.0
          %329 = vst.msk [vmem:[#allocation2 + $0x200] sm:$0xff] %vm264, 0.0
          %330 = vst.msk [vmem:[#allocation2 + $0x208] sm:$0xff] %vm264, 0.0
          %331 = vst.msk [vmem:[#allocation2 + $0x210] sm:$0xff] %vm264, 0.0
          %332 = vst.msk [vmem:[#allocation2 + $0x218] sm:$0xff] %vm264, 0.0
          %333 = vst.msk [vmem:[#allocation2 + $0x220] sm:$0xff] %vm264, 0.0
          %334 = vst.msk [vmem:[#allocation2 + $0x228] sm:$0xff] %vm264, 0.0
          %335 = vst.msk [vmem:[#allocation2 + $0x230] sm:$0xff] %vm264, 0.0
          %336 = vst.msk [vmem:[#allocation2 + $0x238] sm:$0xff] %vm264, 0.0
          %337 = vst.msk [vmem:[#allocation2 + $0x240] sm:$0xff] %vm264, 0.0
          %338 = vst.msk [vmem:[#allocation2 + $0x248] sm:$0xff] %vm264, 0.0
          %339 = vst.msk [vmem:[#allocation2 + $0x250] sm:$0xff] %vm264, 0.0
          %340 = vst.msk [vmem:[#allocation2 + $0x258] sm:$0xff] %vm264, 0.0
          %341 = vst.msk [vmem:[#allocation2 + $0x260] sm:$0xff] %vm264, 0.0
          %342 = vst.msk [vmem:[#allocation2 + $0x268] sm:$0xff] %vm264, 0.0
          %343 = vst.msk [vmem:[#allocation2 + $0x270] sm:$0xff] %vm264, 0.0
          %344 = vst.msk [vmem:[#allocation2 + $0x278] sm:$0xff] %vm264, 0.0
          %345 = vst.msk [vmem:[#allocation2 + $0x280] sm:$0xff] %vm264, 0.0
          %346 = vst.msk [vmem:[#allocation2 + $0x288] sm:$0xff] %vm264, 0.0
          %347 = vst.msk [vmem:[#allocation2 + $0x290] sm:$0xff] %vm264, 0.0
          %348 = vst.msk [vmem:[#allocation2 + $0x298] sm:$0xff] %vm264, 0.0
          %349 = vst.msk [vmem:[#allocation2 + $0x2a0] sm:$0xff] %vm264, 0.0
          %350 = vst.msk [vmem:[#allocation2 + $0x2a8] sm:$0xff] %vm264, 0.0
          %351 = vst.msk [vmem:[#allocation2 + $0x2b0] sm:$0xff] %vm264, 0.0
          %352 = vst.msk [vmem:[#allocation2 + $0x2b8] sm:$0xff] %vm264, 0.0
          %353 = vst.msk [vmem:[#allocation2 + $0x2c0] sm:$0xff] %vm264, 0.0
          %354 = vst.msk [vmem:[#allocation2 + $0x2c8] sm:$0xff] %vm264, 0.0
          %355 = vst.msk [vmem:[#allocation2 + $0x2d0] sm:$0xff] %vm264, 0.0
          %356 = vst.msk [vmem:[#allocation2 + $0x2d8] sm:$0xff] %vm264, 0.0
          %357 = vst.msk [vmem:[#allocation2 + $0x2e0] sm:$0xff] %vm264, 0.0
          %358 = vst.msk [vmem:[#allocation2 + $0x2e8] sm:$0xff] %vm264, 0.0
          %359 = vst.msk [vmem:[#allocation2 + $0x2f0] sm:$0xff] %vm264, 0.0
          %360 = vst.msk [vmem:[#allocation2 + $0x2f8] sm:$0xff] %vm264, 0.0
          %361 = vst.msk [vmem:[#allocation2 + $0x300] sm:$0xff] %vm264, 0.0
          %362 = vst.msk [vmem:[#allocation2 + $0x308] sm:$0xff] %vm264, 0.0
          %363 = vst.msk [vmem:[#allocation2 + $0x310] sm:$0xff] %vm264, 0.0
          %364 = vst.msk [vmem:[#allocation2 + $0x318] sm:$0xff] %vm264, 0.0
          %365 = vst.msk [vmem:[#allocation2 + $0x320] sm:$0xff] %vm264, 0.0
          %366 = vst.msk [vmem:[#allocation2 + $0x328] sm:$0xff] %vm264, 0.0
          %367 = vst.msk [vmem:[#allocation2 + $0x330] sm:$0xff] %vm264, 0.0
          %368 = vst.msk [vmem:[#allocation2 + $0x338] sm:$0xff] %vm264, 0.0
          %369 = vst.msk [vmem:[#allocation2 + $0x340] sm:$0xff] %vm264, 0.0
          %370 = vst.msk [vmem:[#allocation2 + $0x348] sm:$0xff] %vm264, 0.0
          %371 = vst.msk [vmem:[#allocation2 + $0x350] sm:$0xff] %vm264, 0.0
          %372 = vst.msk [vmem:[#allocation2 + $0x358] sm:$0xff] %vm264, 0.0
          %373 = vst.msk [vmem:[#allocation2 + $0x360] sm:$0xff] %vm264, 0.0
          %374 = vst.msk [vmem:[#allocation2 + $0x368] sm:$0xff] %vm264, 0.0
          %375 = vst.msk [vmem:[#allocation2 + $0x370] sm:$0xff] %vm264, 0.0
          %376 = vst.msk [vmem:[#allocation2 + $0x378] sm:$0xff] %vm264, 0.0
          %377 = vst.msk [vmem:[#allocation2 + $0x380] sm:$0xff] %vm264, 0.0
          %378 = vst.msk [vmem:[#allocation2 + $0x388] sm:$0xff] %vm264, 0.0
          %379 = vst.msk [vmem:[#allocation2 + $0x390] sm:$0xff] %vm264, 0.0
          %380 = vst.msk [vmem:[#allocation2 + $0x398] sm:$0xff] %vm264, 0.0
          %381 = vst.msk [vmem:[#allocation2 + $0x3a0] sm:$0xff] %vm264, 0.0
          %382 = vst.msk [vmem:[#allocation2 + $0x3a8] sm:$0xff] %vm264, 0.0
          %383 = vst.msk [vmem:[#allocation2 + $0x3b0] sm:$0xff] %vm264, 0.0
          %384 = vst.msk [vmem:[#allocation2 + $0x3b8] sm:$0xff] %vm264, 0.0
          %385 = vst.msk [vmem:[#allocation2 + $0x3c0] sm:$0xff] %vm264, 0.0
          %386 = vst.msk [vmem:[#allocation2 + $0x3c8] sm:$0xff] %vm264, 0.0
          %387 = vst.msk [vmem:[#allocation2 + $0x3d0] sm:$0xff] %vm264, 0.0
          %388 = vst.msk [vmem:[#allocation2 + $0x3d8] sm:$0xff] %vm264, 0.0
          %389 = vst.msk [vmem:[#allocation2 + $0x3e0] sm:$0xff] %vm264, 0.0
          %390 = vst.msk [vmem:[#allocation2 + $0x3e8] sm:$0xff] %vm264, 0.0
          %391 = vst.msk [vmem:[#allocation2 + $0x3f0] sm:$0xff] %vm264, 0.0
          %392 = vst.msk [vmem:[#allocation2 + $0x3f8] sm:$0xff] %vm264, 0.0
        $region44: #{model1_vgg19_forward.2} parent=31 // pred_fallthru
          _
        %v393 = vld [vmem:[#allocation2] sm:$0xff]
        %v394 = vld [vmem:[#allocation2 + $0x8] sm:$0xff]
        %v395 = vld [vmem:[#allocation2 + $0x10] sm:$0xff]
        %v396 = vld [vmem:[#allocation2 + $0x18] sm:$0xff]
        %v397 = vld [vmem:[#allocation2 + $0x20] sm:$0xff]
        %v398 = vld [vmem:[#allocation2 + $0x28] sm:$0xff]
        %v399 = vld [vmem:[#allocation2 + $0x30] sm:$0xff]
        %v400 = vld [vmem:[#allocation2 + $0x38] sm:$0xff]
        %v401 = vld [vmem:[#allocation2 + $0x40] sm:$0xff]
        %v402 = vld [vmem:[#allocation2 + $0x48] sm:$0xff]
        %v403 = vld [vmem:[#allocation2 + $0x50] sm:$0xff]
        %v404 = vld [vmem:[#allocation2 + $0x58] sm:$0xff]
        %v405 = vld [vmem:[#allocation2 + $0x60] sm:$0xff]
        %v406 = vld [vmem:[#allocation2 + $0x68] sm:$0xff]
        %v407 = vld [vmem:[#allocation2 + $0x70] sm:$0xff]
        %v408 = vld [vmem:[#allocation2 + $0x78] sm:$0xff]
        %v409 = vld [vmem:[#allocation2 + $0x80] sm:$0xff]
        %v410 = vld [vmem:[#allocation2 + $0x88] sm:$0xff]
        %v411 = vld [vmem:[#allocation2 + $0x90] sm:$0xff]
        %v412 = vld [vmem:[#allocation2 + $0x98] sm:$0xff]
        %v413 = vld [vmem:[#allocation2 + $0xa0] sm:$0xff]
        %v414 = vld [vmem:[#allocation2 + $0xa8] sm:$0xff]
        %v415 = vld [vmem:[#allocation2 + $0xb0] sm:$0xff]
        %v416 = vld [vmem:[#allocation2 + $0xb8] sm:$0xff]
        %v417 = vld [vmem:[#allocation2 + $0xc0] sm:$0xff]
        %v418 = vld [vmem:[#allocation2 + $0xc8] sm:$0xff]
        %v419 = vld [vmem:[#allocation2 + $0xd0] sm:$0xff]
        %v420 = vld [vmem:[#allocation2 + $0xd8] sm:$0xff]
        %v421 = vld [vmem:[#allocation2 + $0xe0] sm:$0xff]
        %v422 = vld [vmem:[#allocation2 + $0xe8] sm:$0xff]
        %v423 = vld [vmem:[#allocation2 + $0xf0] sm:$0xff]
        %v424 = vld [vmem:[#allocation2 + $0xf8] sm:$0xff]
        %v425 = vld [vmem:[#allocation2 + $0x100] sm:$0xff]
        %v426 = vld [vmem:[#allocation2 + $0x108] sm:$0xff]
        %v427 = vld [vmem:[#allocation2 + $0x110] sm:$0xff]
        %v428 = vld [vmem:[#allocation2 + $0x118] sm:$0xff]
        %v429 = vld [vmem:[#allocation2 + $0x120] sm:$0xff]
        %v430 = vld [vmem:[#allocation2 + $0x128] sm:$0xff]
        %v431 = vld [vmem:[#allocation2 + $0x130] sm:$0xff]
        %v432 = vld [vmem:[#allocation2 + $0x138] sm:$0xff]
        %v433 = vld [vmem:[#allocation2 + $0x140] sm:$0xff]
        %v434 = vld [vmem:[#allocation2 + $0x148] sm:$0xff]
        %v435 = vld [vmem:[#allocation2 + $0x150] sm:$0xff]
        %v436 = vld [vmem:[#allocation2 + $0x158] sm:$0xff]
        %v437 = vld [vmem:[#allocation2 + $0x160] sm:$0xff]
        %v438 = vld [vmem:[#allocation2 + $0x168] sm:$0xff]
        %v439 = vld [vmem:[#allocation2 + $0x170] sm:$0xff]
        %v440 = vld [vmem:[#allocation2 + $0x178] sm:$0xff]
        %v441 = vld [vmem:[#allocation2 + $0x180] sm:$0xff]
        %v442 = vld [vmem:[#allocation2 + $0x188] sm:$0xff]
        %v443 = vld [vmem:[#allocation2 + $0x190] sm:$0xff]
        %v444 = vld [vmem:[#allocation2 + $0x198] sm:$0xff]
        %v445 = vld [vmem:[#allocation2 + $0x1a0] sm:$0xff]
        %v446 = vld [vmem:[#allocation2 + $0x1a8] sm:$0xff]
        %v447 = vld [vmem:[#allocation2 + $0x1b0] sm:$0xff]
        %v448 = vld [vmem:[#allocation2 + $0x1b8] sm:$0xff]
        %v449 = vld [vmem:[#allocation2 + $0x1c0] sm:$0xff]
        %v450 = vld [vmem:[#allocation2 + $0x1c8] sm:$0xff]
        %v451 = vld [vmem:[#allocation2 + $0x1d0] sm:$0xff]
        %v452 = vld [vmem:[#allocation2 + $0x1d8] sm:$0xff]
        %v453 = vld [vmem:[#allocation2 + $0x1e0] sm:$0xff]
        %v454 = vld [vmem:[#allocation2 + $0x1e8] sm:$0xff]
        %v455 = vld [vmem:[#allocation2 + $0x1f0] sm:$0xff]
        %v456 = vld [vmem:[#allocation2 + $0x1f8] sm:$0xff]
        %v457 = vld [vmem:[#allocation2 + $0x200] sm:$0xff]
        %v458 = vld [vmem:[#allocation2 + $0x208] sm:$0xff]
        %v459 = vld [vmem:[#allocation2 + $0x210] sm:$0xff]
        %v460 = vld [vmem:[#allocation2 + $0x218] sm:$0xff]
        %v461 = vld [vmem:[#allocation2 + $0x220] sm:$0xff]
        %v462 = vld [vmem:[#allocation2 + $0x228] sm:$0xff]
        %v463 = vld [vmem:[#allocation2 + $0x230] sm:$0xff]
        %v464 = vld [vmem:[#allocation2 + $0x238] sm:$0xff]
        %v465 = vld [vmem:[#allocation2 + $0x240] sm:$0xff]
        %v466 = vld [vmem:[#allocation2 + $0x248] sm:$0xff]
        %v467 = vld [vmem:[#allocation2 + $0x250] sm:$0xff]
        %v468 = vld [vmem:[#allocation2 + $0x258] sm:$0xff]
        %v469 = vld [vmem:[#allocation2 + $0x260] sm:$0xff]
        %v470 = vld [vmem:[#allocation2 + $0x268] sm:$0xff]
        %v471 = vld [vmem:[#allocation2 + $0x270] sm:$0xff]
        %v472 = vld [vmem:[#allocation2 + $0x278] sm:$0xff]
        %v473 = vld [vmem:[#allocation2 + $0x280] sm:$0xff]
        %v474 = vld [vmem:[#allocation2 + $0x288] sm:$0xff]
        %v475 = vld [vmem:[#allocation2 + $0x290] sm:$0xff]
        %v476 = vld [vmem:[#allocation2 + $0x298] sm:$0xff]
        %v477 = vld [vmem:[#allocation2 + $0x2a0] sm:$0xff]
        %v478 = vld [vmem:[#allocation2 + $0x2a8] sm:$0xff]
        %v479 = vld [vmem:[#allocation2 + $0x2b0] sm:$0xff]
        %v480 = vld [vmem:[#allocation2 + $0x2b8] sm:$0xff]
        %v481 = vld [vmem:[#allocation2 + $0x2c0] sm:$0xff]
        %v482 = vld [vmem:[#allocation2 + $0x2c8] sm:$0xff]
        %v483 = vld [vmem:[#allocation2 + $0x2d0] sm:$0xff]
        %v484 = vld [vmem:[#allocation2 + $0x2d8] sm:$0xff]
        %v485 = vld [vmem:[#allocation2 + $0x2e0] sm:$0xff]
        %v486 = vld [vmem:[#allocation2 + $0x2e8] sm:$0xff]
        %v487 = vld [vmem:[#allocation2 + $0x2f0] sm:$0xff]
        %v488 = vld [vmem:[#allocation2 + $0x2f8] sm:$0xff]
        %v489 = vld [vmem:[#allocation2 + $0x300] sm:$0xff]
        %v490 = vld [vmem:[#allocation2 + $0x308] sm:$0xff]
        %v491 = vld [vmem:[#allocation2 + $0x310] sm:$0xff]
        %v492 = vld [vmem:[#allocation2 + $0x318] sm:$0xff]
        %v493 = vld [vmem:[#allocation2 + $0x320] sm:$0xff]
        %v494 = vld [vmem:[#allocation2 + $0x328] sm:$0xff]
        %v495 = vld [vmem:[#allocation2 + $0x330] sm:$0xff]
        %v496 = vld [vmem:[#allocation2 + $0x338] sm:$0xff]
        %v497 = vld [vmem:[#allocation2 + $0x340] sm:$0xff]
        %v498 = vld [vmem:[#allocation2 + $0x348] sm:$0xff]
        %v499 = vld [vmem:[#allocation2 + $0x350] sm:$0xff]
        %v500 = vld [vmem:[#allocation2 + $0x358] sm:$0xff]
        %v501 = vld [vmem:[#allocation2 + $0x360] sm:$0xff]
        %v502 = vld [vmem:[#allocation2 + $0x368] sm:$0xff]
        %v503 = vld [vmem:[#allocation2 + $0x370] sm:$0xff]
        %v504 = vld [vmem:[#allocation2 + $0x378] sm:$0xff]
        %v505 = vld [vmem:[#allocation2 + $0x380] sm:$0xff]
        %v506 = vld [vmem:[#allocation2 + $0x388] sm:$0xff]
        %v507 = vld [vmem:[#allocation2 + $0x390] sm:$0xff]
        %v508 = vld [vmem:[#allocation2 + $0x398] sm:$0xff]
        %v509 = vld [vmem:[#allocation2 + $0x3a0] sm:$0xff]
        %v510 = vld [vmem:[#allocation2 + $0x3a8] sm:$0xff]
        %v511 = vld [vmem:[#allocation2 + $0x3b0] sm:$0xff]
        %v512 = vld [vmem:[#allocation2 + $0x3b8] sm:$0xff]
        %v513 = vld [vmem:[#allocation2 + $0x3c0] sm:$0xff]
        %v514 = vld [vmem:[#allocation2 + $0x3c8] sm:$0xff]
        %v515 = vld [vmem:[#allocation2 + $0x3d0] sm:$0xff]
        %v516 = vld [vmem:[#allocation2 + $0x3d8] sm:$0xff]
        %v517 = vld [vmem:[#allocation2 + $0x3e0] sm:$0xff]
        %v518 = vld [vmem:[#allocation2 + $0x3e8] sm:$0xff]
        %v519 = vld [vmem:[#allocation2 + $0x3f0] sm:$0xff]
        %v520 = vld [vmem:[#allocation2 + $0x3f8] sm:$0xff]
        %v521 = vld [vmem:[%s247] sm:$0xf]
        %v522 = vld [vmem:[%s247 + $0x4] sm:$0xf]
        %v523 = vld [vmem:[%s247 + $0x8] sm:$0xf]
        %v524 = vld [vmem:[%s247 + $0xc] sm:$0xf]
        %v525 = vld [vmem:[%s247 + $0x10] sm:$0xf]
        %v526 = vld [vmem:[%s247 + $0x14] sm:$0xf]
        %v527 = vld [vmem:[%s247 + $0x18] sm:$0xf]
        %v528 = vld [vmem:[%s247 + $0x1c] sm:$0xf]
        %v529 = vld [vmem:[%s247 + $0x20] sm:$0xf]
        %v530 = vld [vmem:[%s247 + $0x24] sm:$0xf]
        %v531 = vld [vmem:[%s247 + $0x28] sm:$0xf]
        %v532 = vld [vmem:[%s247 + $0x2c] sm:$0xf]
        %v533 = vld [vmem:[%s247 + $0x30] sm:$0xf]
        %v534 = vld [vmem:[%s247 + $0x34] sm:$0xf]
        %v535 = vld [vmem:[%s247 + $0x38] sm:$0xf]
        %v536 = vld [vmem:[%s247 + $0x3c] sm:$0xf]
        %v537 = vld [vmem:[%s247 + $0x40] sm:$0xf]
        %v538 = vld [vmem:[%s247 + $0x44] sm:$0xf]
        %v539 = vld [vmem:[%s247 + $0x48] sm:$0xf]
        %v540 = vld [vmem:[%s247 + $0x4c] sm:$0xf]
        %v541 = vld [vmem:[%s247 + $0x50] sm:$0xf]
        %v542 = vld [vmem:[%s247 + $0x54] sm:$0xf]
        %v543 = vld [vmem:[%s247 + $0x58] sm:$0xf]
        %v544 = vld [vmem:[%s247 + $0x5c] sm:$0xf]
        %v545 = vld [vmem:[%s247 + $0x60] sm:$0xf]
        %v546 = vld [vmem:[%s247 + $0x64] sm:$0xf]
        %v547 = vld [vmem:[%s247 + $0x68] sm:$0xf]
        %v548 = vld [vmem:[%s247 + $0x6c] sm:$0xf]
        %v549 = vld [vmem:[%s247 + $0x70] sm:$0xf]
        %v550 = vld [vmem:[%s247 + $0x74] sm:$0xf]
        %v551 = vld [vmem:[%s247 + $0x78] sm:$0xf]
        %v552 = vld [vmem:[%s247 + $0x7c] sm:$0xf]
        %v553 = vld [vmem:[%s247 + $0x80] sm:$0xf]
        %v554 = vld [vmem:[%s247 + $0x84] sm:$0xf]
        %v555 = vld [vmem:[%s247 + $0x88] sm:$0xf]
        %v556 = vld [vmem:[%s247 + $0x8c] sm:$0xf]
        %v557 = vld [vmem:[%s247 + $0x90] sm:$0xf]
        %v558 = vld [vmem:[%s247 + $0x94] sm:$0xf]
        %v559 = vld [vmem:[%s247 + $0x98] sm:$0xf]
        %v560 = vld [vmem:[%s247 + $0x9c] sm:$0xf]
        %v561 = vld [vmem:[%s247 + $0xa0] sm:$0xf]
        %v562 = vld [vmem:[%s247 + $0xa4] sm:$0xf]
        %v563 = vld [vmem:[%s247 + $0xa8] sm:$0xf]
        %v564 = vld [vmem:[%s247 + $0xac] sm:$0xf]
        %v565 = vld [vmem:[%s247 + $0xb0] sm:$0xf]
        %v566 = vld [vmem:[%s247 + $0xb4] sm:$0xf]
        %v567 = vld [vmem:[%s247 + $0xb8] sm:$0xf]
        %v568 = vld [vmem:[%s247 + $0xbc] sm:$0xf]
        %v569 = vld [vmem:[%s247 + $0xc0] sm:$0xf]
        %v570 = vld [vmem:[%s247 + $0xc4] sm:$0xf]
        %v571 = vld [vmem:[%s247 + $0xc8] sm:$0xf]
        %v572 = vld [vmem:[%s247 + $0xcc] sm:$0xf]
        %v573 = vld [vmem:[%s247 + $0xd0] sm:$0xf]
        %v574 = vld [vmem:[%s247 + $0xd4] sm:$0xf]
        %v575 = vld [vmem:[%s247 + $0xd8] sm:$0xf]
        %v576 = vld [vmem:[%s247 + $0xdc] sm:$0xf]
        %v577 = vld [vmem:[%s247 + $0xe0] sm:$0xf]
        %v578 = vld [vmem:[%s247 + $0xe4] sm:$0xf]
        %v579 = vld [vmem:[%s247 + $0xe8] sm:$0xf]
        %v580 = vld [vmem:[%s247 + $0xec] sm:$0xf]
        %v581 = vld [vmem:[%s247 + $0xf0] sm:$0xf]
        %v582 = vld [vmem:[%s247 + $0xf4] sm:$0xf]
        %v583 = vld [vmem:[%s247 + $0xf8] sm:$0xf]
        %v584 = vld [vmem:[%s247 + $0xfc] sm:$0xf]
        %v585 = vld [vmem:[%s247 + $0x100] sm:$0xf]
        %v586 = vld [vmem:[%s247 + $0x104] sm:$0xf]
        %v587 = vld [vmem:[%s247 + $0x108] sm:$0xf]
        %v588 = vld [vmem:[%s247 + $0x10c] sm:$0xf]
        %v589 = vld [vmem:[%s247 + $0x110] sm:$0xf]
        %v590 = vld [vmem:[%s247 + $0x114] sm:$0xf]
        %v591 = vld [vmem:[%s247 + $0x118] sm:$0xf]
        %v592 = vld [vmem:[%s247 + $0x11c] sm:$0xf]
        %v593 = vld [vmem:[%s247 + $0x120] sm:$0xf]
        %v594 = vld [vmem:[%s247 + $0x124] sm:$0xf]
        %v595 = vld [vmem:[%s247 + $0x128] sm:$0xf]
        %v596 = vld [vmem:[%s247 + $0x12c] sm:$0xf]
        %v597 = vld [vmem:[%s247 + $0x130] sm:$0xf]
        %v598 = vld [vmem:[%s247 + $0x134] sm:$0xf]
        %v599 = vld [vmem:[%s247 + $0x138] sm:$0xf]
        %v600 = vld [vmem:[%s247 + $0x13c] sm:$0xf]
        %v601 = vld [vmem:[%s247 + $0x140] sm:$0xf]
        %v602 = vld [vmem:[%s247 + $0x144] sm:$0xf]
        %v603 = vld [vmem:[%s247 + $0x148] sm:$0xf]
        %v604 = vld [vmem:[%s247 + $0x14c] sm:$0xf]
        %v605 = vld [vmem:[%s247 + $0x150] sm:$0xf]
        %v606 = vld [vmem:[%s247 + $0x154] sm:$0xf]
        %v607 = vld [vmem:[%s247 + $0x158] sm:$0xf]
        %v608 = vld [vmem:[%s247 + $0x15c] sm:$0xf]
        %v609 = vld [vmem:[%s247 + $0x160] sm:$0xf]
        %v610 = vld [vmem:[%s247 + $0x164] sm:$0xf]
        %v611 = vld [vmem:[%s247 + $0x168] sm:$0xf]
        %v612 = vld [vmem:[%s247 + $0x16c] sm:$0xf]
        %v613 = vld [vmem:[%s247 + $0x170] sm:$0xf]
        %v614 = vld [vmem:[%s247 + $0x174] sm:$0xf]
        %v615 = vld [vmem:[%s247 + $0x178] sm:$0xf]
        %v616 = vld [vmem:[%s247 + $0x17c] sm:$0xf]
        %v617 = vld [vmem:[%s247 + $0x180] sm:$0xf]
        %v618 = vld [vmem:[%s247 + $0x184] sm:$0xf]
        %v619 = vld [vmem:[%s247 + $0x188] sm:$0xf]
        %v620 = vld [vmem:[%s247 + $0x18c] sm:$0xf]
        %v621 = vld [vmem:[%s247 + $0x190] sm:$0xf]
        %v622 = vld [vmem:[%s247 + $0x194] sm:$0xf]
        %v623 = vld [vmem:[%s247 + $0x198] sm:$0xf]
        %v624 = vld [vmem:[%s247 + $0x19c] sm:$0xf]
        %v625 = vld [vmem:[%s247 + $0x1a0] sm:$0xf]
        %v626 = vld [vmem:[%s247 + $0x1a4] sm:$0xf]
        %v627 = vld [vmem:[%s247 + $0x1a8] sm:$0xf]
        %v628 = vld [vmem:[%s247 + $0x1ac] sm:$0xf]
        %v629 = vld [vmem:[%s247 + $0x1b0] sm:$0xf]
        %v630 = vld [vmem:[%s247 + $0x1b4] sm:$0xf]
        %v631 = vld [vmem:[%s247 + $0x1b8] sm:$0xf]
        %v632 = vld [vmem:[%s247 + $0x1bc] sm:$0xf]
        %v633 = vld [vmem:[%s247 + $0x1c0] sm:$0xf]
        %v634 = vld [vmem:[%s247 + $0x1c4] sm:$0xf]
        %v635 = vld [vmem:[%s247 + $0x1c8] sm:$0xf]
        %v636 = vld [vmem:[%s247 + $0x1cc] sm:$0xf]
        %v637 = vld [vmem:[%s247 + $0x1d0] sm:$0xf]
        %v638 = vld [vmem:[%s247 + $0x1d4] sm:$0xf]
        %v639 = vld [vmem:[%s247 + $0x1d8] sm:$0xf]
        %v640 = vld [vmem:[%s247 + $0x1dc] sm:$0xf]
        %v641 = vld [vmem:[%s247 + $0x1e0] sm:$0xf]
        %v642 = vld [vmem:[%s247 + $0x1e4] sm:$0xf]
        %v643 = vld [vmem:[%s247 + $0x1e8] sm:$0xf]
        %v644 = vld [vmem:[%s247 + $0x1ec] sm:$0xf]
        %v645 = vld [vmem:[%s247 + $0x1f0] sm:$0xf]
        %v646 = vld [vmem:[%s247 + $0x1f4] sm:$0xf]
        %v647 = vld [vmem:[%s247 + $0x1f8] sm:$0xf]
        %v648 = vld [vmem:[%s247 + $0x1fc] sm:$0xf]
        %v649 = vld [vmem:[#allocation3] sm:$0xf]
        %v650 = vld [vmem:[#allocation3 + $0x4] sm:$0xf]
        %v651 = vld [vmem:[#allocation3 + $0x8] sm:$0xf]
        %v652 = vld [vmem:[#allocation3 + $0xc] sm:$0x3]
        %v781 = vunpack.c.l.b16 %v521
        %v782 = vunpack.c.l.b16 %v522
        %v783 = vunpack.c.l.b16 %v523
        %v784 = vunpack.c.l.b16 %v524
        %v785 = vunpack.c.l.b16 %v525
        %v786 = vunpack.c.l.b16 %v526
        %v787 = vunpack.c.l.b16 %v527
        %v788 = vunpack.c.l.b16 %v528
        %v789 = vunpack.c.l.b16 %v529
        %v790 = vunpack.c.l.b16 %v530
        %v791 = vunpack.c.l.b16 %v531
        %v792 = vunpack.c.l.b16 %v532
        %v793 = vunpack.c.l.b16 %v533
        %v794 = vunpack.c.l.b16 %v534
        %v795 = vunpack.c.l.b16 %v535
        %v796 = vunpack.c.l.b16 %v536
        %v797 = vunpack.c.l.b16 %v537
        %v798 = vunpack.c.l.b16 %v538
        %v799 = vunpack.c.l.b16 %v539
        %v800 = vunpack.c.l.b16 %v540
        %v801 = vunpack.c.l.b16 %v541
        %v802 = vunpack.c.l.b16 %v542
        %v803 = vunpack.c.l.b16 %v543
        %v804 = vunpack.c.l.b16 %v544
        %v805 = vunpack.c.l.b16 %v545
        %v806 = vunpack.c.l.b16 %v546
        %v807 = vunpack.c.l.b16 %v547
        %v808 = vunpack.c.l.b16 %v548
        %v809 = vunpack.c.l.b16 %v549
        %v810 = vunpack.c.l.b16 %v550
        %v811 = vunpack.c.l.b16 %v551
        %v812 = vunpack.c.l.b16 %v552
        %v813 = vunpack.c.l.b16 %v553
        %v814 = vunpack.c.l.b16 %v554
        %v815 = vunpack.c.l.b16 %v555
        %v816 = vunpack.c.l.b16 %v556
        %v817 = vunpack.c.l.b16 %v557
        %v818 = vunpack.c.l.b16 %v558
        %v819 = vunpack.c.l.b16 %v559
        %v820 = vunpack.c.l.b16 %v560
        %v821 = vunpack.c.l.b16 %v561
        %v822 = vunpack.c.l.b16 %v562
        %v823 = vunpack.c.l.b16 %v563
        %v824 = vunpack.c.l.b16 %v564
        %v825 = vunpack.c.l.b16 %v565
        %v826 = vunpack.c.l.b16 %v566
        %v827 = vunpack.c.l.b16 %v567
        %v828 = vunpack.c.l.b16 %v568
        %v829 = vunpack.c.l.b16 %v569
        %v830 = vunpack.c.l.b16 %v570
        %v831 = vunpack.c.l.b16 %v571
        %v832 = vunpack.c.l.b16 %v572
        %v833 = vunpack.c.l.b16 %v573
        %v834 = vunpack.c.l.b16 %v574
        %v835 = vunpack.c.l.b16 %v575
        %v836 = vunpack.c.l.b16 %v576
        %v837 = vunpack.c.l.b16 %v577
        %v838 = vunpack.c.l.b16 %v578
        %v839 = vunpack.c.l.b16 %v579
        %v840 = vunpack.c.l.b16 %v580
        %v841 = vunpack.c.l.b16 %v581
        %v842 = vunpack.c.l.b16 %v582
        %v843 = vunpack.c.l.b16 %v583
        %v844 = vunpack.c.l.b16 %v584
        %v845 = vunpack.c.l.b16 %v585
        %v846 = vunpack.c.l.b16 %v586
        %v847 = vunpack.c.l.b16 %v587
        %v848 = vunpack.c.l.b16 %v588
        %v849 = vunpack.c.l.b16 %v589
        %v850 = vunpack.c.l.b16 %v590
        %v851 = vunpack.c.l.b16 %v591
        %v852 = vunpack.c.l.b16 %v592
        %v853 = vunpack.c.l.b16 %v593
        %v854 = vunpack.c.l.b16 %v594
        %v855 = vunpack.c.l.b16 %v595
        %v856 = vunpack.c.l.b16 %v596
        %v857 = vunpack.c.l.b16 %v597
        %v858 = vunpack.c.l.b16 %v598
        %v859 = vunpack.c.l.b16 %v599
        %v860 = vunpack.c.l.b16 %v600
        %v861 = vunpack.c.l.b16 %v601
        %v862 = vunpack.c.l.b16 %v602
        %v863 = vunpack.c.l.b16 %v603
        %v864 = vunpack.c.l.b16 %v604
        %v865 = vunpack.c.l.b16 %v605
        %v866 = vunpack.c.l.b16 %v606
        %v867 = vunpack.c.l.b16 %v607
        %v868 = vunpack.c.l.b16 %v608
        %v869 = vunpack.c.l.b16 %v609
        %v870 = vunpack.c.l.b16 %v610
        %v871 = vunpack.c.l.b16 %v611
        %v872 = vunpack.c.l.b16 %v612
        %v873 = vunpack.c.l.b16 %v613
        %v874 = vunpack.c.l.b16 %v614
        %v875 = vunpack.c.l.b16 %v615
        %v876 = vunpack.c.l.b16 %v616
        %v877 = vunpack.c.l.b16 %v617
        %v878 = vunpack.c.l.b16 %v618
        %v879 = vunpack.c.l.b16 %v619
        %v880 = vunpack.c.l.b16 %v620
        %v881 = vunpack.c.l.b16 %v621
        %v882 = vunpack.c.l.b16 %v622
        %v883 = vunpack.c.l.b16 %v623
        %v884 = vunpack.c.l.b16 %v624
        %v885 = vunpack.c.l.b16 %v625
        %v886 = vunpack.c.l.b16 %v626
        %v887 = vunpack.c.l.b16 %v627
        %v888 = vunpack.c.l.b16 %v628
        %v889 = vunpack.c.l.b16 %v629
        %v890 = vunpack.c.l.b16 %v630
        %v891 = vunpack.c.l.b16 %v631
        %v892 = vunpack.c.l.b16 %v632
        %v893 = vunpack.c.l.b16 %v633
        %v894 = vunpack.c.l.b16 %v634
        %v895 = vunpack.c.l.b16 %v635
        %v896 = vunpack.c.l.b16 %v636
        %v897 = vunpack.c.l.b16 %v637
        %v898 = vunpack.c.l.b16 %v638
        %v899 = vunpack.c.l.b16 %v639
        %v900 = vunpack.c.l.b16 %v640
        %v901 = vunpack.c.l.b16 %v641
        %v902 = vunpack.c.l.b16 %v642
        %v903 = vunpack.c.l.b16 %v643
        %v904 = vunpack.c.l.b16 %v644
        %v905 = vunpack.c.l.b16 %v645
        %v906 = vunpack.c.l.b16 %v646
        %v907 = vunpack.c.l.b16 %v647
        %v908 = vunpack.c.l.b16 %v648
        %v909 = vpack.c.b16 %v782, %v781
        %v910 = vpack.c.b16 %v784, %v783
        %v911 = vpack.c.b16 %v786, %v785
        %v912 = vpack.c.b16 %v788, %v787
        %v913 = vpack.c.b16 %v790, %v789
        %v914 = vpack.c.b16 %v792, %v791
        %v915 = vpack.c.b16 %v794, %v793
        %v916 = vpack.c.b16 %v796, %v795
        %v917 = vpack.c.b16 %v798, %v797
        %v918 = vpack.c.b16 %v800, %v799
        %v919 = vpack.c.b16 %v802, %v801
        %v920 = vpack.c.b16 %v804, %v803
        %v921 = vpack.c.b16 %v806, %v805
        %v922 = vpack.c.b16 %v808, %v807
        %v923 = vpack.c.b16 %v810, %v809
        %v924 = vpack.c.b16 %v812, %v811
        %v925 = vpack.c.b16 %v814, %v813
        %v926 = vpack.c.b16 %v816, %v815
        %v927 = vpack.c.b16 %v818, %v817
        %v928 = vpack.c.b16 %v820, %v819
        %v929 = vpack.c.b16 %v822, %v821
        %v930 = vpack.c.b16 %v824, %v823
        %v931 = vpack.c.b16 %v826, %v825
        %v932 = vpack.c.b16 %v828, %v827
        %v933 = vpack.c.b16 %v830, %v829
        %v934 = vpack.c.b16 %v832, %v831
        %v935 = vpack.c.b16 %v834, %v833
        %v936 = vpack.c.b16 %v836, %v835
        %v937 = vpack.c.b16 %v838, %v837
        %v938 = vpack.c.b16 %v840, %v839
        %v939 = vpack.c.b16 %v842, %v841
        %v940 = vpack.c.b16 %v844, %v843
        %v941 = vpack.c.b16 %v846, %v845
        %v942 = vpack.c.b16 %v848, %v847
        %v943 = vpack.c.b16 %v850, %v849
        %v944 = vpack.c.b16 %v852, %v851
        %v945 = vpack.c.b16 %v854, %v853
        %v946 = vpack.c.b16 %v856, %v855
        %v947 = vpack.c.b16 %v858, %v857
        %v948 = vpack.c.b16 %v860, %v859
        %v949 = vpack.c.b16 %v862, %v861
        %v950 = vpack.c.b16 %v864, %v863
        %v951 = vpack.c.b16 %v866, %v865
        %v952 = vpack.c.b16 %v868, %v867
        %v953 = vpack.c.b16 %v870, %v869
        %v954 = vpack.c.b16 %v872, %v871
        %v955 = vpack.c.b16 %v874, %v873
        %v956 = vpack.c.b16 %v876, %v875
        %v957 = vpack.c.b16 %v878, %v877
        %v958 = vpack.c.b16 %v880, %v879
        %v959 = vpack.c.b16 %v882, %v881
        %v960 = vpack.c.b16 %v884, %v883
        %v961 = vpack.c.b16 %v886, %v885
        %v962 = vpack.c.b16 %v888, %v887
        %v963 = vpack.c.b16 %v890, %v889
        %v964 = vpack.c.b16 %v892, %v891
        %v965 = vpack.c.b16 %v894, %v893
        %v966 = vpack.c.b16 %v896, %v895
        %v967 = vpack.c.b16 %v898, %v897
        %v968 = vpack.c.b16 %v900, %v899
        %v969 = vpack.c.b16 %v902, %v901
        %v970 = vpack.c.b16 %v904, %v903
        %v971 = vpack.c.b16 %v906, %v905
        %v972 = vpack.c.b16 %v908, %v907
        %v977 = vunpack.c.l.b16 %v649
        %v978 = vunpack.c.l.b16 %v650
        %v979 = vunpack.c.l.b16 %v651
        %v980 = vunpack.c.l.b16 %v652
        %v981 = vpack.c.b16 %v978, %v977
        %v982 = vpack.c.b16 %v980, %v979
        %vm984 = vcmask 220160
        %v986 = vsel %vm984, %v909, 0
        %v989 = vsel %vm984, %v910, 0
        %v992 = vsel %vm984, %v911, 0
        %v995 = vsel %vm984, %v912, 0
        %v998 = vsel %vm984, %v913, 0
        %v1001 = vsel %vm984, %v914, 0
        %v1004 = vsel %vm984, %v915, 0
        %v1007 = vsel %vm984, %v916, 0
        %v1010 = vsel %vm984, %v917, 0
        %v1013 = vsel %vm984, %v918, 0
        %v1016 = vsel %vm984, %v919, 0
        %v1019 = vsel %vm984, %v920, 0
        %v1022 = vsel %vm984, %v921, 0
        %v1025 = vsel %vm984, %v922, 0
        %v1028 = vsel %vm984, %v923, 0
        %v1031 = vsel %vm984, %v924, 0
        %v1034 = vsel %vm984, %v925, 0
        %v1037 = vsel %vm984, %v926, 0
        %v1040 = vsel %vm984, %v927, 0
        %v1043 = vsel %vm984, %v928, 0
        %v1046 = vsel %vm984, %v929, 0
        %v1049 = vsel %vm984, %v930, 0
        %v1052 = vsel %vm984, %v931, 0
        %v1055 = vsel %vm984, %v932, 0
        %v1058 = vsel %vm984, %v933, 0
        %v1061 = vsel %vm984, %v934, 0
        %v1064 = vsel %vm984, %v935, 0
        %v1067 = vsel %vm984, %v936, 0
        %v1070 = vsel %vm984, %v937, 0
        %v1073 = vsel %vm984, %v938, 0
        %v1076 = vsel %vm984, %v939, 0
        %v1079 = vsel %vm984, %v940, 0
        %v1082 = vsel %vm984, %v941, 0
        %v1085 = vsel %vm984, %v942, 0
        %v1088 = vsel %vm984, %v943, 0
        %v1091 = vsel %vm984, %v944, 0
        %v1094 = vsel %vm984, %v945, 0
        %v1097 = vsel %vm984, %v946, 0
        %v1100 = vsel %vm984, %v947, 0
        %v1103 = vsel %vm984, %v948, 0
        %v1106 = vsel %vm984, %v949, 0
        %v1109 = vsel %vm984, %v950, 0
        %v1112 = vsel %vm984, %v951, 0
        %v1115 = vsel %vm984, %v952, 0
        %v1118 = vsel %vm984, %v953, 0
        %v1121 = vsel %vm984, %v954, 0
        %v1124 = vsel %vm984, %v955, 0
        %v1127 = vsel %vm984, %v956, 0
        %v1130 = vsel %vm984, %v957, 0
        %v1133 = vsel %vm984, %v958, 0
        %v1136 = vsel %vm984, %v959, 0
        %v1139 = vsel %vm984, %v960, 0
        %v1142 = vsel %vm984, %v961, 0
        %v1145 = vsel %vm984, %v962, 0
        %v1148 = vsel %vm984, %v963, 0
        %v1151 = vsel %vm984, %v964, 0
        %v1154 = vsel %vm984, %v965, 0
        %v1157 = vsel %vm984, %v966, 0
        %v1160 = vsel %vm984, %v967, 0
        %v1163 = vsel %vm984, %v968, 0
        %v1166 = vsel %vm984, %v969, 0
        %v1169 = vsel %vm984, %v970, 0
        %v1172 = vsel %vm984, %v971, 0
        %v1175 = vsel %vm984, %v972, 0
        %vm1177 = vcmask 1044480
        %vm1178 = vcmask 1045504
        %v1179 = vsel %vm1177, 4294967295, 65535
        %v1180 = vsel %vm1178, %v1179, 0
        %v1182 = vand.u32 %v982, %v1180
        %1184 = vmatprep.subr.bf16.mxu0 0
        %1185 = vmatpush1.bf16.msra.mxu0 0
        %1186 = vmatprep.subr.bf16.mxu0 0
        %1187 = vmatpush1.bf16.msra.mxu0 0
        %1188 = vmatprep.subr.bf16.mxu0 0
        %1189 = vmatpush1.bf16.msra.mxu0 0
        %1190 = vmatprep.subr.bf16.mxu0 0
        %1191 = vmatpush1.bf16.msra.mxu0 0
        %1192 = vmatprep.subr.bf16.mxu0 0
        %1193 = vmatpush1.bf16.msra.mxu0 0
        %1194 = vmatprep.subr.bf16.mxu0 0
        %1195 = vmatpush1.bf16.msra.mxu0 0
        %1196 = vmatprep.subr.bf16.mxu0 0
        %1197 = vmatpush1.bf16.msra.mxu0 %v1182
        %1198 = vmatprep.subr.bf16.mxu0 0
        %1199 = vmatpush1.bf16.msra.mxu0 %v981
        %1200 = vmatprep.subr.bf16.mxu0 0
        %1201 = vmatpush2.bf16.msra.mxu0 0
        %1202 = vmatprep.subr.bf16.mxu0 0
        %1203 = vmatpush2.bf16.msra.mxu0 0
        %1204 = vmatprep.subr.bf16.mxu0 0
        %1205 = vmatpush2.bf16.msra.mxu0 0
        %1206 = vmatprep.subr.bf16.mxu0 0
        %1207 = vmatpush2.bf16.msra.mxu0 0
        %1208 = vmatprep.subr.bf16.mxu0 0
        %1209 = vmatpush2.bf16.msra.mxu0 0
        %1210 = vmatprep.subr.bf16.mxu0 0
        %1211 = vmatpush2.bf16.msra.mxu0 0
        %1212 = vmatprep.subr.bf16.mxu0 0
        %1213 = vmatpush2.bf16.msra.mxu0 0
        %1214 = vmatprep.subr.bf16.mxu0 0
        %1215 = vmatpush2.bf16.msra.mxu0 0
        %1216 = vmatprep.mubr.bf16.mxu0 0
        %1217 = vmatmul.mubr.bf16.gmra.mxu0 %v986
        %v1218 = vpop.f32.mrf.mxu0
        %v1219 = vadd.f32 0.0, %v1218
        %v1220 = vpop.f32.mrf.mxu0
        %v1221 = vpop.f32.mrf.mxu0
        %v1222 = vadd.f32 0.0, %v1221
        %v1223 = vpop.f32.mrf.mxu0
        %1224 = vmatprep.mubr.bf16.mxu0 0
        %1225 = vmatmul.mubr.bf16.gmra.mxu0 %v989
        %v1226 = vpop.f32.mrf.mxu0
        %v1227 = vadd.f32 0.0, %v1226
        %v1228 = vpop.f32.mrf.mxu0
        %v1229 = vpop.f32.mrf.mxu0
        %v1230 = vadd.f32 0.0, %v1229
        %v1231 = vpop.f32.mrf.mxu0
        %1232 = vmatprep.mubr.bf16.mxu0 0
        %1233 = vmatmul.mubr.bf16.gmra.mxu0 %v992
        %v1234 = vpop.f32.mrf.mxu0
        %v1235 = vadd.f32 0.0, %v1234
        %v1236 = vpop.f32.mrf.mxu0
        %v1237 = vpop.f32.mrf.mxu0
        %v1238 = vadd.f32 0.0, %v1237
        %v1239 = vpop.f32.mrf.mxu0
        %1240 = vmatprep.mubr.bf16.mxu0 0
        %1241 = vmatmul.mubr.bf16.gmra.mxu0 %v995
        %v1242 = vpop.f32.mrf.mxu0
        %v1243 = vadd.f32 0.0, %v1242
        %v1244 = vpop.f32.mrf.mxu0
        %v1245 = vpop.f32.mrf.mxu0
        %v1246 = vadd.f32 0.0, %v1245
        %v1247 = vpop.f32.mrf.mxu0
        %1248 = vmatprep.mubr.bf16.mxu0 0
        %1249 = vmatmul.mubr.bf16.gmra.mxu0 %v998
        %v1250 = vpop.f32.mrf.mxu0
        %v1251 = vadd.f32 0.0, %v1250
        %v1252 = vpop.f32.mrf.mxu0
        %v1253 = vpop.f32.mrf.mxu0
        %v1254 = vadd.f32 0.0, %v1253
        %v1255 = vpop.f32.mrf.mxu0
        %1256 = vmatprep.mubr.bf16.mxu0 0
        %1257 = vmatmul.mubr.bf16.gmra.mxu0 %v1001
        %v1258 = vpop.f32.mrf.mxu0
        %v1259 = vadd.f32 0.0, %v1258
        %v1260 = vpop.f32.mrf.mxu0
        %v1261 = vpop.f32.mrf.mxu0
        %v1262 = vadd.f32 0.0, %v1261
        %v1263 = vpop.f32.mrf.mxu0
        %1264 = vmatprep.mubr.bf16.mxu0 0
        %1265 = vmatmul.mubr.bf16.gmra.mxu0 %v1004
        %v1266 = vpop.f32.mrf.mxu0
        %v1267 = vadd.f32 0.0, %v1266
        %v1268 = vpop.f32.mrf.mxu0
        %v1269 = vpop.f32.mrf.mxu0
        %v1270 = vadd.f32 0.0, %v1269
        %v1271 = vpop.f32.mrf.mxu0
        %1272 = vmatprep.mubr.bf16.mxu0 0
        %1273 = vmatmul.mubr.bf16.gmra.mxu0 %v1007
        %v1274 = vpop.f32.mrf.mxu0
        %v1275 = vadd.f32 0.0, %v1274
        %v1276 = vpop.f32.mrf.mxu0
        %v1277 = vpop.f32.mrf.mxu0
        %v1278 = vadd.f32 0.0, %v1277
        %v1279 = vpop.f32.mrf.mxu0
        %1280 = vmatprep.mubr.bf16.mxu0 0
        %1281 = vmatmul.mubr.bf16.gmra.mxu0 %v1010
        %v1282 = vpop.f32.mrf.mxu0
        %v1283 = vadd.f32 0.0, %v1282
        %v1284 = vpop.f32.mrf.mxu0
        %v1285 = vpop.f32.mrf.mxu0
        %v1286 = vadd.f32 0.0, %v1285
        %v1287 = vpop.f32.mrf.mxu0
        %1288 = vmatprep.mubr.bf16.mxu0 0
        %1289 = vmatmul.mubr.bf16.gmra.mxu0 %v1013
        %v1290 = vpop.f32.mrf.mxu0
        %v1291 = vadd.f32 0.0, %v1290
        %v1292 = vpop.f32.mrf.mxu0
        %v1293 = vpop.f32.mrf.mxu0
        %v1294 = vadd.f32 0.0, %v1293
        %v1295 = vpop.f32.mrf.mxu0
        %1296 = vmatprep.mubr.bf16.mxu0 0
        %1297 = vmatmul.mubr.bf16.gmra.mxu0 %v1016
        %v1298 = vpop.f32.mrf.mxu0
        %v1299 = vadd.f32 0.0, %v1298
        %v1300 = vpop.f32.mrf.mxu0
        %v1301 = vpop.f32.mrf.mxu0
        %v1302 = vadd.f32 0.0, %v1301
        %v1303 = vpop.f32.mrf.mxu0
        %1304 = vmatprep.mubr.bf16.mxu0 0
        %1305 = vmatmul.mubr.bf16.gmra.mxu0 %v1019
        %v1306 = vpop.f32.mrf.mxu0
        %v1307 = vadd.f32 0.0, %v1306
        %v1308 = vpop.f32.mrf.mxu0
        %v1309 = vpop.f32.mrf.mxu0
        %v1310 = vadd.f32 0.0, %v1309
        %v1311 = vpop.f32.mrf.mxu0
        %1312 = vmatprep.mubr.bf16.mxu0 0
        %1313 = vmatmul.mubr.bf16.gmra.mxu0 %v1022
        %v1314 = vpop.f32.mrf.mxu0
        %v1315 = vadd.f32 0.0, %v1314
        %v1316 = vpop.f32.mrf.mxu0
        %v1317 = vpop.f32.mrf.mxu0
        %v1318 = vadd.f32 0.0, %v1317
        %v1319 = vpop.f32.mrf.mxu0
        %1320 = vmatprep.mubr.bf16.mxu0 0
        %1321 = vmatmul.mubr.bf16.gmra.mxu0 %v1025
        %v1322 = vpop.f32.mrf.mxu0
        %v1323 = vadd.f32 0.0, %v1322
        %v1324 = vpop.f32.mrf.mxu0
        %v1325 = vpop.f32.mrf.mxu0
        %v1326 = vadd.f32 0.0, %v1325
        %v1327 = vpop.f32.mrf.mxu0
        %1328 = vmatprep.mubr.bf16.mxu0 0
        %1329 = vmatmul.mubr.bf16.gmra.mxu0 %v1028
        %v1330 = vpop.f32.mrf.mxu0
        %v1331 = vadd.f32 0.0, %v1330
        %v1332 = vpop.f32.mrf.mxu0
        %v1333 = vpop.f32.mrf.mxu0
        %v1334 = vadd.f32 0.0, %v1333
        %v1335 = vpop.f32.mrf.mxu0
        %1336 = vmatprep.mubr.bf16.mxu0 0
        %1337 = vmatmul.mubr.bf16.gmra.mxu0 %v1031
        %v1338 = vpop.f32.mrf.mxu0
        %v1339 = vadd.f32 0.0, %v1338
        %v1340 = vpop.f32.mrf.mxu0
        %v1341 = vpop.f32.mrf.mxu0
        %v1342 = vadd.f32 0.0, %v1341
        %v1343 = vpop.f32.mrf.mxu0
        %1344 = vmatprep.mubr.bf16.mxu0 0
        %1345 = vmatmul.mubr.bf16.gmra.mxu0 %v1034
        %v1346 = vpop.f32.mrf.mxu0
        %v1347 = vadd.f32 0.0, %v1346
        %v1348 = vpop.f32.mrf.mxu0
        %v1349 = vpop.f32.mrf.mxu0
        %v1350 = vadd.f32 0.0, %v1349
        %v1351 = vpop.f32.mrf.mxu0
        %1352 = vmatprep.mubr.bf16.mxu0 0
        %1353 = vmatmul.mubr.bf16.gmra.mxu0 %v1037
        %v1354 = vpop.f32.mrf.mxu0
        %v1355 = vadd.f32 0.0, %v1354
        %v1356 = vpop.f32.mrf.mxu0
        %v1357 = vpop.f32.mrf.mxu0
        %v1358 = vadd.f32 0.0, %v1357
        %v1359 = vpop.f32.mrf.mxu0
        %1360 = vmatprep.mubr.bf16.mxu0 0
        %1361 = vmatmul.mubr.bf16.gmra.mxu0 %v1040
        %v1362 = vpop.f32.mrf.mxu0
        %v1363 = vadd.f32 0.0, %v1362
        %v1364 = vpop.f32.mrf.mxu0
        %v1365 = vpop.f32.mrf.mxu0
        %v1366 = vadd.f32 0.0, %v1365
        %v1367 = vpop.f32.mrf.mxu0
        %1368 = vmatprep.mubr.bf16.mxu0 0
        %1369 = vmatmul.mubr.bf16.gmra.mxu0 %v1043
        %v1370 = vpop.f32.mrf.mxu0
        %v1371 = vadd.f32 0.0, %v1370
        %v1372 = vpop.f32.mrf.mxu0
        %v1373 = vpop.f32.mrf.mxu0
        %v1374 = vadd.f32 0.0, %v1373
        %v1375 = vpop.f32.mrf.mxu0
        %1376 = vmatprep.mubr.bf16.mxu0 0
        %1377 = vmatmul.mubr.bf16.gmra.mxu0 %v1046
        %v1378 = vpop.f32.mrf.mxu0
        %v1379 = vadd.f32 0.0, %v1378
        %v1380 = vpop.f32.mrf.mxu0
        %v1381 = vpop.f32.mrf.mxu0
        %v1382 = vadd.f32 0.0, %v1381
        %v1383 = vpop.f32.mrf.mxu0
        %1384 = vmatprep.mubr.bf16.mxu0 0
        %1385 = vmatmul.mubr.bf16.gmra.mxu0 %v1049
        %v1386 = vpop.f32.mrf.mxu0
        %v1387 = vadd.f32 0.0, %v1386
        %v1388 = vpop.f32.mrf.mxu0
        %v1389 = vpop.f32.mrf.mxu0
        %v1390 = vadd.f32 0.0, %v1389
        %v1391 = vpop.f32.mrf.mxu0
        %1392 = vmatprep.mubr.bf16.mxu0 0
        %1393 = vmatmul.mubr.bf16.gmra.mxu0 %v1052
        %v1394 = vpop.f32.mrf.mxu0
        %v1395 = vadd.f32 0.0, %v1394
        %v1396 = vpop.f32.mrf.mxu0
        %v1397 = vpop.f32.mrf.mxu0
        %v1398 = vadd.f32 0.0, %v1397
        %v1399 = vpop.f32.mrf.mxu0
        %1400 = vmatprep.mubr.bf16.mxu0 0
        %1401 = vmatmul.mubr.bf16.gmra.mxu0 %v1055
        %v1402 = vpop.f32.mrf.mxu0
        %v1403 = vadd.f32 0.0, %v1402
        %v1404 = vpop.f32.mrf.mxu0
        %v1405 = vpop.f32.mrf.mxu0
        %v1406 = vadd.f32 0.0, %v1405
        %v1407 = vpop.f32.mrf.mxu0
        %1408 = vmatprep.mubr.bf16.mxu0 0
        %1409 = vmatmul.mubr.bf16.gmra.mxu0 %v1058
        %v1410 = vpop.f32.mrf.mxu0
        %v1411 = vadd.f32 0.0, %v1410
        %v1412 = vpop.f32.mrf.mxu0
        %v1413 = vpop.f32.mrf.mxu0
        %v1414 = vadd.f32 0.0, %v1413
        %v1415 = vpop.f32.mrf.mxu0
        %1416 = vmatprep.mubr.bf16.mxu0 0
        %1417 = vmatmul.mubr.bf16.gmra.mxu0 %v1061
        %v1418 = vpop.f32.mrf.mxu0
        %v1419 = vadd.f32 0.0, %v1418
        %v1420 = vpop.f32.mrf.mxu0
        %v1421 = vpop.f32.mrf.mxu0
        %v1422 = vadd.f32 0.0, %v1421
        %v1423 = vpop.f32.mrf.mxu0
        %1424 = vmatprep.mubr.bf16.mxu0 0
        %1425 = vmatmul.mubr.bf16.gmra.mxu0 %v1064
        %v1426 = vpop.f32.mrf.mxu0
        %v1427 = vadd.f32 0.0, %v1426
        %v1428 = vpop.f32.mrf.mxu0
        %v1429 = vpop.f32.mrf.mxu0
        %v1430 = vadd.f32 0.0, %v1429
        %v1431 = vpop.f32.mrf.mxu0
        %1432 = vmatprep.mubr.bf16.mxu0 0
        %1433 = vmatmul.mubr.bf16.gmra.mxu0 %v1067
        %v1434 = vpop.f32.mrf.mxu0
        %v1435 = vadd.f32 0.0, %v1434
        %v1436 = vpop.f32.mrf.mxu0
        %v1437 = vpop.f32.mrf.mxu0
        %v1438 = vadd.f32 0.0, %v1437
        %v1439 = vpop.f32.mrf.mxu0
        %1440 = vmatprep.mubr.bf16.mxu0 0
        %1441 = vmatmul.mubr.bf16.gmra.mxu0 %v1070
        %v1442 = vpop.f32.mrf.mxu0
        %v1443 = vadd.f32 0.0, %v1442
        %v1444 = vpop.f32.mrf.mxu0
        %v1445 = vpop.f32.mrf.mxu0
        %v1446 = vadd.f32 0.0, %v1445
        %v1447 = vpop.f32.mrf.mxu0
        %1448 = vmatprep.mubr.bf16.mxu0 0
        %1449 = vmatmul.mubr.bf16.gmra.mxu0 %v1073
        %v1450 = vpop.f32.mrf.mxu0
        %v1451 = vadd.f32 0.0, %v1450
        %v1452 = vpop.f32.mrf.mxu0
        %v1453 = vpop.f32.mrf.mxu0
        %v1454 = vadd.f32 0.0, %v1453
        %v1455 = vpop.f32.mrf.mxu0
        %1456 = vmatprep.mubr.bf16.mxu0 0
        %1457 = vmatmul.mubr.bf16.gmra.mxu0 %v1076
        %v1458 = vpop.f32.mrf.mxu0
        %v1459 = vadd.f32 0.0, %v1458
        %v1460 = vpop.f32.mrf.mxu0
        %v1461 = vpop.f32.mrf.mxu0
        %v1462 = vadd.f32 0.0, %v1461
        %v1463 = vpop.f32.mrf.mxu0
        %1464 = vmatprep.mubr.bf16.mxu0 0
        %1465 = vmatmul.mubr.bf16.gmra.mxu0 %v1079
        %v1466 = vpop.f32.mrf.mxu0
        %v1467 = vadd.f32 0.0, %v1466
        %v1468 = vpop.f32.mrf.mxu0
        %v1469 = vpop.f32.mrf.mxu0
        %v1470 = vadd.f32 0.0, %v1469
        %v1471 = vpop.f32.mrf.mxu0
        %1472 = vmatprep.mubr.bf16.mxu0 0
        %1473 = vmatmul.mubr.bf16.gmra.mxu0 %v1082
        %v1474 = vpop.f32.mrf.mxu0
        %v1475 = vadd.f32 0.0, %v1474
        %v1476 = vpop.f32.mrf.mxu0
        %v1477 = vpop.f32.mrf.mxu0
        %v1478 = vadd.f32 0.0, %v1477
        %v1479 = vpop.f32.mrf.mxu0
        %1480 = vmatprep.mubr.bf16.mxu0 0
        %1481 = vmatmul.mubr.bf16.gmra.mxu0 %v1085
        %v1482 = vpop.f32.mrf.mxu0
        %v1483 = vadd.f32 0.0, %v1482
        %v1484 = vpop.f32.mrf.mxu0
        %v1485 = vpop.f32.mrf.mxu0
        %v1486 = vadd.f32 0.0, %v1485
        %v1487 = vpop.f32.mrf.mxu0
        %1488 = vmatprep.mubr.bf16.mxu0 0
        %1489 = vmatmul.mubr.bf16.gmra.mxu0 %v1088
        %v1490 = vpop.f32.mrf.mxu0
        %v1491 = vadd.f32 0.0, %v1490
        %v1492 = vpop.f32.mrf.mxu0
        %v1493 = vpop.f32.mrf.mxu0
        %v1494 = vadd.f32 0.0, %v1493
        %v1495 = vpop.f32.mrf.mxu0
        %1496 = vmatprep.mubr.bf16.mxu0 0
        %1497 = vmatmul.mubr.bf16.gmra.mxu0 %v1091
        %v1498 = vpop.f32.mrf.mxu0
        %v1499 = vadd.f32 0.0, %v1498
        %v1500 = vpop.f32.mrf.mxu0
        %v1501 = vpop.f32.mrf.mxu0
        %v1502 = vadd.f32 0.0, %v1501
        %v1503 = vpop.f32.mrf.mxu0
        %1504 = vmatprep.mubr.bf16.mxu0 0
        %1505 = vmatmul.mubr.bf16.gmra.mxu0 %v1094
        %v1506 = vpop.f32.mrf.mxu0
        %v1507 = vadd.f32 0.0, %v1506
        %v1508 = vpop.f32.mrf.mxu0
        %v1509 = vpop.f32.mrf.mxu0
        %v1510 = vadd.f32 0.0, %v1509
        %v1511 = vpop.f32.mrf.mxu0
        %1512 = vmatprep.mubr.bf16.mxu0 0
        %1513 = vmatmul.mubr.bf16.gmra.mxu0 %v1097
        %v1514 = vpop.f32.mrf.mxu0
        %v1515 = vadd.f32 0.0, %v1514
        %v1516 = vpop.f32.mrf.mxu0
        %v1517 = vpop.f32.mrf.mxu0
        %v1518 = vadd.f32 0.0, %v1517
        %v1519 = vpop.f32.mrf.mxu0
        %1520 = vmatprep.mubr.bf16.mxu0 0
        %1521 = vmatmul.mubr.bf16.gmra.mxu0 %v1100
        %v1522 = vpop.f32.mrf.mxu0
        %v1523 = vadd.f32 0.0, %v1522
        %v1524 = vpop.f32.mrf.mxu0
        %v1525 = vpop.f32.mrf.mxu0
        %v1526 = vadd.f32 0.0, %v1525
        %v1527 = vpop.f32.mrf.mxu0
        %1528 = vmatprep.mubr.bf16.mxu0 0
        %1529 = vmatmul.mubr.bf16.gmra.mxu0 %v1103
        %v1530 = vpop.f32.mrf.mxu0
        %v1531 = vadd.f32 0.0, %v1530
        %v1532 = vpop.f32.mrf.mxu0
        %v1533 = vpop.f32.mrf.mxu0
        %v1534 = vadd.f32 0.0, %v1533
        %v1535 = vpop.f32.mrf.mxu0
        %1536 = vmatprep.mubr.bf16.mxu0 0
        %1537 = vmatmul.mubr.bf16.gmra.mxu0 %v1106
        %v1538 = vpop.f32.mrf.mxu0
        %v1539 = vadd.f32 0.0, %v1538
        %v1540 = vpop.f32.mrf.mxu0
        %v1541 = vpop.f32.mrf.mxu0
        %v1542 = vadd.f32 0.0, %v1541
        %v1543 = vpop.f32.mrf.mxu0
        %1544 = vmatprep.mubr.bf16.mxu0 0
        %1545 = vmatmul.mubr.bf16.gmra.mxu0 %v1109
        %v1546 = vpop.f32.mrf.mxu0
        %v1547 = vadd.f32 0.0, %v1546
        %v1548 = vpop.f32.mrf.mxu0
        %v1549 = vpop.f32.mrf.mxu0
        %v1550 = vadd.f32 0.0, %v1549
        %v1551 = vpop.f32.mrf.mxu0
        %1552 = vmatprep.mubr.bf16.mxu0 0
        %1553 = vmatmul.mubr.bf16.gmra.mxu0 %v1112
        %v1554 = vpop.f32.mrf.mxu0
        %v1555 = vadd.f32 0.0, %v1554
        %v1556 = vpop.f32.mrf.mxu0
        %v1557 = vpop.f32.mrf.mxu0
        %v1558 = vadd.f32 0.0, %v1557
        %v1559 = vpop.f32.mrf.mxu0
        %1560 = vmatprep.mubr.bf16.mxu0 0
        %1561 = vmatmul.mubr.bf16.gmra.mxu0 %v1115
        %v1562 = vpop.f32.mrf.mxu0
        %v1563 = vadd.f32 0.0, %v1562
        %v1564 = vpop.f32.mrf.mxu0
        %v1565 = vpop.f32.mrf.mxu0
        %v1566 = vadd.f32 0.0, %v1565
        %v1567 = vpop.f32.mrf.mxu0
        %1568 = vmatprep.mubr.bf16.mxu0 0
        %1569 = vmatmul.mubr.bf16.gmra.mxu0 %v1118
        %v1570 = vpop.f32.mrf.mxu0
        %v1571 = vadd.f32 0.0, %v1570
        %v1572 = vpop.f32.mrf.mxu0
        %v1573 = vpop.f32.mrf.mxu0
        %v1574 = vadd.f32 0.0, %v1573
        %v1575 = vpop.f32.mrf.mxu0
        %1576 = vmatprep.mubr.bf16.mxu0 0
        %1577 = vmatmul.mubr.bf16.gmra.mxu0 %v1121
        %v1578 = vpop.f32.mrf.mxu0
        %v1579 = vadd.f32 0.0, %v1578
        %v1580 = vpop.f32.mrf.mxu0
        %v1581 = vpop.f32.mrf.mxu0
        %v1582 = vadd.f32 0.0, %v1581
        %v1583 = vpop.f32.mrf.mxu0
        %1584 = vmatprep.mubr.bf16.mxu0 0
        %1585 = vmatmul.mubr.bf16.gmra.mxu0 %v1124
        %v1586 = vpop.f32.mrf.mxu0
        %v1587 = vadd.f32 0.0, %v1586
        %v1588 = vpop.f32.mrf.mxu0
        %v1589 = vpop.f32.mrf.mxu0
        %v1590 = vadd.f32 0.0, %v1589
        %v1591 = vpop.f32.mrf.mxu0
        %1592 = vmatprep.mubr.bf16.mxu0 0
        %1593 = vmatmul.mubr.bf16.gmra.mxu0 %v1127
        %v1594 = vpop.f32.mrf.mxu0
        %v1595 = vadd.f32 0.0, %v1594
        %v1596 = vpop.f32.mrf.mxu0
        %v1597 = vpop.f32.mrf.mxu0
        %v1598 = vadd.f32 0.0, %v1597
        %v1599 = vpop.f32.mrf.mxu0
        %1600 = vmatprep.mubr.bf16.mxu0 0
        %1601 = vmatmul.mubr.bf16.gmra.mxu0 %v1130
        %v1602 = vpop.f32.mrf.mxu0
        %v1603 = vadd.f32 0.0, %v1602
        %v1604 = vpop.f32.mrf.mxu0
        %v1605 = vpop.f32.mrf.mxu0
        %v1606 = vadd.f32 0.0, %v1605
        %v1607 = vpop.f32.mrf.mxu0
        %1608 = vmatprep.mubr.bf16.mxu0 0
        %1609 = vmatmul.mubr.bf16.gmra.mxu0 %v1133
        %v1610 = vpop.f32.mrf.mxu0
        %v1611 = vadd.f32 0.0, %v1610
        %v1612 = vpop.f32.mrf.mxu0
        %v1613 = vpop.f32.mrf.mxu0
        %v1614 = vadd.f32 0.0, %v1613
        %v1615 = vpop.f32.mrf.mxu0
        %1616 = vmatprep.mubr.bf16.mxu0 0
        %1617 = vmatmul.mubr.bf16.gmra.mxu0 %v1136
        %v1618 = vpop.f32.mrf.mxu0
        %v1619 = vadd.f32 0.0, %v1618
        %v1620 = vpop.f32.mrf.mxu0
        %v1621 = vpop.f32.mrf.mxu0
        %v1622 = vadd.f32 0.0, %v1621
        %v1623 = vpop.f32.mrf.mxu0
        %1624 = vmatprep.mubr.bf16.mxu0 0
        %1625 = vmatmul.mubr.bf16.gmra.mxu0 %v1139
        %v1626 = vpop.f32.mrf.mxu0
        %v1627 = vadd.f32 0.0, %v1626
        %v1628 = vpop.f32.mrf.mxu0
        %v1629 = vpop.f32.mrf.mxu0
        %v1630 = vadd.f32 0.0, %v1629
        %v1631 = vpop.f32.mrf.mxu0
        %1632 = vmatprep.mubr.bf16.mxu0 0
        %1633 = vmatmul.mubr.bf16.gmra.mxu0 %v1142
        %v1634 = vpop.f32.mrf.mxu0
        %v1635 = vadd.f32 0.0, %v1634
        %v1636 = vpop.f32.mrf.mxu0
        %v1637 = vpop.f32.mrf.mxu0
        %v1638 = vadd.f32 0.0, %v1637
        %v1639 = vpop.f32.mrf.mxu0
        %1640 = vmatprep.mubr.bf16.mxu0 0
        %1641 = vmatmul.mubr.bf16.gmra.mxu0 %v1145
        %v1642 = vpop.f32.mrf.mxu0
        %v1643 = vadd.f32 0.0, %v1642
        %v1644 = vpop.f32.mrf.mxu0
        %v1645 = vpop.f32.mrf.mxu0
        %v1646 = vadd.f32 0.0, %v1645
        %v1647 = vpop.f32.mrf.mxu0
        %1648 = vmatprep.mubr.bf16.mxu0 0
        %1649 = vmatmul.mubr.bf16.gmra.mxu0 %v1148
        %v1650 = vpop.f32.mrf.mxu0
        %v1651 = vadd.f32 0.0, %v1650
        %v1652 = vpop.f32.mrf.mxu0
        %v1653 = vpop.f32.mrf.mxu0
        %v1654 = vadd.f32 0.0, %v1653
        %v1655 = vpop.f32.mrf.mxu0
        %1656 = vmatprep.mubr.bf16.mxu0 0
        %1657 = vmatmul.mubr.bf16.gmra.mxu0 %v1151
        %v1658 = vpop.f32.mrf.mxu0
        %v1659 = vadd.f32 0.0, %v1658
        %v1660 = vpop.f32.mrf.mxu0
        %v1661 = vpop.f32.mrf.mxu0
        %v1662 = vadd.f32 0.0, %v1661
        %v1663 = vpop.f32.mrf.mxu0
        %1664 = vmatprep.mubr.bf16.mxu0 0
        %1665 = vmatmul.mubr.bf16.gmra.mxu0 %v1154
        %v1666 = vpop.f32.mrf.mxu0
        %v1667 = vadd.f32 0.0, %v1666
        %v1668 = vpop.f32.mrf.mxu0
        %v1669 = vpop.f32.mrf.mxu0
        %v1670 = vadd.f32 0.0, %v1669
        %v1671 = vpop.f32.mrf.mxu0
        %1672 = vmatprep.mubr.bf16.mxu0 0
        %1673 = vmatmul.mubr.bf16.gmra.mxu0 %v1157
        %v1674 = vpop.f32.mrf.mxu0
        %v1675 = vadd.f32 0.0, %v1674
        %v1676 = vpop.f32.mrf.mxu0
        %v1677 = vpop.f32.mrf.mxu0
        %v1678 = vadd.f32 0.0, %v1677
        %v1679 = vpop.f32.mrf.mxu0
        %1680 = vmatprep.mubr.bf16.mxu0 0
        %1681 = vmatmul.mubr.bf16.gmra.mxu0 %v1160
        %v1682 = vpop.f32.mrf.mxu0
        %v1683 = vadd.f32 0.0, %v1682
        %v1684 = vpop.f32.mrf.mxu0
        %v1685 = vpop.f32.mrf.mxu0
        %v1686 = vadd.f32 0.0, %v1685
        %v1687 = vpop.f32.mrf.mxu0
        %1688 = vmatprep.mubr.bf16.mxu0 0
        %1689 = vmatmul.mubr.bf16.gmra.mxu0 %v1163
        %v1690 = vpop.f32.mrf.mxu0
        %v1691 = vadd.f32 0.0, %v1690
        %v1692 = vpop.f32.mrf.mxu0
        %v1693 = vpop.f32.mrf.mxu0
        %v1694 = vadd.f32 0.0, %v1693
        %v1695 = vpop.f32.mrf.mxu0
        %1696 = vmatprep.mubr.bf16.mxu0 0
        %1697 = vmatmul.mubr.bf16.gmra.mxu0 %v1166
        %v1698 = vpop.f32.mrf.mxu0
        %v1699 = vadd.f32 0.0, %v1698
        %v1700 = vpop.f32.mrf.mxu0
        %v1701 = vpop.f32.mrf.mxu0
        %v1702 = vadd.f32 0.0, %v1701
        %v1703 = vpop.f32.mrf.mxu0
        %1704 = vmatprep.mubr.bf16.mxu0 0
        %1705 = vmatmul.mubr.bf16.gmra.mxu0 %v1169
        %v1706 = vpop.f32.mrf.mxu0
        %v1707 = vadd.f32 0.0, %v1706
        %v1708 = vpop.f32.mrf.mxu0
        %v1709 = vpop.f32.mrf.mxu0
        %v1710 = vadd.f32 0.0, %v1709
        %v1711 = vpop.f32.mrf.mxu0
        %1712 = vmatprep.mubr.bf16.mxu0 0
        %1713 = vmatmul.mubr.bf16.gmra.mxu0 %v1172
        %v1714 = vpop.f32.mrf.mxu0
        %v1715 = vadd.f32 0.0, %v1714
        %v1716 = vpop.f32.mrf.mxu0
        %v1717 = vpop.f32.mrf.mxu0
        %v1718 = vadd.f32 0.0, %v1717
        %v1719 = vpop.f32.mrf.mxu0
        %1720 = vmatprep.mubr.bf16.mxu0 0
        %1721 = vmatmul.mubr.bf16.gmra.mxu0 %v1175
        %v1722 = vpop.f32.mrf.mxu0
        %v1723 = vadd.f32 0.0, %v1722
        %v1724 = vpop.f32.mrf.mxu0
        %v1725 = vpop.f32.mrf.mxu0
        %v1726 = vadd.f32 0.0, %v1725
        %v1727 = vpop.f32.mrf.mxu0
        %1728 = vdwg.mxu0
        %v1729 = vadd.f32 %v393, %v1219
        %v1730 = vadd.f32 %v394, %v1222
        %v1731 = vadd.f32 %v395, %v1227
        %v1732 = vadd.f32 %v396, %v1230
        %v1733 = vadd.f32 %v397, %v1235
        %v1734 = vadd.f32 %v398, %v1238
        %v1735 = vadd.f32 %v399, %v1243
        %v1736 = vadd.f32 %v400, %v1246
        %v1737 = vadd.f32 %v401, %v1251
        %v1738 = vadd.f32 %v402, %v1254
        %v1739 = vadd.f32 %v403, %v1259
        %v1740 = vadd.f32 %v404, %v1262
        %v1741 = vadd.f32 %v405, %v1267
        %v1742 = vadd.f32 %v406, %v1270
        %v1743 = vadd.f32 %v407, %v1275
        %v1744 = vadd.f32 %v408, %v1278
        %v1745 = vadd.f32 %v409, %v1283
        %v1746 = vadd.f32 %v410, %v1286
        %v1747 = vadd.f32 %v411, %v1291
        %v1748 = vadd.f32 %v412, %v1294
        %v1749 = vadd.f32 %v413, %v1299
        %v1750 = vadd.f32 %v414, %v1302
        %v1751 = vadd.f32 %v415, %v1307
        %v1752 = vadd.f32 %v416, %v1310
        %v1753 = vadd.f32 %v417, %v1315
        %v1754 = vadd.f32 %v418, %v1318
        %v1755 = vadd.f32 %v419, %v1323
        %v1756 = vadd.f32 %v420, %v1326
        %v1757 = vadd.f32 %v421, %v1331
        %v1758 = vadd.f32 %v422, %v1334
        %v1759 = vadd.f32 %v423, %v1339
        %v1760 = vadd.f32 %v424, %v1342
        %v1761 = vadd.f32 %v425, %v1347
        %v1762 = vadd.f32 %v426, %v1350
        %v1763 = vadd.f32 %v427, %v1355
        %v1764 = vadd.f32 %v428, %v1358
        %v1765 = vadd.f32 %v429, %v1363
        %v1766 = vadd.f32 %v430, %v1366
        %v1767 = vadd.f32 %v431, %v1371
        %v1768 = vadd.f32 %v432, %v1374
        %v1769 = vadd.f32 %v433, %v1379
        %v1770 = vadd.f32 %v434, %v1382
        %v1771 = vadd.f32 %v435, %v1387
        %v1772 = vadd.f32 %v436, %v1390
        %v1773 = vadd.f32 %v437, %v1395
        %v1774 = vadd.f32 %v438, %v1398
        %v1775 = vadd.f32 %v439, %v1403
        %v1776 = vadd.f32 %v440, %v1406
        %v1777 = vadd.f32 %v441, %v1411
        %v1778 = vadd.f32 %v442, %v1414
        %v1779 = vadd.f32 %v443, %v1419
        %v1780 = vadd.f32 %v444, %v1422
        %v1781 = vadd.f32 %v445, %v1427
        %v1782 = vadd.f32 %v446, %v1430
        %v1783 = vadd.f32 %v447, %v1435
        %v1784 = vadd.f32 %v448, %v1438
        %v1785 = vadd.f32 %v449, %v1443
        %v1786 = vadd.f32 %v450, %v1446
        %v1787 = vadd.f32 %v451, %v1451
        %v1788 = vadd.f32 %v452, %v1454
        %v1789 = vadd.f32 %v453, %v1459
        %v1790 = vadd.f32 %v454, %v1462
        %v1791 = vadd.f32 %v455, %v1467
        %v1792 = vadd.f32 %v456, %v1470
        %v1793 = vadd.f32 %v457, %v1475
        %v1794 = vadd.f32 %v458, %v1478
        %v1795 = vadd.f32 %v459, %v1483
        %v1796 = vadd.f32 %v460, %v1486
        %v1797 = vadd.f32 %v461, %v1491
        %v1798 = vadd.f32 %v462, %v1494
        %v1799 = vadd.f32 %v463, %v1499
        %v1800 = vadd.f32 %v464, %v1502
        %v1801 = vadd.f32 %v465, %v1507
        %v1802 = vadd.f32 %v466, %v1510
        %v1803 = vadd.f32 %v467, %v1515
        %v1804 = vadd.f32 %v468, %v1518
        %v1805 = vadd.f32 %v469, %v1523
        %v1806 = vadd.f32 %v470, %v1526
        %v1807 = vadd.f32 %v471, %v1531
        %v1808 = vadd.f32 %v472, %v1534
        %v1809 = vadd.f32 %v473, %v1539
        %v1810 = vadd.f32 %v474, %v1542
        %v1811 = vadd.f32 %v475, %v1547
        %v1812 = vadd.f32 %v476, %v1550
        %v1813 = vadd.f32 %v477, %v1555
        %v1814 = vadd.f32 %v478, %v1558
        %v1815 = vadd.f32 %v479, %v1563
        %v1816 = vadd.f32 %v480, %v1566
        %v1817 = vadd.f32 %v481, %v1571
        %v1818 = vadd.f32 %v482, %v1574
        %v1819 = vadd.f32 %v483, %v1579
        %v1820 = vadd.f32 %v484, %v1582
        %v1821 = vadd.f32 %v485, %v1587
        %v1822 = vadd.f32 %v486, %v1590
        %v1823 = vadd.f32 %v487, %v1595
        %v1824 = vadd.f32 %v488, %v1598
        %v1825 = vadd.f32 %v489, %v1603
        %v1826 = vadd.f32 %v490, %v1606
        %v1827 = vadd.f32 %v491, %v1611
        %v1828 = vadd.f32 %v492, %v1614
        %v1829 = vadd.f32 %v493, %v1619
        %v1830 = vadd.f32 %v494, %v1622
        %v1831 = vadd.f32 %v495, %v1627
        %v1832 = vadd.f32 %v496, %v1630
        %v1833 = vadd.f32 %v497, %v1635
        %v1834 = vadd.f32 %v498, %v1638
        %v1835 = vadd.f32 %v499, %v1643
        %v1836 = vadd.f32 %v500, %v1646
        %v1837 = vadd.f32 %v501, %v1651
        %v1838 = vadd.f32 %v502, %v1654
        %v1839 = vadd.f32 %v503, %v1659
        %v1840 = vadd.f32 %v504, %v1662
        %v1841 = vadd.f32 %v505, %v1667
        %v1842 = vadd.f32 %v506, %v1670
        %v1843 = vadd.f32 %v507, %v1675
        %v1844 = vadd.f32 %v508, %v1678
        %v1845 = vadd.f32 %v509, %v1683
        %v1846 = vadd.f32 %v510, %v1686
        %v1847 = vadd.f32 %v511, %v1691
        %v1848 = vadd.f32 %v512, %v1694
        %v1849 = vadd.f32 %v513, %v1699
        %v1850 = vadd.f32 %v514, %v1702
        %v1851 = vadd.f32 %v515, %v1707
        %v1852 = vadd.f32 %v516, %v1710
        %v1853 = vadd.f32 %v517, %v1715
        %v1854 = vadd.f32 %v518, %v1718
        %v1855 = vadd.f32 %v519, %v1723
        %v1856 = vadd.f32 %v520, %v1726
        %vm1857 = vcmask 523264
        %1858 = vst.msk [vmem:[#allocation2] sm:$0xff] %vm1857, %v1729
        %1859 = vst.msk [vmem:[#allocation2 + $0x8] sm:$0xff] %vm1857, %v1730
        %1860 = vst.msk [vmem:[#allocation2 + $0x10] sm:$0xff] %vm1857, %v1731
        %1861 = vst.msk [vmem:[#allocation2 + $0x18] sm:$0xff] %vm1857, %v1732
        %1862 = vst.msk [vmem:[#allocation2 + $0x20] sm:$0xff] %vm1857, %v1733
        %1863 = vst.msk [vmem:[#allocation2 + $0x28] sm:$0xff] %vm1857, %v1734
        %1864 = vst.msk [vmem:[#allocation2 + $0x30] sm:$0xff] %vm1857, %v1735
        %1865 = vst.msk [vmem:[#allocation2 + $0x38] sm:$0xff] %vm1857, %v1736
        %1866 = vst.msk [vmem:[#allocation2 + $0x40] sm:$0xff] %vm1857, %v1737
        %1867 = vst.msk [vmem:[#allocation2 + $0x48] sm:$0xff] %vm1857, %v1738
        %1868 = vst.msk [vmem:[#allocation2 + $0x50] sm:$0xff] %vm1857, %v1739
        %1869 = vst.msk [vmem:[#allocation2 + $0x58] sm:$0xff] %vm1857, %v1740
        %1870 = vst.msk [vmem:[#allocation2 + $0x60] sm:$0xff] %vm1857, %v1741
        %1871 = vst.msk [vmem:[#allocation2 + $0x68] sm:$0xff] %vm1857, %v1742
        %1872 = vst.msk [vmem:[#allocation2 + $0x70] sm:$0xff] %vm1857, %v1743
        %1873 = vst.msk [vmem:[#allocation2 + $0x78] sm:$0xff] %vm1857, %v1744
        %1874 = vst.msk [vmem:[#allocation2 + $0x80] sm:$0xff] %vm1857, %v1745
        %1875 = vst.msk [vmem:[#allocation2 + $0x88] sm:$0xff] %vm1857, %v1746
        %1876 = vst.msk [vmem:[#allocation2 + $0x90] sm:$0xff] %vm1857, %v1747
        %1877 = vst.msk [vmem:[#allocation2 + $0x98] sm:$0xff] %vm1857, %v1748
        %1878 = vst.msk [vmem:[#allocation2 + $0xa0] sm:$0xff] %vm1857, %v1749
        %1879 = vst.msk [vmem:[#allocation2 + $0xa8] sm:$0xff] %vm1857, %v1750
        %1880 = vst.msk [vmem:[#allocation2 + $0xb0] sm:$0xff] %vm1857, %v1751
        %1881 = vst.msk [vmem:[#allocation2 + $0xb8] sm:$0xff] %vm1857, %v1752
        %1882 = vst.msk [vmem:[#allocation2 + $0xc0] sm:$0xff] %vm1857, %v1753
        %1883 = vst.msk [vmem:[#allocation2 + $0xc8] sm:$0xff] %vm1857, %v1754
        %1884 = vst.msk [vmem:[#allocation2 + $0xd0] sm:$0xff] %vm1857, %v1755
        %1885 = vst.msk [vmem:[#allocation2 + $0xd8] sm:$0xff] %vm1857, %v1756
        %1886 = vst.msk [vmem:[#allocation2 + $0xe0] sm:$0xff] %vm1857, %v1757
        %1887 = vst.msk [vmem:[#allocation2 + $0xe8] sm:$0xff] %vm1857, %v1758
        %1888 = vst.msk [vmem:[#allocation2 + $0xf0] sm:$0xff] %vm1857, %v1759
        %1889 = vst.msk [vmem:[#allocation2 + $0xf8] sm:$0xff] %vm1857, %v1760
        %1890 = vst.msk [vmem:[#allocation2 + $0x100] sm:$0xff] %vm1857, %v1761
        %1891 = vst.msk [vmem:[#allocation2 + $0x108] sm:$0xff] %vm1857, %v1762
        %1892 = vst.msk [vmem:[#allocation2 + $0x110] sm:$0xff] %vm1857, %v1763
        %1893 = vst.msk [vmem:[#allocation2 + $0x118] sm:$0xff] %vm1857, %v1764
        %1894 = vst.msk [vmem:[#allocation2 + $0x120] sm:$0xff] %vm1857, %v1765
        %1895 = vst.msk [vmem:[#allocation2 + $0x128] sm:$0xff] %vm1857, %v1766
        %1896 = vst.msk [vmem:[#allocation2 + $0x130] sm:$0xff] %vm1857, %v1767
        %1897 = vst.msk [vmem:[#allocation2 + $0x138] sm:$0xff] %vm1857, %v1768
        %1898 = vst.msk [vmem:[#allocation2 + $0x140] sm:$0xff] %vm1857, %v1769
        %1899 = vst.msk [vmem:[#allocation2 + $0x148] sm:$0xff] %vm1857, %v1770
        %1900 = vst.msk [vmem:[#allocation2 + $0x150] sm:$0xff] %vm1857, %v1771
        %1901 = vst.msk [vmem:[#allocation2 + $0x158] sm:$0xff] %vm1857, %v1772
        %1902 = vst.msk [vmem:[#allocation2 + $0x160] sm:$0xff] %vm1857, %v1773
        %1903 = vst.msk [vmem:[#allocation2 + $0x168] sm:$0xff] %vm1857, %v1774
        %1904 = vst.msk [vmem:[#allocation2 + $0x170] sm:$0xff] %vm1857, %v1775
        %1905 = vst.msk [vmem:[#allocation2 + $0x178] sm:$0xff] %vm1857, %v1776
        %1906 = vst.msk [vmem:[#allocation2 + $0x180] sm:$0xff] %vm1857, %v1777
        %1907 = vst.msk [vmem:[#allocation2 + $0x188] sm:$0xff] %vm1857, %v1778
        %1908 = vst.msk [vmem:[#allocation2 + $0x190] sm:$0xff] %vm1857, %v1779
        %1909 = vst.msk [vmem:[#allocation2 + $0x198] sm:$0xff] %vm1857, %v1780
        %1910 = vst.msk [vmem:[#allocation2 + $0x1a0] sm:$0xff] %vm1857, %v1781
        %1911 = vst.msk [vmem:[#allocation2 + $0x1a8] sm:$0xff] %vm1857, %v1782
        %1912 = vst.msk [vmem:[#allocation2 + $0x1b0] sm:$0xff] %vm1857, %v1783
        %1913 = vst.msk [vmem:[#allocation2 + $0x1b8] sm:$0xff] %vm1857, %v1784
        %1914 = vst.msk [vmem:[#allocation2 + $0x1c0] sm:$0xff] %vm1857, %v1785
        %1915 = vst.msk [vmem:[#allocation2 + $0x1c8] sm:$0xff] %vm1857, %v1786
        %1916 = vst.msk [vmem:[#allocation2 + $0x1d0] sm:$0xff] %vm1857, %v1787
        %1917 = vst.msk [vmem:[#allocation2 + $0x1d8] sm:$0xff] %vm1857, %v1788
        %1918 = vst.msk [vmem:[#allocation2 + $0x1e0] sm:$0xff] %vm1857, %v1789
        %1919 = vst.msk [vmem:[#allocation2 + $0x1e8] sm:$0xff] %vm1857, %v1790
        %1920 = vst.msk [vmem:[#allocation2 + $0x1f0] sm:$0xff] %vm1857, %v1791
        %1921 = vst.msk [vmem:[#allocation2 + $0x1f8] sm:$0xff] %vm1857, %v1792
        %1922 = vst.msk [vmem:[#allocation2 + $0x200] sm:$0xff] %vm1857, %v1793
        %1923 = vst.msk [vmem:[#allocation2 + $0x208] sm:$0xff] %vm1857, %v1794
        %1924 = vst.msk [vmem:[#allocation2 + $0x210] sm:$0xff] %vm1857, %v1795
        %1925 = vst.msk [vmem:[#allocation2 + $0x218] sm:$0xff] %vm1857, %v1796
        %1926 = vst.msk [vmem:[#allocation2 + $0x220] sm:$0xff] %vm1857, %v1797
        %1927 = vst.msk [vmem:[#allocation2 + $0x228] sm:$0xff] %vm1857, %v1798
        %1928 = vst.msk [vmem:[#allocation2 + $0x230] sm:$0xff] %vm1857, %v1799
        %1929 = vst.msk [vmem:[#allocation2 + $0x238] sm:$0xff] %vm1857, %v1800
        %1930 = vst.msk [vmem:[#allocation2 + $0x240] sm:$0xff] %vm1857, %v1801
        %1931 = vst.msk [vmem:[#allocation2 + $0x248] sm:$0xff] %vm1857, %v1802
        %1932 = vst.msk [vmem:[#allocation2 + $0x250] sm:$0xff] %vm1857, %v1803
        %1933 = vst.msk [vmem:[#allocation2 + $0x258] sm:$0xff] %vm1857, %v1804
        %1934 = vst.msk [vmem:[#allocation2 + $0x260] sm:$0xff] %vm1857, %v1805
        %1935 = vst.msk [vmem:[#allocation2 + $0x268] sm:$0xff] %vm1857, %v1806
        %1936 = vst.msk [vmem:[#allocation2 + $0x270] sm:$0xff] %vm1857, %v1807
        %1937 = vst.msk [vmem:[#allocation2 + $0x278] sm:$0xff] %vm1857, %v1808
        %1938 = vst.msk [vmem:[#allocation2 + $0x280] sm:$0xff] %vm1857, %v1809
        %1939 = vst.msk [vmem:[#allocation2 + $0x288] sm:$0xff] %vm1857, %v1810
        %1940 = vst.msk [vmem:[#allocation2 + $0x290] sm:$0xff] %vm1857, %v1811
        %1941 = vst.msk [vmem:[#allocation2 + $0x298] sm:$0xff] %vm1857, %v1812
        %1942 = vst.msk [vmem:[#allocation2 + $0x2a0] sm:$0xff] %vm1857, %v1813
        %1943 = vst.msk [vmem:[#allocation2 + $0x2a8] sm:$0xff] %vm1857, %v1814
        %1944 = vst.msk [vmem:[#allocation2 + $0x2b0] sm:$0xff] %vm1857, %v1815
        %1945 = vst.msk [vmem:[#allocation2 + $0x2b8] sm:$0xff] %vm1857, %v1816
        %1946 = vst.msk [vmem:[#allocation2 + $0x2c0] sm:$0xff] %vm1857, %v1817
        %1947 = vst.msk [vmem:[#allocation2 + $0x2c8] sm:$0xff] %vm1857, %v1818
        %1948 = vst.msk [vmem:[#allocation2 + $0x2d0] sm:$0xff] %vm1857, %v1819
        %1949 = vst.msk [vmem:[#allocation2 + $0x2d8] sm:$0xff] %vm1857, %v1820
        %1950 = vst.msk [vmem:[#allocation2 + $0x2e0] sm:$0xff] %vm1857, %v1821
        %1951 = vst.msk [vmem:[#allocation2 + $0x2e8] sm:$0xff] %vm1857, %v1822
        %1952 = vst.msk [vmem:[#allocation2 + $0x2f0] sm:$0xff] %vm1857, %v1823
        %1953 = vst.msk [vmem:[#allocation2 + $0x2f8] sm:$0xff] %vm1857, %v1824
        %1954 = vst.msk [vmem:[#allocation2 + $0x300] sm:$0xff] %vm1857, %v1825
        %1955 = vst.msk [vmem:[#allocation2 + $0x308] sm:$0xff] %vm1857, %v1826
        %1956 = vst.msk [vmem:[#allocation2 + $0x310] sm:$0xff] %vm1857, %v1827
        %1957 = vst.msk [vmem:[#allocation2 + $0x318] sm:$0xff] %vm1857, %v1828
        %1958 = vst.msk [vmem:[#allocation2 + $0x320] sm:$0xff] %vm1857, %v1829
        %1959 = vst.msk [vmem:[#allocation2 + $0x328] sm:$0xff] %vm1857, %v1830
        %1960 = vst.msk [vmem:[#allocation2 + $0x330] sm:$0xff] %vm1857, %v1831
        %1961 = vst.msk [vmem:[#allocation2 + $0x338] sm:$0xff] %vm1857, %v1832
        %1962 = vst.msk [vmem:[#allocation2 + $0x340] sm:$0xff] %vm1857, %v1833
        %1963 = vst.msk [vmem:[#allocation2 + $0x348] sm:$0xff] %vm1857, %v1834
        %1964 = vst.msk [vmem:[#allocation2 + $0x350] sm:$0xff] %vm1857, %v1835
        %1965 = vst.msk [vmem:[#allocation2 + $0x358] sm:$0xff] %vm1857, %v1836
        %1966 = vst.msk [vmem:[#allocation2 + $0x360] sm:$0xff] %vm1857, %v1837
        %1967 = vst.msk [vmem:[#allocation2 + $0x368] sm:$0xff] %vm1857, %v1838
        %1968 = vst.msk [vmem:[#allocation2 + $0x370] sm:$0xff] %vm1857, %v1839
        %1969 = vst.msk [vmem:[#allocation2 + $0x378] sm:$0xff] %vm1857, %v1840
        %1970 = vst.msk [vmem:[#allocation2 + $0x380] sm:$0xff] %vm1857, %v1841
        %1971 = vst.msk [vmem:[#allocation2 + $0x388] sm:$0xff] %vm1857, %v1842
        %1972 = vst.msk [vmem:[#allocation2 + $0x390] sm:$0xff] %vm1857, %v1843
        %1973 = vst.msk [vmem:[#allocation2 + $0x398] sm:$0xff] %vm1857, %v1844
        %1974 = vst.msk [vmem:[#allocation2 + $0x3a0] sm:$0xff] %vm1857, %v1845
        %1975 = vst.msk [vmem:[#allocation2 + $0x3a8] sm:$0xff] %vm1857, %v1846
        %1976 = vst.msk [vmem:[#allocation2 + $0x3b0] sm:$0xff] %vm1857, %v1847
        %1977 = vst.msk [vmem:[#allocation2 + $0x3b8] sm:$0xff] %vm1857, %v1848
        %1978 = vst.msk [vmem:[#allocation2 + $0x3c0] sm:$0xff] %vm1857, %v1849
        %1979 = vst.msk [vmem:[#allocation2 + $0x3c8] sm:$0xff] %vm1857, %v1850
        %1980 = vst.msk [vmem:[#allocation2 + $0x3d0] sm:$0xff] %vm1857, %v1851
        %1981 = vst.msk [vmem:[#allocation2 + $0x3d8] sm:$0xff] %vm1857, %v1852
        %1982 = vst.msk [vmem:[#allocation2 + $0x3e0] sm:$0xff] %vm1857, %v1853
        %1983 = vst.msk [vmem:[#allocation2 + $0x3e8] sm:$0xff] %vm1857, %v1854
        %1984 = vst.msk [vmem:[#allocation2 + $0x3f0] sm:$0xff] %vm1857, %v1855
        %1985 = vst.msk [vmem:[#allocation2 + $0x3f8] sm:$0xff] %vm1857, %v1856
        // Predicated region
        $region45: #{model1_vgg19_forward.2} parent=31 // pred_check
          %p1986 = pneg %p260
        $region46: #{model1_vgg19_forward.2} parent=31 // pred_check_branch
          %1988 = sbr.rel (%p1986) target = $region48
        $region47: #{model1_vgg19_forward.2} parent=31 // pred_region
          %v1989 = vld [vmem:[#allocation2] sm:$0xff]
          %v1990 = vld [vmem:[#allocation2 + $0x8] sm:$0xff]
          %v1991 = vld [vmem:[#allocation2 + $0x10] sm:$0xff]
          %v1992 = vld [vmem:[#allocation2 + $0x18] sm:$0xff]
          %v1993 = vld [vmem:[#allocation2 + $0x20] sm:$0xff]
          %v1994 = vld [vmem:[#allocation2 + $0x28] sm:$0xff]
          %v1995 = vld [vmem:[#allocation2 + $0x30] sm:$0xff]
          %v1996 = vld [vmem:[#allocation2 + $0x38] sm:$0xff]
          %v1997 = vld [vmem:[#allocation2 + $0x40] sm:$0xff]
          %v1998 = vld [vmem:[#allocation2 + $0x48] sm:$0xff]
          %v1999 = vld [vmem:[#allocation2 + $0x50] sm:$0xff]
          %v2000 = vld [vmem:[#allocation2 + $0x58] sm:$0xff]
          %v2001 = vld [vmem:[#allocation2 + $0x60] sm:$0xff]
          %v2002 = vld [vmem:[#allocation2 + $0x68] sm:$0xff]
          %v2003 = vld [vmem:[#allocation2 + $0x70] sm:$0xff]
          %v2004 = vld [vmem:[#allocation2 + $0x78] sm:$0xff]
          %v2005 = vld [vmem:[#allocation2 + $0x80] sm:$0xff]
          %v2006 = vld [vmem:[#allocation2 + $0x88] sm:$0xff]
          %v2007 = vld [vmem:[#allocation2 + $0x90] sm:$0xff]
          %v2008 = vld [vmem:[#allocation2 + $0x98] sm:$0xff]
          %v2009 = vld [vmem:[#allocation2 + $0xa0] sm:$0xff]
          %v2010 = vld [vmem:[#allocation2 + $0xa8] sm:$0xff]
          %v2011 = vld [vmem:[#allocation2 + $0xb0] sm:$0xff]
          %v2012 = vld [vmem:[#allocation2 + $0xb8] sm:$0xff]
          %v2013 = vld [vmem:[#allocation2 + $0xc0] sm:$0xff]
          %v2014 = vld [vmem:[#allocation2 + $0xc8] sm:$0xff]
          %v2015 = vld [vmem:[#allocation2 + $0xd0] sm:$0xff]
          %v2016 = vld [vmem:[#allocation2 + $0xd8] sm:$0xff]
          %v2017 = vld [vmem:[#allocation2 + $0xe0] sm:$0xff]
          %v2018 = vld [vmem:[#allocation2 + $0xe8] sm:$0xff]
          %v2019 = vld [vmem:[#allocation2 + $0xf0] sm:$0xff]
          %v2020 = vld [vmem:[#allocation2 + $0xf8] sm:$0xff]
          %v2021 = vld [vmem:[#allocation2 + $0x100] sm:$0xff]
          %v2022 = vld [vmem:[#allocation2 + $0x108] sm:$0xff]
          %v2023 = vld [vmem:[#allocation2 + $0x110] sm:$0xff]
          %v2024 = vld [vmem:[#allocation2 + $0x118] sm:$0xff]
          %v2025 = vld [vmem:[#allocation2 + $0x120] sm:$0xff]
          %v2026 = vld [vmem:[#allocation2 + $0x128] sm:$0xff]
          %v2027 = vld [vmem:[#allocation2 + $0x130] sm:$0xff]
          %v2028 = vld [vmem:[#allocation2 + $0x138] sm:$0xff]
          %v2029 = vld [vmem:[#allocation2 + $0x140] sm:$0xff]
          %v2030 = vld [vmem:[#allocation2 + $0x148] sm:$0xff]
          %v2031 = vld [vmem:[#allocation2 + $0x150] sm:$0xff]
          %v2032 = vld [vmem:[#allocation2 + $0x158] sm:$0xff]
          %v2033 = vld [vmem:[#allocation2 + $0x160] sm:$0xff]
          %v2034 = vld [vmem:[#allocation2 + $0x168] sm:$0xff]
          %v2035 = vld [vmem:[#allocation2 + $0x170] sm:$0xff]
          %v2036 = vld [vmem:[#allocation2 + $0x178] sm:$0xff]
          %v2037 = vld [vmem:[#allocation2 + $0x180] sm:$0xff]
          %v2038 = vld [vmem:[#allocation2 + $0x188] sm:$0xff]
          %v2039 = vld [vmem:[#allocation2 + $0x190] sm:$0xff]
          %v2040 = vld [vmem:[#allocation2 + $0x198] sm:$0xff]
          %v2041 = vld [vmem:[#allocation2 + $0x1a0] sm:$0xff]
          %v2042 = vld [vmem:[#allocation2 + $0x1a8] sm:$0xff]
          %v2043 = vld [vmem:[#allocation2 + $0x1b0] sm:$0xff]
          %v2044 = vld [vmem:[#allocation2 + $0x1b8] sm:$0xff]
          %v2045 = vld [vmem:[#allocation2 + $0x1c0] sm:$0xff]
          %v2046 = vld [vmem:[#allocation2 + $0x1c8] sm:$0xff]
          %v2047 = vld [vmem:[#allocation2 + $0x1d0] sm:$0xff]
          %v2048 = vld [vmem:[#allocation2 + $0x1d8] sm:$0xff]
          %v2049 = vld [vmem:[#allocation2 + $0x1e0] sm:$0xff]
          %v2050 = vld [vmem:[#allocation2 + $0x1e8] sm:$0xff]
          %v2051 = vld [vmem:[#allocation2 + $0x1f0] sm:$0xff]
          %v2052 = vld [vmem:[#allocation2 + $0x1f8] sm:$0xff]
          %v2053 = vld [vmem:[#allocation2 + $0x200] sm:$0xff]
          %v2054 = vld [vmem:[#allocation2 + $0x208] sm:$0xff]
          %v2055 = vld [vmem:[#allocation2 + $0x210] sm:$0xff]
          %v2056 = vld [vmem:[#allocation2 + $0x218] sm:$0xff]
          %v2057 = vld [vmem:[#allocation2 + $0x220] sm:$0xff]
          %v2058 = vld [vmem:[#allocation2 + $0x228] sm:$0xff]
          %v2059 = vld [vmem:[#allocation2 + $0x230] sm:$0xff]
          %v2060 = vld [vmem:[#allocation2 + $0x238] sm:$0xff]
          %v2061 = vld [vmem:[#allocation2 + $0x240] sm:$0xff]
          %v2062 = vld [vmem:[#allocation2 + $0x248] sm:$0xff]
          %v2063 = vld [vmem:[#allocation2 + $0x250] sm:$0xff]
          %v2064 = vld [vmem:[#allocation2 + $0x258] sm:$0xff]
          %v2065 = vld [vmem:[#allocation2 + $0x260] sm:$0xff]
          %v2066 = vld [vmem:[#allocation2 + $0x268] sm:$0xff]
          %v2067 = vld [vmem:[#allocation2 + $0x270] sm:$0xff]
          %v2068 = vld [vmem:[#allocation2 + $0x278] sm:$0xff]
          %v2069 = vld [vmem:[#allocation2 + $0x280] sm:$0xff]
          %v2070 = vld [vmem:[#allocation2 + $0x288] sm:$0xff]
          %v2071 = vld [vmem:[#allocation2 + $0x290] sm:$0xff]
          %v2072 = vld [vmem:[#allocation2 + $0x298] sm:$0xff]
          %v2073 = vld [vmem:[#allocation2 + $0x2a0] sm:$0xff]
          %v2074 = vld [vmem:[#allocation2 + $0x2a8] sm:$0xff]
          %v2075 = vld [vmem:[#allocation2 + $0x2b0] sm:$0xff]
          %v2076 = vld [vmem:[#allocation2 + $0x2b8] sm:$0xff]
          %v2077 = vld [vmem:[#allocation2 + $0x2c0] sm:$0xff]
          %v2078 = vld [vmem:[#allocation2 + $0x2c8] sm:$0xff]
          %v2079 = vld [vmem:[#allocation2 + $0x2d0] sm:$0xff]
          %v2080 = vld [vmem:[#allocation2 + $0x2d8] sm:$0xff]
          %v2081 = vld [vmem:[#allocation2 + $0x2e0] sm:$0xff]
          %v2082 = vld [vmem:[#allocation2 + $0x2e8] sm:$0xff]
          %v2083 = vld [vmem:[#allocation2 + $0x2f0] sm:$0xff]
          %v2084 = vld [vmem:[#allocation2 + $0x2f8] sm:$0xff]
          %v2085 = vld [vmem:[#allocation2 + $0x300] sm:$0xff]
          %v2086 = vld [vmem:[#allocation2 + $0x308] sm:$0xff]
          %v2087 = vld [vmem:[#allocation2 + $0x310] sm:$0xff]
          %v2088 = vld [vmem:[#allocation2 + $0x318] sm:$0xff]
          %v2089 = vld [vmem:[#allocation2 + $0x320] sm:$0xff]
          %v2090 = vld [vmem:[#allocation2 + $0x328] sm:$0xff]
          %v2091 = vld [vmem:[#allocation2 + $0x330] sm:$0xff]
          %v2092 = vld [vmem:[#allocation2 + $0x338] sm:$0xff]
          %v2093 = vld [vmem:[#allocation2 + $0x340] sm:$0xff]
          %v2094 = vld [vmem:[#allocation2 + $0x348] sm:$0xff]
          %v2095 = vld [vmem:[#allocation2 + $0x350] sm:$0xff]
          %v2096 = vld [vmem:[#allocation2 + $0x358] sm:$0xff]
          %v2097 = vld [vmem:[#allocation2 + $0x360] sm:$0xff]
          %v2098 = vld [vmem:[#allocation2 + $0x368] sm:$0xff]
          %v2099 = vld [vmem:[#allocation2 + $0x370] sm:$0xff]
          %v2100 = vld [vmem:[#allocation2 + $0x378] sm:$0xff]
          %v2101 = vld [vmem:[#allocation2 + $0x380] sm:$0xff]
          %v2102 = vld [vmem:[#allocation2 + $0x388] sm:$0xff]
          %v2103 = vld [vmem:[#allocation2 + $0x390] sm:$0xff]
          %v2104 = vld [vmem:[#allocation2 + $0x398] sm:$0xff]
          %v2105 = vld [vmem:[#allocation2 + $0x3a0] sm:$0xff]
          %v2106 = vld [vmem:[#allocation2 + $0x3a8] sm:$0xff]
          %v2107 = vld [vmem:[#allocation2 + $0x3b0] sm:$0xff]
          %v2108 = vld [vmem:[#allocation2 + $0x3b8] sm:$0xff]
          %v2109 = vld [vmem:[#allocation2 + $0x3c0] sm:$0xff]
          %v2110 = vld [vmem:[#allocation2 + $0x3c8] sm:$0xff]
          %v2111 = vld [vmem:[#allocation2 + $0x3d0] sm:$0xff]
          %v2112 = vld [vmem:[#allocation2 + $0x3d8] sm:$0xff]
          %v2113 = vld [vmem:[#allocation2 + $0x3e0] sm:$0xff]
          %v2114 = vld [vmem:[#allocation2 + $0x3e8] sm:$0xff]
          %v2115 = vld [vmem:[#allocation2 + $0x3f0] sm:$0xff]
          %v2116 = vld [vmem:[#allocation2 + $0x3f8] sm:$0xff]
          %v2117 = vld [vmem:[#allocation5] sm:$0x1]
          %v2119 = vlaneseq
          %v2120 = vshrl.u32 %v2119, 7
          %v2121 = vsub.s32 0, %v2120
          %v2122 = vrot.slane %v2117, %v2121
          %v2124 = vadd.f32 %v1989, %v2122
          %v2125 = vadd.f32 %v1990, %v2122
          %v2126 = vadd.f32 %v1991, %v2122
          %v2127 = vadd.f32 %v1992, %v2122
          %v2128 = vadd.f32 %v1993, %v2122
          %v2129 = vadd.f32 %v1994, %v2122
          %v2130 = vadd.f32 %v1995, %v2122
          %v2131 = vadd.f32 %v1996, %v2122
          %v2132 = vadd.f32 %v1997, %v2122
          %v2133 = vadd.f32 %v1998, %v2122
          %v2134 = vadd.f32 %v1999, %v2122
          %v2135 = vadd.f32 %v2000, %v2122
          %v2136 = vadd.f32 %v2001, %v2122
          %v2137 = vadd.f32 %v2002, %v2122
          %v2138 = vadd.f32 %v2003, %v2122
          %v2139 = vadd.f32 %v2004, %v2122
          %v2140 = vadd.f32 %v2005, %v2122
          %v2141 = vadd.f32 %v2006, %v2122
          %v2142 = vadd.f32 %v2007, %v2122
          %v2143 = vadd.f32 %v2008, %v2122
          %v2144 = vadd.f32 %v2009, %v2122
          %v2145 = vadd.f32 %v2010, %v2122
          %v2146 = vadd.f32 %v2011, %v2122
          %v2147 = vadd.f32 %v2012, %v2122
          %v2148 = vadd.f32 %v2013, %v2122
          %v2149 = vadd.f32 %v2014, %v2122
          %v2150 = vadd.f32 %v2015, %v2122
          %v2151 = vadd.f32 %v2016, %v2122
          %v2152 = vadd.f32 %v2017, %v2122
          %v2153 = vadd.f32 %v2018, %v2122
          %v2154 = vadd.f32 %v2019, %v2122
          %v2155 = vadd.f32 %v2020, %v2122
          %v2156 = vadd.f32 %v2021, %v2122
          %v2157 = vadd.f32 %v2022, %v2122
          %v2158 = vadd.f32 %v2023, %v2122
          %v2159 = vadd.f32 %v2024, %v2122
          %v2160 = vadd.f32 %v2025, %v2122
          %v2161 = vadd.f32 %v2026, %v2122
          %v2162 = vadd.f32 %v2027, %v2122
          %v2163 = vadd.f32 %v2028, %v2122
          %v2164 = vadd.f32 %v2029, %v2122
          %v2165 = vadd.f32 %v2030, %v2122
          %v2166 = vadd.f32 %v2031, %v2122
          %v2167 = vadd.f32 %v2032, %v2122
          %v2168 = vadd.f32 %v2033, %v2122
          %v2169 = vadd.f32 %v2034, %v2122
          %v2170 = vadd.f32 %v2035, %v2122
          %v2171 = vadd.f32 %v2036, %v2122
          %v2172 = vadd.f32 %v2037, %v2122
          %v2173 = vadd.f32 %v2038, %v2122
          %v2174 = vadd.f32 %v2039, %v2122
          %v2175 = vadd.f32 %v2040, %v2122
          %v2176 = vadd.f32 %v2041, %v2122
          %v2177 = vadd.f32 %v2042, %v2122
          %v2178 = vadd.f32 %v2043, %v2122
          %v2179 = vadd.f32 %v2044, %v2122
          %v2180 = vadd.f32 %v2045, %v2122
          %v2181 = vadd.f32 %v2046, %v2122
          %v2182 = vadd.f32 %v2047, %v2122
          %v2183 = vadd.f32 %v2048, %v2122
          %v2184 = vadd.f32 %v2049, %v2122
          %v2185 = vadd.f32 %v2050, %v2122
          %v2186 = vadd.f32 %v2051, %v2122
          %v2187 = vadd.f32 %v2052, %v2122
          %v2188 = vadd.f32 %v2053, %v2122
          %v2189 = vadd.f32 %v2054, %v2122
          %v2190 = vadd.f32 %v2055, %v2122
          %v2191 = vadd.f32 %v2056, %v2122
          %v2192 = vadd.f32 %v2057, %v2122
          %v2193 = vadd.f32 %v2058, %v2122
          %v2194 = vadd.f32 %v2059, %v2122
          %v2195 = vadd.f32 %v2060, %v2122
          %v2196 = vadd.f32 %v2061, %v2122
          %v2197 = vadd.f32 %v2062, %v2122
          %v2198 = vadd.f32 %v2063, %v2122
          %v2199 = vadd.f32 %v2064, %v2122
          %v2200 = vadd.f32 %v2065, %v2122
          %v2201 = vadd.f32 %v2066, %v2122
          %v2202 = vadd.f32 %v2067, %v2122
          %v2203 = vadd.f32 %v2068, %v2122
          %v2204 = vadd.f32 %v2069, %v2122
          %v2205 = vadd.f32 %v2070, %v2122
          %v2206 = vadd.f32 %v2071, %v2122
          %v2207 = vadd.f32 %v2072, %v2122
          %v2208 = vadd.f32 %v2073, %v2122
          %v2209 = vadd.f32 %v2074, %v2122
          %v2210 = vadd.f32 %v2075, %v2122
          %v2211 = vadd.f32 %v2076, %v2122
          %v2212 = vadd.f32 %v2077, %v2122
          %v2213 = vadd.f32 %v2078, %v2122
          %v2214 = vadd.f32 %v2079, %v2122
          %v2215 = vadd.f32 %v2080, %v2122
          %v2216 = vadd.f32 %v2081, %v2122
          %v2217 = vadd.f32 %v2082, %v2122
          %v2218 = vadd.f32 %v2083, %v2122
          %v2219 = vadd.f32 %v2084, %v2122
          %v2220 = vadd.f32 %v2085, %v2122
          %v2221 = vadd.f32 %v2086, %v2122
          %v2222 = vadd.f32 %v2087, %v2122
          %v2223 = vadd.f32 %v2088, %v2122
          %v2224 = vadd.f32 %v2089, %v2122
          %v2225 = vadd.f32 %v2090, %v2122
          %v2226 = vadd.f32 %v2091, %v2122
          %v2227 = vadd.f32 %v2092, %v2122
          %v2228 = vadd.f32 %v2093, %v2122
          %v2229 = vadd.f32 %v2094, %v2122
          %v2230 = vadd.f32 %v2095, %v2122
          %v2231 = vadd.f32 %v2096, %v2122
          %v2232 = vadd.f32 %v2097, %v2122
          %v2233 = vadd.f32 %v2098, %v2122
          %v2234 = vadd.f32 %v2099, %v2122
          %v2235 = vadd.f32 %v2100, %v2122
          %v2236 = vadd.f32 %v2101, %v2122
          %v2237 = vadd.f32 %v2102, %v2122
          %v2238 = vadd.f32 %v2103, %v2122
          %v2239 = vadd.f32 %v2104, %v2122
          %v2240 = vadd.f32 %v2105, %v2122
          %v2241 = vadd.f32 %v2106, %v2122
          %v2242 = vadd.f32 %v2107, %v2122
          %v2243 = vadd.f32 %v2108, %v2122
          %v2244 = vadd.f32 %v2109, %v2122
          %v2245 = vadd.f32 %v2110, %v2122
          %v2246 = vadd.f32 %v2111, %v2122
          %v2247 = vadd.f32 %v2112, %v2122
          %v2248 = vadd.f32 %v2113, %v2122
          %v2249 = vadd.f32 %v2114, %v2122
          %v2250 = vadd.f32 %v2115, %v2122
          %v2251 = vadd.f32 %v2116, %v2122
          %v2252 = vmax.f32 %v2124, 0.0
          %v2253 = vmax.f32 %v2125, 0.0
          %v2254 = vmax.f32 %v2126, 0.0
          %v2255 = vmax.f32 %v2127, 0.0
          %v2256 = vmax.f32 %v2128, 0.0
          %v2257 = vmax.f32 %v2129, 0.0
          %v2258 = vmax.f32 %v2130, 0.0
          %v2259 = vmax.f32 %v2131, 0.0
          %v2260 = vmax.f32 %v2132, 0.0
          %v2261 = vmax.f32 %v2133, 0.0
          %v2262 = vmax.f32 %v2134, 0.0
          %v2263 = vmax.f32 %v2135, 0.0
          %v2264 = vmax.f32 %v2136, 0.0
          %v2265 = vmax.f32 %v2137, 0.0
          %v2266 = vmax.f32 %v2138, 0.0
          %v2267 = vmax.f32 %v2139, 0.0
          %v2268 = vmax.f32 %v2140, 0.0
          %v2269 = vmax.f32 %v2141, 0.0
          %v2270 = vmax.f32 %v2142, 0.0
          %v2271 = vmax.f32 %v2143, 0.0
          %v2272 = vmax.f32 %v2144, 0.0
          %v2273 = vmax.f32 %v2145, 0.0
          %v2274 = vmax.f32 %v2146, 0.0
          %v2275 = vmax.f32 %v2147, 0.0
          %v2276 = vmax.f32 %v2148, 0.0
          %v2277 = vmax.f32 %v2149, 0.0
          %v2278 = vmax.f32 %v2150, 0.0
          %v2279 = vmax.f32 %v2151, 0.0
          %v2280 = vmax.f32 %v2152, 0.0
          %v2281 = vmax.f32 %v2153, 0.0
          %v2282 = vmax.f32 %v2154, 0.0
          %v2283 = vmax.f32 %v2155, 0.0
          %v2284 = vmax.f32 %v2156, 0.0
          %v2285 = vmax.f32 %v2157, 0.0
          %v2286 = vmax.f32 %v2158, 0.0
          %v2287 = vmax.f32 %v2159, 0.0
          %v2288 = vmax.f32 %v2160, 0.0
          %v2289 = vmax.f32 %v2161, 0.0
          %v2290 = vmax.f32 %v2162, 0.0
          %v2291 = vmax.f32 %v2163, 0.0
          %v2292 = vmax.f32 %v2164, 0.0
          %v2293 = vmax.f32 %v2165, 0.0
          %v2294 = vmax.f32 %v2166, 0.0
          %v2295 = vmax.f32 %v2167, 0.0
          %v2296 = vmax.f32 %v2168, 0.0
          %v2297 = vmax.f32 %v2169, 0.0
          %v2298 = vmax.f32 %v2170, 0.0
          %v2299 = vmax.f32 %v2171, 0.0
          %v2300 = vmax.f32 %v2172, 0.0
          %v2301 = vmax.f32 %v2173, 0.0
          %v2302 = vmax.f32 %v2174, 0.0
          %v2303 = vmax.f32 %v2175, 0.0
          %v2304 = vmax.f32 %v2176, 0.0
          %v2305 = vmax.f32 %v2177, 0.0
          %v2306 = vmax.f32 %v2178, 0.0
          %v2307 = vmax.f32 %v2179, 0.0
          %v2308 = vmax.f32 %v2180, 0.0
          %v2309 = vmax.f32 %v2181, 0.0
          %v2310 = vmax.f32 %v2182, 0.0
          %v2311 = vmax.f32 %v2183, 0.0
          %v2312 = vmax.f32 %v2184, 0.0
          %v2313 = vmax.f32 %v2185, 0.0
          %v2314 = vmax.f32 %v2186, 0.0
          %v2315 = vmax.f32 %v2187, 0.0
          %v2316 = vmax.f32 %v2188, 0.0
          %v2317 = vmax.f32 %v2189, 0.0
          %v2318 = vmax.f32 %v2190, 0.0
          %v2319 = vmax.f32 %v2191, 0.0
          %v2320 = vmax.f32 %v2192, 0.0
          %v2321 = vmax.f32 %v2193, 0.0
          %v2322 = vmax.f32 %v2194, 0.0
          %v2323 = vmax.f32 %v2195, 0.0
          %v2324 = vmax.f32 %v2196, 0.0
          %v2325 = vmax.f32 %v2197, 0.0
          %v2326 = vmax.f32 %v2198, 0.0
          %v2327 = vmax.f32 %v2199, 0.0
          %v2328 = vmax.f32 %v2200, 0.0
          %v2329 = vmax.f32 %v2201, 0.0
          %v2330 = vmax.f32 %v2202, 0.0
          %v2331 = vmax.f32 %v2203, 0.0
          %v2332 = vmax.f32 %v2204, 0.0
          %v2333 = vmax.f32 %v2205, 0.0
          %v2334 = vmax.f32 %v2206, 0.0
          %v2335 = vmax.f32 %v2207, 0.0
          %v2336 = vmax.f32 %v2208, 0.0
          %v2337 = vmax.f32 %v2209, 0.0
          %v2338 = vmax.f32 %v2210, 0.0
          %v2339 = vmax.f32 %v2211, 0.0
          %v2340 = vmax.f32 %v2212, 0.0
          %v2341 = vmax.f32 %v2213, 0.0
          %v2342 = vmax.f32 %v2214, 0.0
          %v2343 = vmax.f32 %v2215, 0.0
          %v2344 = vmax.f32 %v2216, 0.0
          %v2345 = vmax.f32 %v2217, 0.0
          %v2346 = vmax.f32 %v2218, 0.0
          %v2347 = vmax.f32 %v2219, 0.0
          %v2348 = vmax.f32 %v2220, 0.0
          %v2349 = vmax.f32 %v2221, 0.0
          %v2350 = vmax.f32 %v2222, 0.0
          %v2351 = vmax.f32 %v2223, 0.0
          %v2352 = vmax.f32 %v2224, 0.0
          %v2353 = vmax.f32 %v2225, 0.0
          %v2354 = vmax.f32 %v2226, 0.0
          %v2355 = vmax.f32 %v2227, 0.0
          %v2356 = vmax.f32 %v2228, 0.0
          %v2357 = vmax.f32 %v2229, 0.0
          %v2358 = vmax.f32 %v2230, 0.0
          %v2359 = vmax.f32 %v2231, 0.0
          %v2360 = vmax.f32 %v2232, 0.0
          %v2361 = vmax.f32 %v2233, 0.0
          %v2362 = vmax.f32 %v2234, 0.0
          %v2363 = vmax.f32 %v2235, 0.0
          %v2364 = vmax.f32 %v2236, 0.0
          %v2365 = vmax.f32 %v2237, 0.0
          %v2366 = vmax.f32 %v2238, 0.0
          %v2367 = vmax.f32 %v2239, 0.0
          %v2368 = vmax.f32 %v2240, 0.0
          %v2369 = vmax.f32 %v2241, 0.0
          %v2370 = vmax.f32 %v2242, 0.0
          %v2371 = vmax.f32 %v2243, 0.0
          %v2372 = vmax.f32 %v2244, 0.0
          %v2373 = vmax.f32 %v2245, 0.0
          %v2374 = vmax.f32 %v2246, 0.0
          %v2375 = vmax.f32 %v2247, 0.0
          %v2376 = vmax.f32 %v2248, 0.0
          %v2377 = vmax.f32 %v2249, 0.0
          %v2378 = vmax.f32 %v2250, 0.0
          %v2379 = vmax.f32 %v2251, 0.0
          %v2380 = vpack.c.bf16 %v2253, %v2252
          %v2381 = vpack.c.bf16 %v2255, %v2254
          %v2382 = vpack.c.bf16 %v2257, %v2256
          %v2383 = vpack.c.bf16 %v2259, %v2258
          %v2384 = vpack.c.bf16 %v2261, %v2260
          %v2385 = vpack.c.bf16 %v2263, %v2262
          %v2386 = vpack.c.bf16 %v2265, %v2264
          %v2387 = vpack.c.bf16 %v2267, %v2266
          %v2388 = vpack.c.bf16 %v2269, %v2268
          %v2389 = vpack.c.bf16 %v2271, %v2270
          %v2390 = vpack.c.bf16 %v2273, %v2272
          %v2391 = vpack.c.bf16 %v2275, %v2274
          %v2392 = vpack.c.bf16 %v2277, %v2276
          %v2393 = vpack.c.bf16 %v2279, %v2278
          %v2394 = vpack.c.bf16 %v2281, %v2280
          %v2395 = vpack.c.bf16 %v2283, %v2282
          %v2396 = vpack.c.bf16 %v2285, %v2284
          %v2397 = vpack.c.bf16 %v2287, %v2286
          %v2398 = vpack.c.bf16 %v2289, %v2288
          %v2399 = vpack.c.bf16 %v2291, %v2290
          %v2400 = vpack.c.bf16 %v2293, %v2292
          %v2401 = vpack.c.bf16 %v2295, %v2294
          %v2402 = vpack.c.bf16 %v2297, %v2296
          %v2403 = vpack.c.bf16 %v2299, %v2298
          %v2404 = vpack.c.bf16 %v2301, %v2300
          %v2405 = vpack.c.bf16 %v2303, %v2302
          %v2406 = vpack.c.bf16 %v2305, %v2304
          %v2407 = vpack.c.bf16 %v2307, %v2306
          %v2408 = vpack.c.bf16 %v2309, %v2308
          %v2409 = vpack.c.bf16 %v2311, %v2310
          %v2410 = vpack.c.bf16 %v2313, %v2312
          %v2411 = vpack.c.bf16 %v2315, %v2314
          %v2412 = vpack.c.bf16 %v2317, %v2316
          %v2413 = vpack.c.bf16 %v2319, %v2318
          %v2414 = vpack.c.bf16 %v2321, %v2320
          %v2415 = vpack.c.bf16 %v2323, %v2322
          %v2416 = vpack.c.bf16 %v2325, %v2324
          %v2417 = vpack.c.bf16 %v2327, %v2326
          %v2418 = vpack.c.bf16 %v2329, %v2328
          %v2419 = vpack.c.bf16 %v2331, %v2330
          %v2420 = vpack.c.bf16 %v2333, %v2332
          %v2421 = vpack.c.bf16 %v2335, %v2334
          %v2422 = vpack.c.bf16 %v2337, %v2336
          %v2423 = vpack.c.bf16 %v2339, %v2338
          %v2424 = vpack.c.bf16 %v2341, %v2340
          %v2425 = vpack.c.bf16 %v2343, %v2342
          %v2426 = vpack.c.bf16 %v2345, %v2344
          %v2427 = vpack.c.bf16 %v2347, %v2346
          %v2428 = vpack.c.bf16 %v2349, %v2348
          %v2429 = vpack.c.bf16 %v2351, %v2350
          %v2430 = vpack.c.bf16 %v2353, %v2352
          %v2431 = vpack.c.bf16 %v2355, %v2354
          %v2432 = vpack.c.bf16 %v2357, %v2356
          %v2433 = vpack.c.bf16 %v2359, %v2358
          %v2434 = vpack.c.bf16 %v2361, %v2360
          %v2435 = vpack.c.bf16 %v2363, %v2362
          %v2436 = vpack.c.bf16 %v2365, %v2364
          %v2437 = vpack.c.bf16 %v2367, %v2366
          %v2438 = vpack.c.bf16 %v2369, %v2368
          %v2439 = vpack.c.bf16 %v2371, %v2370
          %v2440 = vpack.c.bf16 %v2373, %v2372
          %v2441 = vpack.c.bf16 %v2375, %v2374
          %v2442 = vpack.c.bf16 %v2377, %v2376
          %v2443 = vpack.c.bf16 %v2379, %v2378
          %v2508 = vunpack.c.l.b16 %v2380
          %v2509 = vunpack.c.h.b16 %v2380
          %v2510 = vunpack.c.l.b16 %v2381
          %v2511 = vunpack.c.h.b16 %v2381
          %v2512 = vunpack.c.l.b16 %v2382
          %v2513 = vunpack.c.h.b16 %v2382
          %v2514 = vunpack.c.l.b16 %v2383
          %v2515 = vunpack.c.h.b16 %v2383
          %v2516 = vunpack.c.l.b16 %v2384
          %v2517 = vunpack.c.h.b16 %v2384
          %v2518 = vunpack.c.l.b16 %v2385
          %v2519 = vunpack.c.h.b16 %v2385
          %v2520 = vunpack.c.l.b16 %v2386
          %v2521 = vunpack.c.h.b16 %v2386
          %v2522 = vunpack.c.l.b16 %v2387
          %v2523 = vunpack.c.h.b16 %v2387
          %v2524 = vunpack.c.l.b16 %v2388
          %v2525 = vunpack.c.h.b16 %v2388
          %v2526 = vunpack.c.l.b16 %v2389
          %v2527 = vunpack.c.h.b16 %v2389
          %v2528 = vunpack.c.l.b16 %v2390
          %v2529 = vunpack.c.h.b16 %v2390
          %v2530 = vunpack.c.l.b16 %v2391
          %v2531 = vunpack.c.h.b16 %v2391
          %v2532 = vunpack.c.l.b16 %v2392
          %v2533 = vunpack.c.h.b16 %v2392
          %v2534 = vunpack.c.l.b16 %v2393
          %v2535 = vunpack.c.h.b16 %v2393
          %v2536 = vunpack.c.l.b16 %v2394
          %v2537 = vunpack.c.h.b16 %v2394
          %v2538 = vunpack.c.l.b16 %v2395
          %v2539 = vunpack.c.h.b16 %v2395
          %v2540 = vunpack.c.l.b16 %v2396
          %v2541 = vunpack.c.h.b16 %v2396
          %v2542 = vunpack.c.l.b16 %v2397
          %v2543 = vunpack.c.h.b16 %v2397
          %v2544 = vunpack.c.l.b16 %v2398
          %v2545 = vunpack.c.h.b16 %v2398
          %v2546 = vunpack.c.l.b16 %v2399
          %v2547 = vunpack.c.h.b16 %v2399
          %v2548 = vunpack.c.l.b16 %v2400
          %v2549 = vunpack.c.h.b16 %v2400
          %v2550 = vunpack.c.l.b16 %v2401
          %v2551 = vunpack.c.h.b16 %v2401
          %v2552 = vunpack.c.l.b16 %v2402
          %v2553 = vunpack.c.h.b16 %v2402
          %v2554 = vunpack.c.l.b16 %v2403
          %v2555 = vunpack.c.h.b16 %v2403
          %v2556 = vunpack.c.l.b16 %v2404
          %v2557 = vunpack.c.h.b16 %v2404
          %v2558 = vunpack.c.l.b16 %v2405
          %v2559 = vunpack.c.h.b16 %v2405
          %v2560 = vunpack.c.l.b16 %v2406
          %v2561 = vunpack.c.h.b16 %v2406
          %v2562 = vunpack.c.l.b16 %v2407
          %v2563 = vunpack.c.h.b16 %v2407
          %v2564 = vunpack.c.l.b16 %v2408
          %v2565 = vunpack.c.h.b16 %v2408
          %v2566 = vunpack.c.l.b16 %v2409
          %v2567 = vunpack.c.h.b16 %v2409
          %v2568 = vunpack.c.l.b16 %v2410
          %v2569 = vunpack.c.h.b16 %v2410
          %v2570 = vunpack.c.l.b16 %v2411
          %v2571 = vunpack.c.h.b16 %v2411
          %v2572 = vunpack.c.l.b16 %v2412
          %v2573 = vunpack.c.h.b16 %v2412
          %v2574 = vunpack.c.l.b16 %v2413
          %v2575 = vunpack.c.h.b16 %v2413
          %v2576 = vunpack.c.l.b16 %v2414
          %v2577 = vunpack.c.h.b16 %v2414
          %v2578 = vunpack.c.l.b16 %v2415
          %v2579 = vunpack.c.h.b16 %v2415
          %v2580 = vunpack.c.l.b16 %v2416
          %v2581 = vunpack.c.h.b16 %v2416
          %v2582 = vunpack.c.l.b16 %v2417
          %v2583 = vunpack.c.h.b16 %v2417
          %v2584 = vunpack.c.l.b16 %v2418
          %v2585 = vunpack.c.h.b16 %v2418
          %v2586 = vunpack.c.l.b16 %v2419
          %v2587 = vunpack.c.h.b16 %v2419
          %v2588 = vunpack.c.l.b16 %v2420
          %v2589 = vunpack.c.h.b16 %v2420
          %v2590 = vunpack.c.l.b16 %v2421
          %v2591 = vunpack.c.h.b16 %v2421
          %v2592 = vunpack.c.l.b16 %v2422
          %v2593 = vunpack.c.h.b16 %v2422
          %v2594 = vunpack.c.l.b16 %v2423
          %v2595 = vunpack.c.h.b16 %v2423
          %v2596 = vunpack.c.l.b16 %v2424
          %v2597 = vunpack.c.h.b16 %v2424
          %v2598 = vunpack.c.l.b16 %v2425
          %v2599 = vunpack.c.h.b16 %v2425
          %v2600 = vunpack.c.l.b16 %v2426
          %v2601 = vunpack.c.h.b16 %v2426
          %v2602 = vunpack.c.l.b16 %v2427
          %v2603 = vunpack.c.h.b16 %v2427
          %v2604 = vunpack.c.l.b16 %v2428
          %v2605 = vunpack.c.h.b16 %v2428
          %v2606 = vunpack.c.l.b16 %v2429
          %v2607 = vunpack.c.h.b16 %v2429
          %v2608 = vunpack.c.l.b16 %v2430
          %v2609 = vunpack.c.h.b16 %v2430
          %v2610 = vunpack.c.l.b16 %v2431
          %v2611 = vunpack.c.h.b16 %v2431
          %v2612 = vunpack.c.l.b16 %v2432
          %v2613 = vunpack.c.h.b16 %v2432
          %v2614 = vunpack.c.l.b16 %v2433
          %v2615 = vunpack.c.h.b16 %v2433
          %v2616 = vunpack.c.l.b16 %v2434
          %v2617 = vunpack.c.h.b16 %v2434
          %v2618 = vunpack.c.l.b16 %v2435
          %v2619 = vunpack.c.h.b16 %v2435
          %v2620 = vunpack.c.l.b16 %v2436
          %v2621 = vunpack.c.h.b16 %v2436
          %v2622 = vunpack.c.l.b16 %v2437
          %v2623 = vunpack.c.h.b16 %v2437
          %v2624 = vunpack.c.l.b16 %v2438
          %v2625 = vunpack.c.h.b16 %v2438
          %v2626 = vunpack.c.l.b16 %v2439
          %v2627 = vunpack.c.h.b16 %v2439
          %v2628 = vunpack.c.l.b16 %v2440
          %v2629 = vunpack.c.h.b16 %v2440
          %v2630 = vunpack.c.l.b16 %v2441
          %v2631 = vunpack.c.h.b16 %v2441
          %v2632 = vunpack.c.l.b16 %v2442
          %v2633 = vunpack.c.h.b16 %v2442
          %v2634 = vunpack.c.l.b16 %v2443
          %v2635 = vunpack.c.h.b16 %v2443
          %v2636 = vpack.c.b16 %v2508, %v2508
          %v2637 = vpack.c.b16 %v2509, %v2509
          %v2638 = vpack.c.b16 %v2510, %v2510
          %v2639 = vpack.c.b16 %v2511, %v2511
          %v2640 = vpack.c.b16 %v2512, %v2512
          %v2641 = vpack.c.b16 %v2513, %v2513
          %v2642 = vpack.c.b16 %v2514, %v2514
          %v2643 = vpack.c.b16 %v2515, %v2515
          %v2644 = vpack.c.b16 %v2516, %v2516
          %v2645 = vpack.c.b16 %v2517, %v2517
          %v2646 = vpack.c.b16 %v2518, %v2518
          %v2647 = vpack.c.b16 %v2519, %v2519
          %v2648 = vpack.c.b16 %v2520, %v2520
          %v2649 = vpack.c.b16 %v2521, %v2521
          %v2650 = vpack.c.b16 %v2522, %v2522
          %v2651 = vpack.c.b16 %v2523, %v2523
          %v2652 = vpack.c.b16 %v2524, %v2524
          %v2653 = vpack.c.b16 %v2525, %v2525
          %v2654 = vpack.c.b16 %v2526, %v2526
          %v2655 = vpack.c.b16 %v2527, %v2527
          %v2656 = vpack.c.b16 %v2528, %v2528
          %v2657 = vpack.c.b16 %v2529, %v2529
          %v2658 = vpack.c.b16 %v2530, %v2530
          %v2659 = vpack.c.b16 %v2531, %v2531
          %v2660 = vpack.c.b16 %v2532, %v2532
          %v2661 = vpack.c.b16 %v2533, %v2533
          %v2662 = vpack.c.b16 %v2534, %v2534
          %v2663 = vpack.c.b16 %v2535, %v2535
          %v2664 = vpack.c.b16 %v2536, %v2536
          %v2665 = vpack.c.b16 %v2537, %v2537
          %v2666 = vpack.c.b16 %v2538, %v2538
          %v2667 = vpack.c.b16 %v2539, %v2539
          %v2668 = vpack.c.b16 %v2540, %v2540
          %v2669 = vpack.c.b16 %v2541, %v2541
          %v2670 = vpack.c.b16 %v2542, %v2542
          %v2671 = vpack.c.b16 %v2543, %v2543
          %v2672 = vpack.c.b16 %v2544, %v2544
          %v2673 = vpack.c.b16 %v2545, %v2545
          %v2674 = vpack.c.b16 %v2546, %v2546
          %v2675 = vpack.c.b16 %v2547, %v2547
          %v2676 = vpack.c.b16 %v2548, %v2548
          %v2677 = vpack.c.b16 %v2549, %v2549
          %v2678 = vpack.c.b16 %v2550, %v2550
          %v2679 = vpack.c.b16 %v2551, %v2551
          %v2680 = vpack.c.b16 %v2552, %v2552
          %v2681 = vpack.c.b16 %v2553, %v2553
          %v2682 = vpack.c.b16 %v2554, %v2554
          %v2683 = vpack.c.b16 %v2555, %v2555
          %v2684 = vpack.c.b16 %v2556, %v2556
          %v2685 = vpack.c.b16 %v2557, %v2557
          %v2686 = vpack.c.b16 %v2558, %v2558
          %v2687 = vpack.c.b16 %v2559, %v2559
          %v2688 = vpack.c.b16 %v2560, %v2560
          %v2689 = vpack.c.b16 %v2561, %v2561
          %v2690 = vpack.c.b16 %v2562, %v2562
          %v2691 = vpack.c.b16 %v2563, %v2563
          %v2692 = vpack.c.b16 %v2564, %v2564
          %v2693 = vpack.c.b16 %v2565, %v2565
          %v2694 = vpack.c.b16 %v2566, %v2566
          %v2695 = vpack.c.b16 %v2567, %v2567
          %v2696 = vpack.c.b16 %v2568, %v2568
          %v2697 = vpack.c.b16 %v2569, %v2569
          %v2698 = vpack.c.b16 %v2570, %v2570
          %v2699 = vpack.c.b16 %v2571, %v2571
          %v2700 = vpack.c.b16 %v2572, %v2572
          %v2701 = vpack.c.b16 %v2573, %v2573
          %v2702 = vpack.c.b16 %v2574, %v2574
          %v2703 = vpack.c.b16 %v2575, %v2575
          %v2704 = vpack.c.b16 %v2576, %v2576
          %v2705 = vpack.c.b16 %v2577, %v2577
          %v2706 = vpack.c.b16 %v2578, %v2578
          %v2707 = vpack.c.b16 %v2579, %v2579
          %v2708 = vpack.c.b16 %v2580, %v2580
          %v2709 = vpack.c.b16 %v2581, %v2581
          %v2710 = vpack.c.b16 %v2582, %v2582
          %v2711 = vpack.c.b16 %v2583, %v2583
          %v2712 = vpack.c.b16 %v2584, %v2584
          %v2713 = vpack.c.b16 %v2585, %v2585
          %v2714 = vpack.c.b16 %v2586, %v2586
          %v2715 = vpack.c.b16 %v2587, %v2587
          %v2716 = vpack.c.b16 %v2588, %v2588
          %v2717 = vpack.c.b16 %v2589, %v2589
          %v2718 = vpack.c.b16 %v2590, %v2590
          %v2719 = vpack.c.b16 %v2591, %v2591
          %v2720 = vpack.c.b16 %v2592, %v2592
          %v2721 = vpack.c.b16 %v2593, %v2593
          %v2722 = vpack.c.b16 %v2594, %v2594
          %v2723 = vpack.c.b16 %v2595, %v2595
          %v2724 = vpack.c.b16 %v2596, %v2596
          %v2725 = vpack.c.b16 %v2597, %v2597
          %v2726 = vpack.c.b16 %v2598, %v2598
          %v2727 = vpack.c.b16 %v2599, %v2599
          %v2728 = vpack.c.b16 %v2600, %v2600
          %v2729 = vpack.c.b16 %v2601, %v2601
          %v2730 = vpack.c.b16 %v2602, %v2602
          %v2731 = vpack.c.b16 %v2603, %v2603
          %v2732 = vpack.c.b16 %v2604, %v2604
          %v2733 = vpack.c.b16 %v2605, %v2605
          %v2734 = vpack.c.b16 %v2606, %v2606
          %v2735 = vpack.c.b16 %v2607, %v2607
          %v2736 = vpack.c.b16 %v2608, %v2608
          %v2737 = vpack.c.b16 %v2609, %v2609
          %v2738 = vpack.c.b16 %v2610, %v2610
          %v2739 = vpack.c.b16 %v2611, %v2611
          %v2740 = vpack.c.b16 %v2612, %v2612
          %v2741 = vpack.c.b16 %v2613, %v2613
          %v2742 = vpack.c.b16 %v2614, %v2614
          %v2743 = vpack.c.b16 %v2615, %v2615
          %v2744 = vpack.c.b16 %v2616, %v2616
          %v2745 = vpack.c.b16 %v2617, %v2617
          %v2746 = vpack.c.b16 %v2618, %v2618
          %v2747 = vpack.c.b16 %v2619, %v2619
          %v2748 = vpack.c.b16 %v2620, %v2620
          %v2749 = vpack.c.b16 %v2621, %v2621
          %v2750 = vpack.c.b16 %v2622, %v2622
          %v2751 = vpack.c.b16 %v2623, %v2623
          %v2752 = vpack.c.b16 %v2624, %v2624
          %v2753 = vpack.c.b16 %v2625, %v2625
          %v2754 = vpack.c.b16 %v2626, %v2626
          %v2755 = vpack.c.b16 %v2627, %v2627
          %v2756 = vpack.c.b16 %v2628, %v2628
          %v2757 = vpack.c.b16 %v2629, %v2629
          %v2758 = vpack.c.b16 %v2630, %v2630
          %v2759 = vpack.c.b16 %v2631, %v2631
          %v2760 = vpack.c.b16 %v2632, %v2632
          %v2761 = vpack.c.b16 %v2633, %v2633
          %v2762 = vpack.c.b16 %v2634, %v2634
          %v2763 = vpack.c.b16 %v2635, %v2635
          %vm2892 = vcmask 519168
          %2893 = vst.msk [vmem:[%s257] sm:$0xf] %vm2892, %v2636
          %2894 = vst.msk [vmem:[%s257 + $0x4] sm:$0xf] %vm2892, %v2637
          %2895 = vst.msk [vmem:[%s257 + $0x8] sm:$0xf] %vm2892, %v2638
          %2896 = vst.msk [vmem:[%s257 + $0xc] sm:$0xf] %vm2892, %v2639
          %2897 = vst.msk [vmem:[%s257 + $0x10] sm:$0xf] %vm2892, %v2640
          %2898 = vst.msk [vmem:[%s257 + $0x14] sm:$0xf] %vm2892, %v2641
          %2899 = vst.msk [vmem:[%s257 + $0x18] sm:$0xf] %vm2892, %v2642
          %2900 = vst.msk [vmem:[%s257 + $0x1c] sm:$0xf] %vm2892, %v2643
          %2901 = vst.msk [vmem:[%s257 + $0x20] sm:$0xf] %vm2892, %v2644
          %2902 = vst.msk [vmem:[%s257 + $0x24] sm:$0xf] %vm2892, %v2645
          %2903 = vst.msk [vmem:[%s257 + $0x28] sm:$0xf] %vm2892, %v2646
          %2904 = vst.msk [vmem:[%s257 + $0x2c] sm:$0xf] %vm2892, %v2647
          %2905 = vst.msk [vmem:[%s257 + $0x30] sm:$0xf] %vm2892, %v2648
          %2906 = vst.msk [vmem:[%s257 + $0x34] sm:$0xf] %vm2892, %v2649
          %2907 = vst.msk [vmem:[%s257 + $0x38] sm:$0xf] %vm2892, %v2650
          %2908 = vst.msk [vmem:[%s257 + $0x3c] sm:$0xf] %vm2892, %v2651
          %2909 = vst.msk [vmem:[%s257 + $0x40] sm:$0xf] %vm2892, %v2652
          %2910 = vst.msk [vmem:[%s257 + $0x44] sm:$0xf] %vm2892, %v2653
          %2911 = vst.msk [vmem:[%s257 + $0x48] sm:$0xf] %vm2892, %v2654
          %2912 = vst.msk [vmem:[%s257 + $0x4c] sm:$0xf] %vm2892, %v2655
          %2913 = vst.msk [vmem:[%s257 + $0x50] sm:$0xf] %vm2892, %v2656
          %2914 = vst.msk [vmem:[%s257 + $0x54] sm:$0xf] %vm2892, %v2657
          %2915 = vst.msk [vmem:[%s257 + $0x58] sm:$0xf] %vm2892, %v2658
          %2916 = vst.msk [vmem:[%s257 + $0x5c] sm:$0xf] %vm2892, %v2659
          %2917 = vst.msk [vmem:[%s257 + $0x60] sm:$0xf] %vm2892, %v2660
          %2918 = vst.msk [vmem:[%s257 + $0x64] sm:$0xf] %vm2892, %v2661
          %2919 = vst.msk [vmem:[%s257 + $0x68] sm:$0xf] %vm2892, %v2662
          %2920 = vst.msk [vmem:[%s257 + $0x6c] sm:$0xf] %vm2892, %v2663
          %2921 = vst.msk [vmem:[%s257 + $0x70] sm:$0xf] %vm2892, %v2664
          %2922 = vst.msk [vmem:[%s257 + $0x74] sm:$0xf] %vm2892, %v2665
          %2923 = vst.msk [vmem:[%s257 + $0x78] sm:$0xf] %vm2892, %v2666
          %2924 = vst.msk [vmem:[%s257 + $0x7c] sm:$0xf] %vm2892, %v2667
          %2925 = vst.msk [vmem:[%s257 + $0x80] sm:$0xf] %vm2892, %v2668
          %2926 = vst.msk [vmem:[%s257 + $0x84] sm:$0xf] %vm2892, %v2669
          %2927 = vst.msk [vmem:[%s257 + $0x88] sm:$0xf] %vm2892, %v2670
          %2928 = vst.msk [vmem:[%s257 + $0x8c] sm:$0xf] %vm2892, %v2671
          %2929 = vst.msk [vmem:[%s257 + $0x90] sm:$0xf] %vm2892, %v2672
          %2930 = vst.msk [vmem:[%s257 + $0x94] sm:$0xf] %vm2892, %v2673
          %2931 = vst.msk [vmem:[%s257 + $0x98] sm:$0xf] %vm2892, %v2674
          %2932 = vst.msk [vmem:[%s257 + $0x9c] sm:$0xf] %vm2892, %v2675
          %2933 = vst.msk [vmem:[%s257 + $0xa0] sm:$0xf] %vm2892, %v2676
          %2934 = vst.msk [vmem:[%s257 + $0xa4] sm:$0xf] %vm2892, %v2677
          %2935 = vst.msk [vmem:[%s257 + $0xa8] sm:$0xf] %vm2892, %v2678
          %2936 = vst.msk [vmem:[%s257 + $0xac] sm:$0xf] %vm2892, %v2679
          %2937 = vst.msk [vmem:[%s257 + $0xb0] sm:$0xf] %vm2892, %v2680
          %2938 = vst.msk [vmem:[%s257 + $0xb4] sm:$0xf] %vm2892, %v2681
          %2939 = vst.msk [vmem:[%s257 + $0xb8] sm:$0xf] %vm2892, %v2682
          %2940 = vst.msk [vmem:[%s257 + $0xbc] sm:$0xf] %vm2892, %v2683
          %2941 = vst.msk [vmem:[%s257 + $0xc0] sm:$0xf] %vm2892, %v2684
          %2942 = vst.msk [vmem:[%s257 + $0xc4] sm:$0xf] %vm2892, %v2685
          %2943 = vst.msk [vmem:[%s257 + $0xc8] sm:$0xf] %vm2892, %v2686
          %2944 = vst.msk [vmem:[%s257 + $0xcc] sm:$0xf] %vm2892, %v2687
          %2945 = vst.msk [vmem:[%s257 + $0xd0] sm:$0xf] %vm2892, %v2688
          %2946 = vst.msk [vmem:[%s257 + $0xd4] sm:$0xf] %vm2892, %v2689
          %2947 = vst.msk [vmem:[%s257 + $0xd8] sm:$0xf] %vm2892, %v2690
          %2948 = vst.msk [vmem:[%s257 + $0xdc] sm:$0xf] %vm2892, %v2691
          %2949 = vst.msk [vmem:[%s257 + $0xe0] sm:$0xf] %vm2892, %v2692
          %2950 = vst.msk [vmem:[%s257 + $0xe4] sm:$0xf] %vm2892, %v2693
          %2951 = vst.msk [vmem:[%s257 + $0xe8] sm:$0xf] %vm2892, %v2694
          %2952 = vst.msk [vmem:[%s257 + $0xec] sm:$0xf] %vm2892, %v2695
          %2953 = vst.msk [vmem:[%s257 + $0xf0] sm:$0xf] %vm2892, %v2696
          %2954 = vst.msk [vmem:[%s257 + $0xf4] sm:$0xf] %vm2892, %v2697
          %2955 = vst.msk [vmem:[%s257 + $0xf8] sm:$0xf] %vm2892, %v2698
          %2956 = vst.msk [vmem:[%s257 + $0xfc] sm:$0xf] %vm2892, %v2699
          %2957 = vst.msk [vmem:[%s257 + $0x100] sm:$0xf] %vm2892, %v2700
          %2958 = vst.msk [vmem:[%s257 + $0x104] sm:$0xf] %vm2892, %v2701
          %2959 = vst.msk [vmem:[%s257 + $0x108] sm:$0xf] %vm2892, %v2702
          %2960 = vst.msk [vmem:[%s257 + $0x10c] sm:$0xf] %vm2892, %v2703
          %2961 = vst.msk [vmem:[%s257 + $0x110] sm:$0xf] %vm2892, %v2704
          %2962 = vst.msk [vmem:[%s257 + $0x114] sm:$0xf] %vm2892, %v2705
          %2963 = vst.msk [vmem:[%s257 + $0x118] sm:$0xf] %vm2892, %v2706
          %2964 = vst.msk [vmem:[%s257 + $0x11c] sm:$0xf] %vm2892, %v2707
          %2965 = vst.msk [vmem:[%s257 + $0x120] sm:$0xf] %vm2892, %v2708
          %2966 = vst.msk [vmem:[%s257 + $0x124] sm:$0xf] %vm2892, %v2709
          %2967 = vst.msk [vmem:[%s257 + $0x128] sm:$0xf] %vm2892, %v2710
          %2968 = vst.msk [vmem:[%s257 + $0x12c] sm:$0xf] %vm2892, %v2711
          %2969 = vst.msk [vmem:[%s257 + $0x130] sm:$0xf] %vm2892, %v2712
          %2970 = vst.msk [vmem:[%s257 + $0x134] sm:$0xf] %vm2892, %v2713
          %2971 = vst.msk [vmem:[%s257 + $0x138] sm:$0xf] %vm2892, %v2714
          %2972 = vst.msk [vmem:[%s257 + $0x13c] sm:$0xf] %vm2892, %v2715
          %2973 = vst.msk [vmem:[%s257 + $0x140] sm:$0xf] %vm2892, %v2716
          %2974 = vst.msk [vmem:[%s257 + $0x144] sm:$0xf] %vm2892, %v2717
          %2975 = vst.msk [vmem:[%s257 + $0x148] sm:$0xf] %vm2892, %v2718
          %2976 = vst.msk [vmem:[%s257 + $0x14c] sm:$0xf] %vm2892, %v2719
          %2977 = vst.msk [vmem:[%s257 + $0x150] sm:$0xf] %vm2892, %v2720
          %2978 = vst.msk [vmem:[%s257 + $0x154] sm:$0xf] %vm2892, %v2721
          %2979 = vst.msk [vmem:[%s257 + $0x158] sm:$0xf] %vm2892, %v2722
          %2980 = vst.msk [vmem:[%s257 + $0x15c] sm:$0xf] %vm2892, %v2723
          %2981 = vst.msk [vmem:[%s257 + $0x160] sm:$0xf] %vm2892, %v2724
          %2982 = vst.msk [vmem:[%s257 + $0x164] sm:$0xf] %vm2892, %v2725
          %2983 = vst.msk [vmem:[%s257 + $0x168] sm:$0xf] %vm2892, %v2726
          %2984 = vst.msk [vmem:[%s257 + $0x16c] sm:$0xf] %vm2892, %v2727
          %2985 = vst.msk [vmem:[%s257 + $0x170] sm:$0xf] %vm2892, %v2728
          %2986 = vst.msk [vmem:[%s257 + $0x174] sm:$0xf] %vm2892, %v2729
          %2987 = vst.msk [vmem:[%s257 + $0x178] sm:$0xf] %vm2892, %v2730
          %2988 = vst.msk [vmem:[%s257 + $0x17c] sm:$0xf] %vm2892, %v2731
          %2989 = vst.msk [vmem:[%s257 + $0x180] sm:$0xf] %vm2892, %v2732
          %2990 = vst.msk [vmem:[%s257 + $0x184] sm:$0xf] %vm2892, %v2733
          %2991 = vst.msk [vmem:[%s257 + $0x188] sm:$0xf] %vm2892, %v2734
          %2992 = vst.msk [vmem:[%s257 + $0x18c] sm:$0xf] %vm2892, %v2735
          %2993 = vst.msk [vmem:[%s257 + $0x190] sm:$0xf] %vm2892, %v2736
          %2994 = vst.msk [vmem:[%s257 + $0x194] sm:$0xf] %vm2892, %v2737
          %2995 = vst.msk [vmem:[%s257 + $0x198] sm:$0xf] %vm2892, %v2738
          %2996 = vst.msk [vmem:[%s257 + $0x19c] sm:$0xf] %vm2892, %v2739
          %2997 = vst.msk [vmem:[%s257 + $0x1a0] sm:$0xf] %vm2892, %v2740
          %2998 = vst.msk [vmem:[%s257 + $0x1a4] sm:$0xf] %vm2892, %v2741
          %2999 = vst.msk [vmem:[%s257 + $0x1a8] sm:$0xf] %vm2892, %v2742
          %3000 = vst.msk [vmem:[%s257 + $0x1ac] sm:$0xf] %vm2892, %v2743
          %3001 = vst.msk [vmem:[%s257 + $0x1b0] sm:$0xf] %vm2892, %v2744
          %3002 = vst.msk [vmem:[%s257 + $0x1b4] sm:$0xf] %vm2892, %v2745
          %3003 = vst.msk [vmem:[%s257 + $0x1b8] sm:$0xf] %vm2892, %v2746
          %3004 = vst.msk [vmem:[%s257 + $0x1bc] sm:$0xf] %vm2892, %v2747
          %3005 = vst.msk [vmem:[%s257 + $0x1c0] sm:$0xf] %vm2892, %v2748
          %3006 = vst.msk [vmem:[%s257 + $0x1c4] sm:$0xf] %vm2892, %v2749
          %3007 = vst.msk [vmem:[%s257 + $0x1c8] sm:$0xf] %vm2892, %v2750
          %3008 = vst.msk [vmem:[%s257 + $0x1cc] sm:$0xf] %vm2892, %v2751
          %3009 = vst.msk [vmem:[%s257 + $0x1d0] sm:$0xf] %vm2892, %v2752
          %3010 = vst.msk [vmem:[%s257 + $0x1d4] sm:$0xf] %vm2892, %v2753
          %3011 = vst.msk [vmem:[%s257 + $0x1d8] sm:$0xf] %vm2892, %v2754
          %3012 = vst.msk [vmem:[%s257 + $0x1dc] sm:$0xf] %vm2892, %v2755
          %3013 = vst.msk [vmem:[%s257 + $0x1e0] sm:$0xf] %vm2892, %v2756
          %3014 = vst.msk [vmem:[%s257 + $0x1e4] sm:$0xf] %vm2892, %v2757
          %3015 = vst.msk [vmem:[%s257 + $0x1e8] sm:$0xf] %vm2892, %v2758
          %3016 = vst.msk [vmem:[%s257 + $0x1ec] sm:$0xf] %vm2892, %v2759
          %3017 = vst.msk [vmem:[%s257 + $0x1f0] sm:$0xf] %vm2892, %v2760
          %3018 = vst.msk [vmem:[%s257 + $0x1f4] sm:$0xf] %vm2892, %v2761
          %3019 = vst.msk [vmem:[%s257 + $0x1f8] sm:$0xf] %vm2892, %v2762
          %3020 = vst.msk [vmem:[%s257 + $0x1fc] sm:$0xf] %vm2892, %v2763
        $region48: #{model1_vgg19_forward.2} parent=31 // pred_fallthru
          _
        %s3021 = smul.u32 128, %s21
        %p3022 = scmp.lt.s32.totalorder %s3021, 255
        %s3023 = scalar_select %p3022, %s3021, 255
        %p3024 = scmp.lt.s32.totalorder %s22, 0
        %s3025 = scalar_select %p3024, %s22, 0
        %s3026 = sadd.s32 %s3025, %s3023
        %s3027 = smul.addr %s3026, 4
        %s3028 = scalar_lea.vmem %s3, %s3027
        // Predicated region
        $region49: #{model1_vgg19_forward.2} parent=31 // pred_check
          %p3029 = pneg %p137
        $region50: #{model1_vgg19_forward.2} parent=31 // pred_check_branch
          %3031 = sbr.rel (%p3029) target = $region52
        $region51: #{model1_vgg19_forward.2} parent=31 // pred_region
          %s3032 = smul.u32 128, %s21
        $region52: #{model1_vgg19_forward.2} parent=31 // pred_fallthru
          _
      $region32: #{model1_vgg19_forward.2} parent=5 // pred_fallthru
        _
      %p3033 = scmp.le.s32.totalorder 2, %s11
      // Predicated region
      $region53: #{model1_vgg19_forward.2} parent=5 // pred_check
        %p3034 = pneg %p3033
      $region54: #{model1_vgg19_forward.2} parent=5 // pred_check_branch
        %3036 = sbr.rel (%p3034) target = $region56
      $region55: #{model1_vgg19_forward.2} parent=5 // pred_region
        %s3037 = ssub.s32 %s11, 2
        // Predicated region
        $region57: #{model1_vgg19_forward.2} parent=55 // pred_check
          %p3038 = pneg %p143
        $region58: #{model1_vgg19_forward.2} parent=55 // pred_check_branch
          %3040 = sbr.rel (%p3038) target = $region60
        $region59: #{model1_vgg19_forward.2} parent=55 // pred_region
          %s3041 = smul.u32 128, %s24
          %p3042 = scmp.lt.s32.totalorder %s3041, 255
          %s3043 = scalar_select %p3042, %s3041, 255
          %p3044 = scmp.lt.s32.totalorder %s25, 0
          %s3045 = scalar_select %p3044, %s25, 0
          %s3046 = sadd.s32 %s3045, %s3043
          %s3047 = smul.addr %s3046, 4
          %s3048 = scalar_lea.vmem %s3, %s3047
        $region60: #{model1_vgg19_forward.2} parent=55 // pred_fallthru
          _
      $region56: #{model1_vgg19_forward.2} parent=5 // pred_fallthru
        _
    $region6: #{model1_vgg19_forward.2} parent=1 // loop_footer
      %s15 = sadd.s32 1, %s11
    $region7: #{model1_vgg19_forward.2} parent=1 // loop_footer_branch
      %10 = sbr.rel target = $region3
    $region8: #{model1_vgg19_forward.2} parent=1 // loop_exit
      _
    %3049 = vsyncpa [#allocation4], 1
    %s3050 = scalar_lea.sflag [#allocation4], 1
    %3051 = vsyncpa %s3050, 1
    %3052 = vsyncpa [#allocation6], 1

</llo_original>
